<compile_context>
chip_gen: v7x
topology: tpu7x:2x2x1
jax: 0.10.0
libtpu: 0.0.40
codegen_flags: <defaults>
</compile_context>

<pallas_src>
import functools

import jax
import jax.numpy as jnp
from jax.experimental import pallas as pl
from jax.experimental.pallas import tpu as pltpu

EXPANSION = 4
EPS = 1e-5


# --------------------------------------------------------------------------- #
# Kernels
# --------------------------------------------------------------------------- #
def _bottleneck_kernel(x_ref, w1_ref, w2_ref, w3_ref, pb_ref, o_ref, pad_ref):
    """stride=1 block (identity shortcut).  x_ref: (1, H, W, Cin) bf16."""
    H, W, Cin = x_ref.shape[1], x_ref.shape[2], x_ref.shape[3]
    Cmid = w1_ref.shape[1]
    Cout = w3_ref.shape[1]

    # packed per-channel BN params (f32)
    s1 = pb_ref[0:1, 0:Cmid]
    b1 = pb_ref[1:2, 0:Cmid]
    s2 = pb_ref[2:3, 0:Cmid]
    b2 = pb_ref[3:4, 0:Cmid]
    s3 = pb_ref[4:5, :]
    b3 = pb_ref[5:6, :]

    x = x_ref[0]                                       # (H, W, Cin) bf16
    xf = x.reshape(H * W, Cin)

    # ---- conv1 (1x1) + bn1 + relu (bf16 operands, f32 accumulate) ----------
    y1 = jnp.dot(xf, w1_ref[...], preferred_element_type=jnp.float32)
    y1 = jnp.maximum(y1 * s1 + b1, 0.0)                # (H*W, Cmid) f32

    # ---- padded bf16 scratch: zero only the 1-pixel halo --------------------
    zrow = jnp.zeros((1, W + 2, Cmid), jnp.bfloat16)
    zcol = jnp.zeros((H + 2, 1, Cmid), jnp.bfloat16)
    pad_ref[0:1, :, :] = zrow
    pad_ref[H + 1:H + 2, :, :] = zrow
    pad_ref[:, 0:1, :] = zcol
    pad_ref[:, W + 1:W + 2, :] = zcol
    pad_ref[1:H + 1, 1:W + 1, :] = y1.reshape(H, W, Cmid).astype(jnp.bfloat16)

    # ---- conv2 (3x3, pad=1, stride=1): 9 accumulating dots ------------------
    acc = jnp.zeros((H * W, Cmid), jnp.float32)
    t = 0
    for dh in range(3):
        for dw in range(3):
            slab = pad_ref[dh:dh + H, dw:dw + W, :].reshape(H * W, Cmid)
            acc = acc + jnp.dot(slab, w2_ref[t],
                                preferred_element_type=jnp.float32)
            t += 1
    y2 = jnp.maximum(acc * s2 + b2, 0.0)               # (H*W, Cmid)

    # ---- conv3 (1x1) + bn3 ---------------------------------------------------
    y3 = jnp.dot(y2.astype(jnp.bfloat16), w3_ref[...],
                 preferred_element_type=jnp.float32)
    y3 = y3 * s3 + b3                                  # (H*W, Cout)

    # ---- identity shortcut + relu -------------------------------------------
    out = jnp.maximum(y3 + xf.astype(jnp.float32), 0.0)
    o_ref[0] = out.reshape(H, W, Cout).astype(o_ref.dtype)


def _bottleneck_ds_kernel(x_ref, w1_ref, w2_ref, w3_ref, pb_ref, ws_ref,
                          o_ref, pad_ref):
    """stride=2 block (projection shortcut).

    x_ref: (1, H, Wo, 2*Cin) bf16 -- input pair-grouped along W (cols 2j,2j+1
    live in the lane dim).  No sublane-strided gathers: even/odd column
    selection is folded into the matmul K dimension.
    """
    H = x_ref.shape[1]
    Wo = x_ref.shape[2]
    Cin2 = x_ref.shape[3]
    Cmid2 = w1_ref.shape[1]
    Cmid = Cmid2 // 2
    Cout = w3_ref.shape[1]
    Ho = o_ref.shape[1]

    s1 = pb_ref[0:1, 0:Cmid2]        # tiled over the two column phases
    b1 = pb_ref[1:2, 0:Cmid2]
    s2 = pb_ref[2:3, 0:Cmid]
    b2 = pb_ref[3:4, 0:Cmid]
    s3 = pb_ref[4:5, :]
    b3 = pb_ref[5:6, :]
    bs = pb_ref[6:7, :]

    x = x_ref[0]                                       # (H, Wo, 2*Cin) bf16

    # ---- conv1 (1x1) on pair-grouped input: block-diagonal weight -----------
    y1 = jnp.dot(x.reshape(H * Wo, Cin2), w1_ref[...],
                 preferred_element_type=jnp.float32)
    y1 = jnp.maximum(y1 * s1 + b1, 0.0)                # (H*Wo, 2*Cmid)

    # ---- padded bf16 scratch (pair-grouped columns) --------------------------
    # pair q (q>=1) holds y1 spatial cols (2(q-1), 2(q-1)+1); pair 0 is the
    # left halo (only its phase-1 lane, spatial col -1, is ever read).
    zrow = jnp.zeros((1, Wo + 1, Cmid2), jnp.bfloat16)
    zcol = jnp.zeros((H + 2, 1, Cmid2), jnp.bfloat16)
    pad_ref[0:1, :, :] = zrow
    pad_ref[H + 1:H + 2, :, :] = zrow
    pad_ref[:, 0:1, :] = zcol
    pad_ref[1:H + 1, 1:Wo + 1, :] = y1.reshape(H, Wo, Cmid2).astype(jnp.bfloat16)

    # ---- conv2 (3x3, pad=1, stride=2): 6 accumulating dots (K = 2*Cmid) -----
    # Output col j needs y1 cols 2j-1 (phase 1 of pad pair j) and 2j,2j+1
    # (pad pair j+1); the phase selection lives in the pre-packed weights.
    padv = pad_ref[...]                                # (H+2, Wo+1, 2*Cmid)
    acc = jnp.zeros((Ho * Wo, Cmid), jnp.float32)
    for dh in range(3):
        # even output rows: contiguous load + leading-dim reshape + index 0
        rows = padv[dh:dh + 2 * Ho].reshape(Ho, 2, Wo + 1, Cmid2)[:, 0]
        a = rows[:, 0:Wo, :].reshape(Ho * Wo, Cmid2)        # pad pairs j
        b = rows[:, 1:Wo + 1, :].reshape(Ho * Wo, Cmid2)    # pad pairs j+1
        acc = acc + jnp.dot(a, w2_ref[2 * dh],
                            preferred_element_type=jnp.float32)
        acc = acc + jnp.dot(b, w2_ref[2 * dh + 1],
                            preferred_element_type=jnp.float32)
    y2 = jnp.maximum(acc * s2 + b2, 0.0)               # (Ho*Wo, Cmid)

    # ---- conv3 (1x1) + bn3 ---------------------------------------------------
    y3 = jnp.dot(y2.astype(jnp.bfloat16), w3_ref[...],
                 preferred_element_type=jnp.float32)
    y3 = y3 * s3 + b3                                  # (Ho*Wo, Cout)

    # ---- shortcut: 1x1 stride-2 projection conv (bias, no BN -- per spec) ----
    # Even rows via leading-dim reshape; even columns selected inside the dot
    # (ws zero-padded to (2*Cin, Cout)).
    xs = x.reshape(Ho, 2, Wo, Cin2)[:, 0].reshape(Ho * Wo, Cin2)
    shortcut = jnp.dot(xs, ws_ref[...],
                       preferred_element_type=jnp.float32) + bs

    out = jnp.maximum(y3 + shortcut, 0.0)
    o_ref[0] = out.reshape(Ho, Wo, Cout).astype(o_ref.dtype)


# --------------------------------------------------------------------------- #
# Parameters (shapes match the PyTorch module)
# --------------------------------------------------------------------------- #
def init_params(key, in_channels, out_channels):
    cout = out_channels * EXPANSION
    keys = iter(jax.random.split(key, 32))

    def conv_p(o, i, k):
        w = 0.1 * jax.random.normal(next(keys), (o, i, k, k), jnp.float32)
        b = 0.05 * jax.random.normal(next(keys), (o,), jnp.float32)
        return w, b

    def bn_p(c):
        g = 1.0 + 0.1 * jax.random.normal(next(keys), (c,), jnp.float32)
        be = 0.1 * jax.random.normal(next(keys), (c,), jnp.float32)
        m = 0.1 * jax.random.normal(next(keys), (c,), jnp.float32)
        v = 1.0 + 0.1 * jnp.abs(jax.random.normal(next(keys), (c,), jnp.float32))
        return g, be, m, v

    p = {}
    p['w1'], p['b1'] = conv_p(out_channels, in_channels, 1)
    p['g1'], p['be1'], p['m1'], p['v1'] = bn_p(out_channels)
    p['w2'], p['b2'] = conv_p(out_channels, out_channels, 3)
    p['g2'], p['be2'], p['m2'], p['v2'] = bn_p(out_channels)
    p['w3'], p['b3'] = conv_p(cout, out_channels, 1)
    p['g3'], p['be3'], p['m3'], p['v3'] = bn_p(cout)
    p['ws'], p['bs'] = conv_p(cout, in_channels, 1)   # shortcut conv (always created)
    return p


# --------------------------------------------------------------------------- #
# Wrapper
# --------------------------------------------------------------------------- #
def _vmem_limit_bytes():
    # Generation-aware scoped-VMEM limit: generous on v5e/v6e (128 MiB
    # physical), conservative on v7x (64 MiB per TensorCore).
    try:
        cap = int(pltpu.get_tpu_info().vmem_capacity_bytes)
    except Exception:
        cap = 128 * 1024 * 1024
    if cap >= 128 * 1024 * 1024:
        return 96 * 1024 * 1024
    return 40 * 1024 * 1024


def bottleneck_forward(x_nhwc, p, downsample):
    """x_nhwc: (N, H, W, Cin) bf16 NHWC.  Returns (N, Ho, Wo, Cout) bf16 NHWC."""
    N, H, W, Cin = x_nhwc.shape
    Cmid = p['w1'].shape[0]
    Cout = Cmid * EXPANSION
    stride = 2 if downsample else 1
    assert H % stride == 0 and W % stride == 0
    Ho, Wo = H // stride, W // stride
    if not downsample:
        assert Cin == Cout, "identity shortcut needs in_channels == out_channels*4"

    x_nhwc = x_nhwc.astype(jnp.bfloat16)

    def fold(idx):
        g, be, m, v = p['g' + idx], p['be' + idx], p['m' + idx], p['v' + idx]
        cb = p['b' + idx]
        scale = g / jnp.sqrt(v + EPS)
        bias = be + (cb - m) * scale
        return scale.astype(jnp.float32), bias.astype(jnp.float32)

    def padc(v):
        return jnp.pad(v, (0, Cout - v.shape[0]))

    def w2t(dh, dw):                                   # (I, O) slice of the 3x3
        return p['w2'][:, :, dh, dw].T.astype(jnp.float32)

    w1_t = p['w1'][:, :, 0, 0].T.astype(jnp.float32)   # (Cin, Cmid)
    w3k = p['w3'][:, :, 0, 0].T.astype(jnp.bfloat16)   # (Cmid, Cout)
    s1, b1 = fold('1')
    s2, b2 = fold('2')
    s3, b3 = fold('3')
    zc = jnp.zeros((Cout,), jnp.float32)

    if not downsample:
        x_in = x_nhwc
        w1k = w1_t.astype(jnp.bfloat16)
        w2k = jnp.stack([w2t(dh, dw) for dh in range(3) for dw in range(3)],
                        axis=0).astype(jnp.bfloat16)           # (9, Cmid, Cmid)
        pb = jnp.stack([padc(s1), padc(b1), padc(s2), padc(b2),
                        s3, b3, zc, zc], axis=0)               # (8, Cout) f32
        inputs = [x_in, w1k, w2k, w3k, pb]
        kernel = _bottleneck_kernel
        scratch = [pltpu.VMEM((H + 2, W + 2, Cmid), jnp.bfloat16)]
    else:
        Cin2, Cmid2 = 2 * Cin, 2 * Cmid
        # pair-group the input along W (free, row-major-preserving reshape)
        x_in = x_nhwc.reshape(N, H, Wo, Cin2)
        # conv1: block-diagonal 1x1 weight keeps the pair grouping
        w1k = jnp.zeros((Cin2, Cmid2), jnp.float32)
        w1k = w1k.at[:Cin, :Cmid].set(w1_t).at[Cin:, Cmid:].set(w1_t)
        w1k = w1k.astype(jnp.bfloat16)
        # conv2: per kernel-row dh, two packed (2*Cmid, Cmid) operands
        mats = []
        for dh in range(3):
            mats.append(jnp.concatenate(
                [jnp.zeros((Cmid, Cmid), jnp.float32), w2t(dh, 0)], axis=0))
            mats.append(jnp.concatenate([w2t(dh, 1), w2t(dh, 2)], axis=0))
        w2k = jnp.stack(mats, axis=0).astype(jnp.bfloat16)     # (6, 2*Cmid, Cmid)
        # shortcut: even-column selection folded into K with zero padding
        ws = p['ws'][:, :, 0, 0].T.astype(jnp.float32)         # (Cin, Cout)
        wsk = jnp.concatenate([ws, jnp.zeros((Cin, Cout), jnp.float32)],
                              axis=0).astype(jnp.bfloat16)     # (2*Cin, Cout)
        s1p = jnp.concatenate([s1, s1])
        b1p = jnp.concatenate([b1, b1])
        pb = jnp.stack([padc(s1p), padc(b1p), padc(s2), padc(b2),
                        s3, b3, p['bs'].astype(jnp.float32), zc], axis=0)
        inputs = [x_in, w1k, w2k, w3k, pb, wsk]
        kernel = _bottleneck_ds_kernel
        scratch = [pltpu.VMEM((H + 2, Wo + 1, Cmid2), jnp.bfloat16)]

    def batch_spec(shape):
        nd = len(shape)
        return pl.BlockSpec((1,) + tuple(shape[1:]),
                            lambda n, nd=nd: (n,) + (0,) * (nd - 1))

    def full_spec(a):
        nd = a.ndim
        return pl.BlockSpec(a.shape, lambda n, nd=nd: (0,) * nd)

    in_specs = [batch_spec(x_in.shape)] + [full_spec(a) for a in inputs[1:]]

    out = pl.pallas_call(
        kernel,
        out_shape=jax.ShapeDtypeStruct((N, Ho, Wo, Cout), jnp.bfloat16),
        grid_spec=pltpu.PrefetchScalarGridSpec(
            num_scalar_prefetch=0,
            grid=(N,),
            in_specs=in_specs,
            out_specs=pl.BlockSpec((1, Ho, Wo, Cout), lambda n: (n, 0, 0, 0)),
            scratch_shapes=scratch,
        ),
        compiler_params=pltpu.CompilerParams(
            dimension_semantics=("parallel",),
            vmem_limit_bytes=_vmem_limit_bytes(),
        ),
    )(*inputs)
    return out


# --------------------------------------------------------------------------- #
# Pure-JAX NHWC reference (eval-mode BN), for verification
# --------------------------------------------------------------------------- #
def reference_forward_nhwc(x, p, downsample):
    stride = 2 if downsample else 1

    def conv(x, w, b, s, pad):
        y = jax.lax.conv_general_dilated(
            x, jnp.transpose(w, (2, 3, 1, 0)),          # OIHW -> HWIO
            (s, s), [(pad, pad), (pad, pad)],
            dimension_numbers=('NHWC', 'HWIO', 'NHWC'))
        return y + b[None, None, None, :]

    def bn(x, g, be, m, v):
        return (x - m) * (g / jnp.sqrt(v + EPS)) + be

    sc = x
    if downsample:
        sc = conv(x, p['ws'], p['bs'], stride, 0)
    y = jax.nn.relu(bn(conv(x, p['w1'], p['b1'], 1, 0),
                       p['g1'], p['be1'], p['m1'], p['v1']))
    y = jax.nn.relu(bn(conv(y, p['w2'], p['b2'], stride, 1),
                       p['g2'], p['be2'], p['m2'], p['v2']))
    y = bn(conv(y, p['w3'], p['b3'], 1, 0),
           p['g3'], p['be3'], p['m3'], p['v3'])
    return jax.nn.relu(y + sc)


if __name__ == "__main__":
    key = jax.random.PRNGKey(0)
    k_x1, k_x2, k_p1, k_p2 = jax.random.split(key, 4)

    # Case 1: downsample=False (identity shortcut) -> needs Cin == out_channels*4
    in1, mid1 = 16, 4
    x1 = jax.random.normal(k_x1, (2, 16, 16, in1), jnp.float32).astype(jnp.bfloat16)
    p1 = init_params(k_p1, in1, mid1)
    y1 = bottleneck_forward(x1, p1, downsample=False)
    r1 = reference_forward_nhwc(x1.astype(jnp.float32), p1, False)

    # Case 2: downsample=True (stride-2 projection shortcut)
    in2, mid2 = 8, 4
    x2 = jax.random.normal(k_x2, (2, 16, 16, in2), jnp.float32).astype(jnp.bfloat16)
    p2 = init_params(k_p2, in2, mid2)
    y2 = bottleneck_forward(x2, p2, downsample=True)
    r2 = reference_forward_nhwc(x2.astype(jnp.float32), p2, True)

    jax.block_until_ready((y1, y2))
    assert y1.shape == (2, 16, 16, 16), y1.shape
    assert y2.shape == (2, 8, 8, 16), y2.shape
    # bf16 weights/activations with f32 accumulation vs f32 reference.
    y1f = y1.astype(jnp.float32)
    y2f = y2.astype(jnp.float32)
    assert jnp.allclose(y1f, r1, atol=8e-2, rtol=2e-2), float(jnp.abs(y1f - r1).max())
    assert jnp.allclose(y2f, r2, atol=8e-2, rtol=2e-2), float(jnp.abs(y2f - r2).max())
    print("KERNEL_OK")
</pallas_src>

<mosaic_0001>
module attributes {stable_mosaic.version = 11 : i64} {
  func.func @_bottleneck_kernel(%arg0: i32, %arg1: memref<1x16x16x16xbf16, #tpu.memory_space<vmem>>, %arg2: memref<16x4xbf16, #tpu.memory_space<vmem>>, %arg3: memref<9x4x4xbf16, #tpu.memory_space<vmem>>, %arg4: memref<4x16xbf16, #tpu.memory_space<vmem>>, %arg5: memref<8x16xf32, #tpu.memory_space<vmem>>, %arg6: memref<1x16x16x16xbf16, #tpu.memory_space<vmem>>, %arg7: memref<18x18x4xbf16, #tpu.memory_space<vmem>>) attributes {dimension_semantics = [#tpu.dimension_semantics<parallel>], iteration_bounds = array<i64: 2>, scalar_prefetch = 0 : i64, scratch_operands = 1 : i64, tpu.core_type = #tpu.core_type<tc>, window_params = [{transform_indices = @transform_0, window_bounds = array<i64: 1, 16, 16, 16>}, {pipeline_mode = #tpu.pipeline_mode<synchronous>, transform_indices = @transform_1, window_bounds = array<i64: 16, 4>}, {pipeline_mode = #tpu.pipeline_mode<synchronous>, transform_indices = @transform_2, window_bounds = array<i64: 9, 4, 4>}, {pipeline_mode = #tpu.pipeline_mode<synchronous>, transform_indices = @transform_3, window_bounds = array<i64: 4, 16>}, {pipeline_mode = #tpu.pipeline_mode<synchronous>, transform_indices = @transform_4, window_bounds = array<i64: 8, 16>}, {transform_indices = @transform_5, window_bounds = array<i64: 1, 16, 16, 16>}]} {
    %c0 = arith.constant 0 : index
    %c0_0 = arith.constant 0 : index
    %0 = vector.load %arg5[%c0, %c0_0] : memref<8x16xf32, #tpu.memory_space<vmem>>, vector<1x4xf32>
    %c1 = arith.constant 1 : index
    %c0_1 = arith.constant 0 : index
    %1 = vector.load %arg5[%c1, %c0_1] : memref<8x16xf32, #tpu.memory_space<vmem>>, vector<1x4xf32>
    %c2 = arith.constant 2 : index
    %c0_2 = arith.constant 0 : index
    %2 = vector.load %arg5[%c2, %c0_2] : memref<8x16xf32, #tpu.memory_space<vmem>>, vector<1x4xf32>
    %c3 = arith.constant 3 : index
    %c0_3 = arith.constant 0 : index
    %3 = vector.load %arg5[%c3, %c0_3] : memref<8x16xf32, #tpu.memory_space<vmem>>, vector<1x4xf32>
    %c4 = arith.constant 4 : index
    %c0_4 = arith.constant 0 : index
    %4 = vector.load %arg5[%c4, %c0_4] : memref<8x16xf32, #tpu.memory_space<vmem>>, vector<1x16xf32>
    %c5 = arith.constant 5 : index
    %c0_5 = arith.constant 0 : index
    %5 = vector.load %arg5[%c5, %c0_5] : memref<8x16xf32, #tpu.memory_space<vmem>>, vector<1x16xf32>
    %c0_6 = arith.constant 0 : index
    %c0_7 = arith.constant 0 : index
    %c0_8 = arith.constant 0 : index
    %c0_9 = arith.constant 0 : index
    %6 = vector.load %arg1[%c0_6, %c0_7, %c0_8, %c0_9] : memref<1x16x16x16xbf16, #tpu.memory_space<vmem>>, vector<1x16x16x16xbf16>
    %7 = vector.shape_cast %6 : vector<1x16x16x16xbf16> to vector<16x16x16xbf16>
    %8 = vector.shape_cast %7 : vector<16x16x16xbf16> to vector<256x16xbf16>
    %c0_10 = arith.constant 0 : index
    %c0_11 = arith.constant 0 : index
    %9 = vector.load %arg2[%c0_10, %c0_11] : memref<16x4xbf16, #tpu.memory_space<vmem>>, vector<16x4xbf16>
    %cst = arith.constant dense<0.000000e+00> : vector<256x4xf32>
    %10 = tpu.matmul %8, %9, %cst {dimension_numbers = #tpu.dot_dimension_numbers<[1], [0], [0], [1], [0, 0, 1, 1], [], []>} : vector<256x16xbf16>, vector<16x4xbf16>, vector<256x4xf32> -> vector<256x4xf32>
    %11 = vector.broadcast %0 : vector<1x4xf32> to vector<256x4xf32>
    %12 = arith.mulf %10, %11 : vector<256x4xf32>
    %13 = vector.broadcast %1 : vector<1x4xf32> to vector<256x4xf32>
    %14 = arith.addf %12, %13 : vector<256x4xf32>
    %cst_12 = arith.constant 0.000000e+00 : f32
    %15 = vector.broadcast %cst_12 : f32 to vector<256x4xf32>
    %16 = arith.maximumf %14, %15 : vector<256x4xf32>
    %cst_13 = arith.constant 0.000000e+00 : bf16
    %17 = vector.broadcast %cst_13 : bf16 to vector<1x18x4xbf16>
    %cst_14 = arith.constant 0.000000e+00 : bf16
    %18 = vector.broadcast %cst_14 : bf16 to vector<18x1x4xbf16>
    %c0_15 = arith.constant 0 : index
    %c0_16 = arith.constant 0 : index
    %c0_17 = arith.constant 0 : index
    %19 = vector.load %arg7[%c0_15, %c0_16, %c0_17] : memref<18x18x4xbf16, #tpu.memory_space<vmem>>, vector<1x18x4xbf16>
    tpu.vector_store %arg7[%c0_15, %c0_16, %c0_17], %17 {strides = array<i32>} : memref<18x18x4xbf16, #tpu.memory_space<vmem>>, vector<1x18x4xbf16>,
    %c17 = arith.constant 17 : index
    %c0_18 = arith.constant 0 : index
    %c0_19 = arith.constant 0 : index
    %20 = vector.load %arg7[%c17, %c0_18, %c0_19] : memref<18x18x4xbf16, #tpu.memory_space<vmem>>, vector<1x18x4xbf16>
    tpu.vector_store %arg7[%c17, %c0_18, %c0_19], %17 {strides = array<i32>} : memref<18x18x4xbf16, #tpu.memory_space<vmem>>, vector<1x18x4xbf16>,
    %c0_20 = arith.constant 0 : index
    %c0_21 = arith.constant 0 : index
    %c0_22 = arith.constant 0 : index
    %21 = vector.load %arg7[%c0_20, %c0_21, %c0_22] : memref<18x18x4xbf16, #tpu.memory_space<vmem>>, vector<18x1x4xbf16>
    tpu.vector_store %arg7[%c0_20, %c0_21, %c0_22], %18 {strides = array<i32>} : memref<18x18x4xbf16, #tpu.memory_space<vmem>>, vector<18x1x4xbf16>,
    %c0_23 = arith.constant 0 : index
    %c17_24 = arith.constant 17 : index
    %c0_25 = arith.constant 0 : index
    %22 = vector.load %arg7[%c0_23, %c17_24, %c0_25] : memref<18x18x4xbf16, #tpu.memory_space<vmem>>, vector<18x1x4xbf16>
    tpu.vector_store %arg7[%c0_23, %c17_24, %c0_25], %18 {strides = array<i32>} : memref<18x18x4xbf16, #tpu.memory_space<vmem>>, vector<18x1x4xbf16>,
    %23 = vector.shape_cast %16 : vector<256x4xf32> to vector<16x16x4xf32>
    %24 = arith.truncf %23 : vector<16x16x4xf32> to vector<16x16x4xbf16>
    %c1_26 = arith.constant 1 : index
    %c1_27 = arith.constant 1 : index
    %c0_28 = arith.constant 0 : index
    %25 = vector.load %arg7[%c1_26, %c1_27, %c0_28] : memref<18x18x4xbf16, #tpu.memory_space<vmem>>, vector<16x16x4xbf16>
    tpu.vector_store %arg7[%c1_26, %c1_27, %c0_28], %24 {strides = array<i32>} : memref<18x18x4xbf16, #tpu.memory_space<vmem>>, vector<16x16x4xbf16>,
    %cst_29 = arith.constant 0.000000e+00 : f32
    %26 = vector.broadcast %cst_29 : f32 to vector<256x4xf32>
    %c0_30 = arith.constant 0 : index
    %c0_31 = arith.constant 0 : index
    %c0_32 = arith.constant 0 : index
    %27 = vector.load %arg7[%c0_30, %c0_31, %c0_32] : memref<18x18x4xbf16, #tpu.memory_space<vmem>>, vector<16x16x4xbf16>
    %28 = vector.shape_cast %27 : vector<16x16x4xbf16> to vector<256x4xbf16>
    %c0_33 = arith.constant 0 : index
    %c0_34 = arith.constant 0 : index
    %c0_35 = arith.constant 0 : index
    %29 = vector.load %arg3[%c0_33, %c0_34, %c0_35] : memref<9x4x4xbf16, #tpu.memory_space<vmem>>, vector<1x4x4xbf16>
    %30 = vector.shape_cast %29 : vector<1x4x4xbf16> to vector<4x4xbf16>
    %cst_36 = arith.constant dense<0.000000e+00> : vector<256x4xf32>
    %31 = tpu.matmul %28, %30, %cst_36 {dimension_numbers = #tpu.dot_dimension_numbers<[1], [0], [0], [1], [0, 0, 1, 1], [], []>} : vector<256x4xbf16>, vector<4x4xbf16>, vector<256x4xf32> -> vector<256x4xf32>
    %32 = arith.addf %26, %31 : vector<256x4xf32>
    %c0_37 = arith.constant 0 : index
    %c1_38 = arith.constant 1 : index
    %c0_39 = arith.constant 0 : index
    %33 = vector.load %arg7[%c0_37, %c1_38, %c0_39] : memref<18x18x4xbf16, #tpu.memory_space<vmem>>, vector<16x16x4xbf16>
    %34 = vector.shape_cast %33 : vector<16x16x4xbf16> to vector<256x4xbf16>
    %c1_40 = arith.constant 1 : index
    %c0_41 = arith.constant 0 : index
    %c0_42 = arith.constant 0 : index
    %35 = vector.load %arg3[%c1_40, %c0_41, %c0_42] : memref<9x4x4xbf16, #tpu.memory_space<vmem>>, vector<1x4x4xbf16>
    %36 = vector.shape_cast %35 : vector<1x4x4xbf16> to vector<4x4xbf16>
    %cst_43 = arith.constant dense<0.000000e+00> : vector<256x4xf32>
    %37 = tpu.matmul %34, %36, %cst_43 {dimension_numbers = #tpu.dot_dimension_numbers<[1], [0], [0], [1], [0, 0, 1, 1], [], []>} : vector<256x4xbf16>, vector<4x4xbf16>, vector<256x4xf32> -> vector<256x4xf32>
    %38 = arith.addf %32, %37 : vector<256x4xf32>
    %c0_44 = arith.constant 0 : index
    %c2_45 = arith.constant 2 : index
    %c0_46 = arith.constant 0 : index
    %39 = vector.load %arg7[%c0_44, %c2_45, %c0_46] : memref<18x18x4xbf16, #tpu.memory_space<vmem>>, vector<16x16x4xbf16>
    %40 = vector.shape_cast %39 : vector<16x16x4xbf16> to vector<256x4xbf16>
    %c2_47 = arith.constant 2 : index
    %c0_48 = arith.constant 0 : index
    %c0_49 = arith.constant 0 : index
    %41 = vector.load %arg3[%c2_47, %c0_48, %c0_49] : memref<9x4x4xbf16, #tpu.memory_space<vmem>>, vector<1x4x4xbf16>
    %42 = vector.shape_cast %41 : vector<1x4x4xbf16> to vector<4x4xbf16>
    %cst_50 = arith.constant dense<0.000000e+00> : vector<256x4xf32>
    %43 = tpu.matmul %40, %42, %cst_50 {dimension_numbers = #tpu.dot_dimension_numbers<[1], [0], [0], [1], [0, 0, 1, 1], [], []>} : vector<256x4xbf16>, vector<4x4xbf16>, vector<256x4xf32> -> vector<256x4xf32>
    %44 = arith.addf %38, %43 : vector<256x4xf32>
    %c1_51 = arith.constant 1 : index
    %c0_52 = arith.constant 0 : index
    %c0_53 = arith.constant 0 : index
    %45 = vector.load %arg7[%c1_51, %c0_52, %c0_53] : memref<18x18x4xbf16, #tpu.memory_space<vmem>>, vector<16x16x4xbf16>
    %46 = vector.shape_cast %45 : vector<16x16x4xbf16> to vector<256x4xbf16>
    %c3_54 = arith.constant 3 : index
    %c0_55 = arith.constant 0 : index
    %c0_56 = arith.constant 0 : index
    %47 = vector.load %arg3[%c3_54, %c0_55, %c0_56] : memref<9x4x4xbf16, #tpu.memory_space<vmem>>, vector<1x4x4xbf16>
    %48 = vector.shape_cast %47 : vector<1x4x4xbf16> to vector<4x4xbf16>
    %cst_57 = arith.constant dense<0.000000e+00> : vector<256x4xf32>
    %49 = tpu.matmul %46, %48, %cst_57 {dimension_numbers = #tpu.dot_dimension_numbers<[1], [0], [0], [1], [0, 0, 1, 1], [], []>} : vector<256x4xbf16>, vector<4x4xbf16>, vector<256x4xf32> -> vector<256x4xf32>
    %50 = arith.addf %44, %49 : vector<256x4xf32>
    %c1_58 = arith.constant 1 : index
    %c1_59 = arith.constant 1 : index
    %c0_60 = arith.constant 0 : index
    %51 = vector.load %arg7[%c1_58, %c1_59, %c0_60] : memref<18x18x4xbf16, #tpu.memory_space<vmem>>, vector<16x16x4xbf16>
    %52 = vector.shape_cast %51 : vector<16x16x4xbf16> to vector<256x4xbf16>
    %c4_61 = arith.constant 4 : index
    %c0_62 = arith.constant 0 : index
    %c0_63 = arith.constant 0 : index
    %53 = vector.load %arg3[%c4_61, %c0_62, %c0_63] : memref<9x4x4xbf16, #tpu.memory_space<vmem>>, vector<1x4x4xbf16>
    %54 = vector.shape_cast %53 : vector<1x4x4xbf16> to vector<4x4xbf16>
    %cst_64 = arith.constant dense<0.000000e+00> : vector<256x4xf32>
    %55 = tpu.matmul %52, %54, %cst_64 {dimension_numbers = #tpu.dot_dimension_numbers<[1], [0], [0], [1], [0, 0, 1, 1], [], []>} : vector<256x4xbf16>, vector<4x4xbf16>, vector<256x4xf32> -> vector<256x4xf32>
    %56 = arith.addf %50, %55 : vector<256x4xf32>
    %c1_65 = arith.constant 1 : index
    %c2_66 = arith.constant 2 : index
    %c0_67 = arith.constant 0 : index
    %57 = vector.load %arg7[%c1_65, %c2_66, %c0_67] : memref<18x18x4xbf16, #tpu.memory_space<vmem>>, vector<16x16x4xbf16>
    %58 = vector.shape_cast %57 : vector<16x16x4xbf16> to vector<256x4xbf16>
    %c5_68 = arith.constant 5 : index
    %c0_69 = arith.constant 0 : index
    %c0_70 = arith.constant 0 : index
    %59 = vector.load %arg3[%c5_68, %c0_69, %c0_70] : memref<9x4x4xbf16, #tpu.memory_space<vmem>>, vector<1x4x4xbf16>
    %60 = vector.shape_cast %59 : vector<1x4x4xbf16> to vector<4x4xbf16>
    %cst_71 = arith.constant dense<0.000000e+00> : vector<256x4xf32>
    %61 = tpu.matmul %58, %60, %cst_71 {dimension_numbers = #tpu.dot_dimension_numbers<[1], [0], [0], [1], [0, 0, 1, 1], [], []>} : vector<256x4xbf16>, vector<4x4xbf16>, vector<256x4xf32> -> vector<256x4xf32>
    %62 = arith.addf %56, %61 : vector<256x4xf32>
    %c2_72 = arith.constant 2 : index
    %c0_73 = arith.constant 0 : index
    %c0_74 = arith.constant 0 : index
    %63 = vector.load %arg7[%c2_72, %c0_73, %c0_74] : memref<18x18x4xbf16, #tpu.memory_space<vmem>>, vector<16x16x4xbf16>
    %64 = vector.shape_cast %63 : vector<16x16x4xbf16> to vector<256x4xbf16>
    %c6 = arith.constant 6 : index
    %c0_75 = arith.constant 0 : index
    %c0_76 = arith.constant 0 : index
    %65 = vector.load %arg3[%c6, %c0_75, %c0_76] : memref<9x4x4xbf16, #tpu.memory_space<vmem>>, vector<1x4x4xbf16>
    %66 = vector.shape_cast %65 : vector<1x4x4xbf16> to vector<4x4xbf16>
    %cst_77 = arith.constant dense<0.000000e+00> : vector<256x4xf32>
    %67 = tpu.matmul %64, %66, %cst_77 {dimension_numbers = #tpu.dot_dimension_numbers<[1], [0], [0], [1], [0, 0, 1, 1], [], []>} : vector<256x4xbf16>, vector<4x4xbf16>, vector<256x4xf32> -> vector<256x4xf32>
    %68 = arith.addf %62, %67 : vector<256x4xf32>
    %c2_78 = arith.constant 2 : index
    %c1_79 = arith.constant 1 : index
    %c0_80 = arith.constant 0 : index
    %69 = vector.load %arg7[%c2_78, %c1_79, %c0_80] : memref<18x18x4xbf16, #tpu.memory_space<vmem>>, vector<16x16x4xbf16>
    %70 = vector.shape_cast %69 : vector<16x16x4xbf16> to vector<256x4xbf16>
    %c7 = arith.constant 7 : index
    %c0_81 = arith.constant 0 : index
    %c0_82 = arith.constant 0 : index
    %71 = vector.load %arg3[%c7, %c0_81, %c0_82] : memref<9x4x4xbf16, #tpu.memory_space<vmem>>, vector<1x4x4xbf16>
    %72 = vector.shape_cast %71 : vector<1x4x4xbf16> to vector<4x4xbf16>
    %cst_83 = arith.constant dense<0.000000e+00> : vector<256x4xf32>
    %73 = tpu.matmul %70, %72, %cst_83 {dimension_numbers = #tpu.dot_dimension_numbers<[1], [0], [0], [1], [0, 0, 1, 1], [], []>} : vector<256x4xbf16>, vector<4x4xbf16>, vector<256x4xf32> -> vector<256x4xf32>
    %74 = arith.addf %68, %73 : vector<256x4xf32>
    %c2_84 = arith.constant 2 : index
    %c2_85 = arith.constant 2 : index
    %c0_86 = arith.constant 0 : index
    %75 = vector.load %arg7[%c2_84, %c2_85, %c0_86] : memref<18x18x4xbf16, #tpu.memory_space<vmem>>, vector<16x16x4xbf16>
    %76 = vector.shape_cast %75 : vector<16x16x4xbf16> to vector<256x4xbf16>
    %c8 = arith.constant 8 : index
    %c0_87 = arith.constant 0 : index
    %c0_88 = arith.constant 0 : index
    %77 = vector.load %arg3[%c8, %c0_87, %c0_88] : memref<9x4x4xbf16, #tpu.memory_space<vmem>>, vector<1x4x4xbf16>
    %78 = vector.shape_cast %77 : vector<1x4x4xbf16> to vector<4x4xbf16>
    %cst_89 = arith.constant dense<0.000000e+00> : vector<256x4xf32>
    %79 = tpu.matmul %76, %78, %cst_89 {dimension_numbers = #tpu.dot_dimension_numbers<[1], [0], [0], [1], [0, 0, 1, 1], [], []>} : vector<256x4xbf16>, vector<4x4xbf16>, vector<256x4xf32> -> vector<256x4xf32>
    %80 = arith.addf %74, %79 : vector<256x4xf32>
    %81 = vector.broadcast %2 : vector<1x4xf32> to vector<256x4xf32>
    %82 = arith.mulf %80, %81 : vector<256x4xf32>
    %83 = vector.broadcast %3 : vector<1x4xf32> to vector<256x4xf32>
    %84 = arith.addf %82, %83 : vector<256x4xf32>
    %cst_90 = arith.constant 0.000000e+00 : f32
    %85 = vector.broadcast %cst_90 : f32 to vector<256x4xf32>
    %86 = arith.maximumf %84, %85 : vector<256x4xf32>
    %87 = arith.truncf %86 : vector<256x4xf32> to vector<256x4xbf16>
    %c0_91 = arith.constant 0 : index
    %c0_92 = arith.constant 0 : index
    %88 = vector.load %arg4[%c0_91, %c0_92] : memref<4x16xbf16, #tpu.memory_space<vmem>>, vector<4x16xbf16>
    %cst_93 = arith.constant dense<0.000000e+00> : vector<256x16xf32>
    %89 = tpu.matmul %87, %88, %cst_93 {dimension_numbers = #tpu.dot_dimension_numbers<[1], [0], [0], [1], [0, 0, 1, 1], [], []>} : vector<256x4xbf16>, vector<4x16xbf16>, vector<256x16xf32> -> vector<256x16xf32>
    %90 = vector.broadcast %4 : vector<1x16xf32> to vector<256x16xf32>
    %91 = arith.mulf %89, %90 : vector<256x16xf32>
    %92 = vector.broadcast %5 : vector<1x16xf32> to vector<256x16xf32>
    %93 = arith.addf %91, %92 : vector<256x16xf32>
    %94 = arith.extf %8 : vector<256x16xbf16> to vector<256x16xf32>
    %95 = arith.addf %93, %94 : vector<256x16xf32>
    %cst_94 = arith.constant 0.000000e+00 : f32
    %96 = vector.broadcast %cst_94 : f32 to vector<256x16xf32>
    %97 = arith.maximumf %95, %96 : vector<256x16xf32>
    %98 = vector.shape_cast %97 : vector<256x16xf32> to vector<16x16x16xf32>
    %99 = arith.truncf %98 : vector<16x16x16xf32> to vector<16x16x16xbf16>
    %c0_95 = arith.constant 0 : index
    %c0_96 = arith.constant 0 : index
    %c0_97 = arith.constant 0 : index
    %c0_98 = arith.constant 0 : index
    %100 = vector.load %arg6[%c0_95, %c0_96, %c0_97, %c0_98] : memref<1x16x16x16xbf16, #tpu.memory_space<vmem>>, vector<1x16x16x16xbf16>
    %101 = vector.shape_cast %100 : vector<1x16x16x16xbf16> to vector<16x16x16xbf16>
    %102 = vector.shape_cast %99 : vector<16x16x16xbf16> to vector<1x16x16x16xbf16>
    tpu.vector_store %arg6[%c0_95, %c0_96, %c0_97, %c0_98], %102 {strides = array<i32>} : memref<1x16x16x16xbf16, #tpu.memory_space<vmem>>, vector<1x16x16x16xbf16>,
    return
  }
  func.func @transform_0(%arg0: i32) -> (i32, i32, i32, i32) {
    %c0_i32 = arith.constant 0 : i32
    %c0_i32_0 = arith.constant 0 : i32
    %c0_i32_1 = arith.constant 0 : i32
    %c0_i32_2 = arith.constant 0 : i32
    return %arg0, %c0_i32, %c0_i32_0, %c0_i32_1 : i32, i32, i32, i32
  }
  func.func @transform_1(%arg0: i32) -> (i32, i32) {
    %c0_i32 = arith.constant 0 : i32
    %c0_i32_0 = arith.constant 0 : i32
    %c0_i32_1 = arith.constant 0 : i32
    return %c0_i32, %c0_i32_0 : i32, i32
  }
  func.func @transform_2(%arg0: i32) -> (i32, i32, i32) {
    %c0_i32 = arith.constant 0 : i32
    %c0_i32_0 = arith.constant 0 : i32
    %c0_i32_1 = arith.constant 0 : i32
    %c0_i32_2 = arith.constant 0 : i32
    return %c0_i32, %c0_i32_0, %c0_i32_1 : i32, i32, i32
  }
  func.func @transform_3(%arg0: i32) -> (i32, i32) {
    %c0_i32 = arith.constant 0 : i32
    %c0_i32_0 = arith.constant 0 : i32
    %c0_i32_1 = arith.constant 0 : i32
    return %c0_i32, %c0_i32_0 : i32, i32
  }
  func.func @transform_4(%arg0: i32) -> (i32, i32) {
    %c0_i32 = arith.constant 0 : i32
    %c0_i32_0 = arith.constant 0 : i32
    %c0_i32_1 = arith.constant 0 : i32
    return %c0_i32, %c0_i32_0 : i32, i32
  }
  func.func @transform_5(%arg0: i32) -> (i32, i32, i32, i32) {
    %c0_i32 = arith.constant 0 : i32
    %c0_i32_0 = arith.constant 0 : i32
    %c0_i32_1 = arith.constant 0 : i32
    %c0_i32_2 = arith.constant 0 : i32
    return %arg0, %c0_i32, %c0_i32_0, %c0_i32_1 : i32, i32, i32, i32
  }
}

</mosaic_0001>

<llo_original>
// kernel: tpu_custom_call.1
$region0: #{tpu_custom_call.1}
  #allocation0 [shape = 'u32[]', space=smem, size = 0x4, offset = 0x4, fixed_abs, tag = 'smem constant byte address 0x4 - core index']
  #allocation1 [shape = 'u32[144,128]{1,0:T(1,128)}', space=vmem, size = 0x12000, scoped, tag = 'internal scratch']
  #allocation2 [shape = 'bf16[18,18,4]{2,1,0:T(8,128)(2,1)}', space=vmem, size = 0x1b000, scoped, tag = 'scratch operand']
  %s0 = inlined_call_operand.hbm [shape: bf16[2,16,16,16], index: 0, kind: input, shape index: {}]
  %s1 = inlined_call_operand.hbm [shape: bf16[16,4], index: 1, kind: input, shape index: {}]
  %s2 = inlined_call_operand.hbm [shape: bf16[9,4,4], index: 2, kind: input, shape index: {}]
  %s3 = inlined_call_operand.hbm [shape: bf16[4,16], index: 3, kind: input, shape index: {}]
  %s4 = inlined_call_operand.hbm [shape: f32[8,16], index: 4, kind: input, shape index: {}]
  %s5 = inlined_call_operand.hbm [shape: bf16[2,16,16,16], index: 5, kind: output, shape index: {}]
  %s6 = sld [smem:[#allocation0]]
  $region73: #{tpu_custom_call.1} parent=0
    _
  %s8 = ssub.s32 1, %s6
  %s9 = scalar_select 0, %s8, %s6
  $region1: #{tpu_custom_call.1} parent=0
    #allocation3 [shape = 'u8[131072]{0}', space=vmem, size = 0x20000, scoped, tag = 'input window, operand 0']
    #allocation4 [shape = 's32[2]{0}', space=sflag, size = 0x8, scoped, tag = 'scoped memory for tpu_custom_call.1']
    #allocation5 [shape = 's32[2]{0}', space=sflag, size = 0x8, scoped, tag = 'scoped memory for tpu_custom_call.1']
    #allocation6 [shape = 'u8[4096]{0}', space=vmem, size = 0x1000, scoped, tag = 'input window, operand 1, single buffered']
    #allocation7 [shape = 's32[1]{0}', space=sflag, size = 0x4, scoped, tag = 'scoped memory for tpu_custom_call.1']
    #allocation8 [shape = 'u8[9216]{0}', space=vmem, size = 0x2400, scoped, tag = 'input window, operand 2, single buffered']
    #allocation9 [shape = 'u8[1024]{0}', space=vmem, size = 0x400, scoped, tag = 'input window, operand 3, single buffered']
    #allocation10 [shape = 's32[1]{0}', space=sflag, size = 0x4, scoped, tag = 'scoped memory for tpu_custom_call.1']
    #allocation11 [shape = 'u8[4096]{0}', space=vmem, size = 0x1000, scoped, tag = 'input window, operand 4, single buffered']
    #allocation12 [shape = 'u8[131072]{0}', space=vmem, size = 0x20000, scoped, tag = 'output window, operand 0']
    %10 = vsyncpa [#allocation4], 0
    %s11 = scalar_lea.sflag [#allocation4], 1
    %12 = vsyncpa %s11, 0
    %13 = vsyncpa [#allocation7], 0
    %14 = vsyncpa [#allocation10], 0
    %15 = vsyncpa [#allocation5], 0
    %s16 = scalar_lea.sflag [#allocation5], 1
    %17 = vsyncpa %s16, 0
    loop: start=0, step=1, limit=4
    $region2: #{tpu_custom_call.1} parent=1 // loop_pre_header
      _
    $region3: #{tpu_custom_call.1} parent=1 // loop_header
      %s19 = sphi 0, %s23
      %p20 = scmp.ge.s32.totalorder %s19, 4
      %s29 = sphi 0, %s31
      %s32 = sphi 0, %s29
      %s33 = sphi 0, %s32
      %s49 = sphi 0, %s33
      %s53 = sphi 0, %s53
      %s55 = sphi 0, %s53
      %s56 = sphi 0, %s55
      %s70 = sphi 0, %s56
      %s74 = sphi 0, %s74
      %s76 = sphi 0, %s74
      %s77 = sphi 0, %s76
      %s91 = sphi 0, %s77
      %s95 = sphi 0, %s95
      %s97 = sphi 0, %s95
      %s98 = sphi 0, %s97
      %s112 = sphi 0, %s98
      %s116 = sphi 0, %s116
      %s118 = sphi 0, %s116
      %s119 = sphi 0, %s118
      %s133 = sphi 0, %s119
      %s139 = sphi 0, %s141
      %s142 = sphi 0, %s139
      %s143 = sphi 0, %s142
      %s159 = sphi 0, %s143
    $region4: #{tpu_custom_call.1} parent=1 // loop_header_branch
      %22 = sbr.rel (%p20) target = $region8
    $region5: #{tpu_custom_call.1} parent=1 // loop_body
      %s24 = ssub.s32 %s19, 1
      %s25 = ssub.s32 %s19, 2
      %s26 = sadd.s32 %s19, 1
      %s27 = ssub.s32 %s19, %s26
      %p28 = scmp.eq.s32.totalorder %s27, 0
      %s30 = sadd.s32 %s29, 1
      %s31 = scalar_select %p28, %s29, %s30
      %p34 = pneg %p28
      %p35 = scmp.eq.s32.totalorder %s19, 1
      %p36 = por %p34, %p35
      %p37 = scmp.ne.s32.totalorder %s29, %s32
      %p38 = scmp.eq.s32.totalorder %s19, 0
      %p39 = por %p37, %p38
      %p40 = scmp.ne.s32.totalorder %s29, %s32
      %p41 = scmp.eq.s32.totalorder %s24, 1
      %p42 = por %p40, %p41
      %p43 = scmp.ne.s32.totalorder %s32, %s33
      %p44 = scmp.eq.s32.totalorder %s24, 0
      %p45 = por %p43, %p44
      %p46 = scmp.ne.s32.totalorder %s32, %s33
      %p47 = scmp.eq.s32.totalorder %s25, 1
      %p48 = por %p46, %p47
      %p50 = scmp.ne.s32.totalorder %s33, %s49
      %p51 = scmp.eq.s32.totalorder %s25, 0
      %p52 = por %p50, %p51
      %s54 = sadd.s32 %s53, 1
      %p57 = scmp.eq.s32.totalorder %s19, 1
      %p58 = scmp.ne.s32.totalorder %s53, %s55
      %p59 = scmp.eq.s32.totalorder %s19, 0
      %p60 = por %p58, %p59
      %p61 = scmp.ne.s32.totalorder %s53, %s55
      %p62 = scmp.eq.s32.totalorder %s24, 1
      %p63 = por %p61, %p62
      %p64 = scmp.ne.s32.totalorder %s55, %s56
      %p65 = scmp.eq.s32.totalorder %s24, 0
      %p66 = por %p64, %p65
      %p67 = scmp.ne.s32.totalorder %s55, %s56
      %p68 = scmp.eq.s32.totalorder %s25, 1
      %p69 = por %p67, %p68
      %p71 = scmp.ne.s32.totalorder %s56, %s70
      %p72 = scmp.eq.s32.totalorder %s25, 0
      %p73 = por %p71, %p72
      %s75 = sadd.s32 %s74, 1
      %p78 = scmp.eq.s32.totalorder %s19, 1
      %p79 = scmp.ne.s32.totalorder %s74, %s76
      %p80 = scmp.eq.s32.totalorder %s19, 0
      %p81 = por %p79, %p80
      %p82 = scmp.ne.s32.totalorder %s74, %s76
      %p83 = scmp.eq.s32.totalorder %s24, 1
      %p84 = por %p82, %p83
      %p85 = scmp.ne.s32.totalorder %s76, %s77
      %p86 = scmp.eq.s32.totalorder %s24, 0
      %p87 = por %p85, %p86
      %p88 = scmp.ne.s32.totalorder %s76, %s77
      %p89 = scmp.eq.s32.totalorder %s25, 1
      %p90 = por %p88, %p89
      %p92 = scmp.ne.s32.totalorder %s77, %s91
      %p93 = scmp.eq.s32.totalorder %s25, 0
      %p94 = por %p92, %p93
      %s96 = sadd.s32 %s95, 1
      %p99 = scmp.eq.s32.totalorder %s19, 1
      %p100 = scmp.ne.s32.totalorder %s95, %s97
      %p101 = scmp.eq.s32.totalorder %s19, 0
      %p102 = por %p100, %p101
      %p103 = scmp.ne.s32.totalorder %s95, %s97
      %p104 = scmp.eq.s32.totalorder %s24, 1
      %p105 = por %p103, %p104
      %p106 = scmp.ne.s32.totalorder %s97, %s98
      %p107 = scmp.eq.s32.totalorder %s24, 0
      %p108 = por %p106, %p107
      %p109 = scmp.ne.s32.totalorder %s97, %s98
      %p110 = scmp.eq.s32.totalorder %s25, 1
      %p111 = por %p109, %p110
      %p113 = scmp.ne.s32.totalorder %s98, %s112
      %p114 = scmp.eq.s32.totalorder %s25, 0
      %p115 = por %p113, %p114
      %s117 = sadd.s32 %s116, 1
      %p120 = scmp.eq.s32.totalorder %s19, 1
      %p121 = scmp.ne.s32.totalorder %s116, %s118
      %p122 = scmp.eq.s32.totalorder %s19, 0
      %p123 = por %p121, %p122
      %p124 = scmp.ne.s32.totalorder %s116, %s118
      %p125 = scmp.eq.s32.totalorder %s24, 1
      %p126 = por %p124, %p125
      %p127 = scmp.ne.s32.totalorder %s118, %s119
      %p128 = scmp.eq.s32.totalorder %s24, 0
      %p129 = por %p127, %p128
      %p130 = scmp.ne.s32.totalorder %s118, %s119
      %p131 = scmp.eq.s32.totalorder %s25, 1
      %p132 = por %p130, %p131
      %p134 = scmp.ne.s32.totalorder %s119, %s133
      %p135 = scmp.eq.s32.totalorder %s25, 0
      %p136 = por %p134, %p135
      %s137 = ssub.s32 %s19, %s26
      %p138 = scmp.eq.s32.totalorder %s137, 0
      %s140 = sadd.s32 %s139, 1
      %s141 = scalar_select %p138, %s139, %s140
      %p144 = pneg %p138
      %p145 = scmp.eq.s32.totalorder %s19, 1
      %p146 = por %p144, %p145
      %p147 = scmp.ne.s32.totalorder %s139, %s142
      %p148 = scmp.eq.s32.totalorder %s19, 0
      %p149 = por %p147, %p148
      %p150 = scmp.ne.s32.totalorder %s139, %s142
      %p151 = scmp.eq.s32.totalorder %s24, 1
      %p152 = por %p150, %p151
      %p153 = scmp.ne.s32.totalorder %s142, %s143
      %p154 = scmp.eq.s32.totalorder %s24, 0
      %p155 = por %p153, %p154
      %p156 = scmp.ne.s32.totalorder %s142, %s143
      %p157 = scmp.eq.s32.totalorder %s25, 1
      %p158 = por %p156, %p157
      %p160 = scmp.ne.s32.totalorder %s143, %s159
      %p161 = scmp.eq.s32.totalorder %s25, 0
      %p162 = por %p160, %p161
      %p163 = scmp.le.s32.totalorder 1, %s19
      %p164 = scmp.lt.s32.totalorder %s19, 3
      %p165 = pnand %p163, %p164
      %p166 = pneg %p165
      // Predicated region
      $region9: #{tpu_custom_call.1} parent=5 // pred_check
        _
      $region10: #{tpu_custom_call.1} parent=5 // pred_check_branch
        %168 = sbr.rel (%p165) target = $region12
      $region11: #{tpu_custom_call.1} parent=5 // pred_region
        %s169 = ssub.s32 %s19, 1
        // Predicated region
        $region13: #{tpu_custom_call.1} parent=11 // pred_check
          %p170 = pneg %p66
        $region14: #{tpu_custom_call.1} parent=11 // pred_check_branch
          %172 = sbr.rel (%p170) target = $region16
        $region15: #{tpu_custom_call.1} parent=11 // pred_region
          %s174 = ssub.s32 128, 128
          %175 = vsyncadd [#allocation7], %s174
          %s176 = sshll.u32 [#allocation6], 4
          %s177 = int_to_ptr.vmem [resolvable:$true] %s176
          %182 = dma.hbm_to_vmem [thread:$0]  %s1, 128, %s177, [#allocation7], 64, 64, 4
        $region16: #{tpu_custom_call.1} parent=11 // pred_fallthru
          _
        // Predicated region
        $region17: #{tpu_custom_call.1} parent=11 // pred_check
          %p183 = pneg %p87
        $region18: #{tpu_custom_call.1} parent=11 // pred_check_branch
          %185 = sbr.rel (%p183) target = $region20
        $region19: #{tpu_custom_call.1} parent=11 // pred_region
          %s187 = ssub.s32 288, 288
          %188 = vsyncadd [#allocation7], %s187
          %s189 = sshll.u32 [#allocation8], 4
          %s190 = int_to_ptr.vmem [resolvable:$true] %s189
          %195 = dma.hbm_to_vmem [thread:$0]  %s2, 288, %s190, [#allocation7], 32, 32, 2
        $region20: #{tpu_custom_call.1} parent=11 // pred_fallthru
          _
        // Predicated region
        $region21: #{tpu_custom_call.1} parent=11 // pred_check
          %p196 = pneg %p108
        $region22: #{tpu_custom_call.1} parent=11 // pred_check_branch
          %198 = sbr.rel (%p196) target = $region24
        $region23: #{tpu_custom_call.1} parent=11 // pred_region
          %s200 = ssub.s32 32, 32
          %201 = vsyncadd [#allocation10], %s200
          %s203 = sshll.u32 [#allocation9], 4
          %s204 = int_to_ptr.vmem [resolvable:$true] %s203
          %206 = dma.hbm_to_vmem [thread:$0]  %s3, 32, %s204, [#allocation10]
        $region24: #{tpu_custom_call.1} parent=11 // pred_fallthru
          _
        // Predicated region
        $region25: #{tpu_custom_call.1} parent=11 // pred_check
          %p207 = pneg %p129
        $region26: #{tpu_custom_call.1} parent=11 // pred_check_branch
          %209 = sbr.rel (%p207) target = $region28
        $region27: #{tpu_custom_call.1} parent=11 // pred_region
          %s211 = ssub.s32 128, 128
          %212 = vsyncadd [#allocation10], %s211
          %s214 = sshll.u32 [#allocation11], 4
          %s215 = int_to_ptr.vmem [resolvable:$true] %s214
          %217 = dma.hbm_to_vmem [thread:$0]  %s4, 128, %s215, [#allocation10]
        $region28: #{tpu_custom_call.1} parent=11 // pred_fallthru
          _
      $region12: #{tpu_custom_call.1} parent=5 // pred_fallthru
        _
      %p218 = scmp.lt.s32.totalorder %s19, 2
      // Predicated region
      $region29: #{tpu_custom_call.1} parent=5 // pred_check
        %p219 = pneg %p218
      $region30: #{tpu_custom_call.1} parent=5 // pred_check_branch
        %221 = sbr.rel (%p219) target = $region32
      $region31: #{tpu_custom_call.1} parent=5 // pred_region
        // Predicated region
        $region33: #{tpu_custom_call.1} parent=31 // pred_check
          %p222 = pneg %p39
        $region34: #{tpu_custom_call.1} parent=31 // pred_check_branch
          %224 = sbr.rel (%p222) target = $region36
        $region35: #{tpu_custom_call.1} parent=31 // pred_region
          %s225 = sand.u32 %s29, 1
          %s226 = scalar_lea.sflag [#allocation4], %s225
          %s227 = sand.u32 %s29, 1
          %s228 = smul.addr %s227, 128
          %s229 = scalar_lea.vmem [#allocation3], %s228
          %s231 = ssub.s32 2048, 2048
          %232 = vsyncadd %s226, %s231
          %s233 = smul.addr %s19, 32
          %s234 = smul.addr %s233, 64
          %s235 = scalar_lea.hbm %s0, %s234
          %s236 = sshll.u32 %s229, 4
          %s237 = int_to_ptr.vmem [resolvable:$true] %s236
          %242 = dma.hbm_to_vmem [thread:$0]  %s235, 2048, %s237, %s226, 64, 64, 4
        $region36: #{tpu_custom_call.1} parent=31 // pred_fallthru
          _
      $region32: #{tpu_custom_call.1} parent=5 // pred_fallthru
        _
      %p243 = scmp.le.s32.totalorder 1, %s19
      %p244 = scmp.lt.s32.totalorder %s19, 3
      %p245 = pnand %p243, %p244
      %p246 = pneg %p245
      // Predicated region
      $region37: #{tpu_custom_call.1} parent=5 // pred_check
        _
      $region38: #{tpu_custom_call.1} parent=5 // pred_check_branch
        %248 = sbr.rel (%p245) target = $region40
      $region39: #{tpu_custom_call.1} parent=5 // pred_region
        %s249 = ssub.s32 %s19, 1
        %s250 = sand.u32 %s32, 1
        %s251 = scalar_lea.sflag [#allocation4], %s250
        %s252 = sand.u32 %s32, 1
        %s253 = smul.addr %s252, 128
        %s254 = scalar_lea.vmem [#allocation3], %s253
        // Predicated region
        $region41: #{tpu_custom_call.1} parent=39 // pred_check
          %p255 = pneg %p45
        $region42: #{tpu_custom_call.1} parent=39 // pred_check_branch
          %257 = sbr.rel (%p255) target = $region44
        $region43: #{tpu_custom_call.1} parent=39 // pred_region
          %258 = dma.done %s251, 2048
        $region44: #{tpu_custom_call.1} parent=39 // pred_fallthru
          _
        // Predicated region
        $region45: #{tpu_custom_call.1} parent=39 // pred_check
          %p259 = pneg %p66
        $region46: #{tpu_custom_call.1} parent=39 // pred_check_branch
          %261 = sbr.rel (%p259) target = $region48
        $region47: #{tpu_custom_call.1} parent=39 // pred_region
          %262 = dma.done [#allocation7], 128
        $region48: #{tpu_custom_call.1} parent=39 // pred_fallthru
          _
        // Predicated region
        $region49: #{tpu_custom_call.1} parent=39 // pred_check
          %p263 = pneg %p87
        $region50: #{tpu_custom_call.1} parent=39 // pred_check_branch
          %265 = sbr.rel (%p263) target = $region52
        $region51: #{tpu_custom_call.1} parent=39 // pred_region
          %266 = dma.done [#allocation7], 288
        $region52: #{tpu_custom_call.1} parent=39 // pred_fallthru
          _
        // Predicated region
        $region53: #{tpu_custom_call.1} parent=39 // pred_check
          %p267 = pneg %p108
        $region54: #{tpu_custom_call.1} parent=39 // pred_check_branch
          %269 = sbr.rel (%p267) target = $region56
        $region55: #{tpu_custom_call.1} parent=39 // pred_region
          %270 = dma.done [#allocation10], 32
        $region56: #{tpu_custom_call.1} parent=39 // pred_fallthru
          _
        // Predicated region
        $region57: #{tpu_custom_call.1} parent=39 // pred_check
          %p271 = pneg %p129
        $region58: #{tpu_custom_call.1} parent=39 // pred_check_branch
          %273 = sbr.rel (%p271) target = $region60
        $region59: #{tpu_custom_call.1} parent=39 // pred_region
          %274 = dma.done [#allocation10], 128
        $region60: #{tpu_custom_call.1} parent=39 // pred_fallthru
          _
        %s275 = sand.u32 %s32, 1
        %s276 = scalar_lea.sflag [#allocation4], %s275
        %s277 = sand.u32 %s32, 1
        %s278 = smul.addr %s277, 128
        %s279 = scalar_lea.vmem [#allocation3], %s278
        %p280 = pneg %p45
        %p281 = pneg %p42
        %p282 = pneg %p66
        %p283 = pneg %p63
        %p284 = pneg %p87
        %p285 = pneg %p84
        %p286 = pneg %p108
        %p287 = pneg %p105
        %p288 = pneg %p129
        %p289 = pneg %p126
        %p290 = pneg %p155
        %p291 = pneg %p152
        %s292 = sand.u32 %s142, 1
        %s293 = scalar_lea.sflag [#allocation5], %s292
        %s294 = sand.u32 %s142, 1
        %s295 = smul.addr %s294, 128
        %s296 = scalar_lea.vmem [#allocation12], %s295
        %v298 = vld [vmem:[#allocation11] sm:$0x1]
        %v299 = vld [vmem:[#allocation11 + $0x1] sm:$0x1]
        %v300 = vld [vmem:[#allocation11 + $0x2] sm:$0x1]
        %v301 = vld [vmem:[#allocation11 + $0x3] sm:$0x1]
        %v302 = vld [vmem:[#allocation11 + $0x4] sm:$0x1]
        %v303 = vld [vmem:[#allocation11 + $0x5] sm:$0x1]
        %v304 = vld [vmem:[%s254] sm:$0xf]
        %v305 = vld [vmem:[%s254 + $0x4] sm:$0xf]
        %v306 = vld [vmem:[%s254 + $0x8] sm:$0xf]
        %v307 = vld [vmem:[%s254 + $0xc] sm:$0xf]
        %v308 = vld [vmem:[%s254 + $0x10] sm:$0xf]
        %v309 = vld [vmem:[%s254 + $0x14] sm:$0xf]
        %v310 = vld [vmem:[%s254 + $0x18] sm:$0xf]
        %v311 = vld [vmem:[%s254 + $0x1c] sm:$0xf]
        %v312 = vld [vmem:[%s254 + $0x20] sm:$0xf]
        %v313 = vld [vmem:[%s254 + $0x24] sm:$0xf]
        %v314 = vld [vmem:[%s254 + $0x28] sm:$0xf]
        %v315 = vld [vmem:[%s254 + $0x2c] sm:$0xf]
        %v316 = vld [vmem:[%s254 + $0x30] sm:$0xf]
        %v317 = vld [vmem:[%s254 + $0x34] sm:$0xf]
        %v318 = vld [vmem:[%s254 + $0x38] sm:$0xf]
        %v319 = vld [vmem:[%s254 + $0x3c] sm:$0xf]
        %v320 = vld [vmem:[%s254 + $0x40] sm:$0xf]
        %v321 = vld [vmem:[%s254 + $0x44] sm:$0xf]
        %v322 = vld [vmem:[%s254 + $0x48] sm:$0xf]
        %v323 = vld [vmem:[%s254 + $0x4c] sm:$0xf]
        %v324 = vld [vmem:[%s254 + $0x50] sm:$0xf]
        %v325 = vld [vmem:[%s254 + $0x54] sm:$0xf]
        %v326 = vld [vmem:[%s254 + $0x58] sm:$0xf]
        %v327 = vld [vmem:[%s254 + $0x5c] sm:$0xf]
        %v328 = vld [vmem:[%s254 + $0x60] sm:$0xf]
        %v329 = vld [vmem:[%s254 + $0x64] sm:$0xf]
        %v330 = vld [vmem:[%s254 + $0x68] sm:$0xf]
        %v331 = vld [vmem:[%s254 + $0x6c] sm:$0xf]
        %v332 = vld [vmem:[%s254 + $0x70] sm:$0xf]
        %v333 = vld [vmem:[%s254 + $0x74] sm:$0xf]
        %v334 = vld [vmem:[%s254 + $0x78] sm:$0xf]
        %v335 = vld [vmem:[%s254 + $0x7c] sm:$0xf]
        %v336 = vld [vmem:[#allocation6] sm:$0xf]
        %v337 = vld [vmem:[#allocation6 + $0x4] sm:$0xf]
        %v370 = vunpack.c.l.b16 %v304
        %v371 = vunpack.c.l.b16 %v305
        %v372 = vunpack.c.l.b16 %v306
        %v373 = vunpack.c.l.b16 %v307
        %v374 = vunpack.c.l.b16 %v308
        %v375 = vunpack.c.l.b16 %v309
        %v376 = vunpack.c.l.b16 %v310
        %v377 = vunpack.c.l.b16 %v311
        %v378 = vunpack.c.l.b16 %v312
        %v379 = vunpack.c.l.b16 %v313
        %v380 = vunpack.c.l.b16 %v314
        %v381 = vunpack.c.l.b16 %v315
        %v382 = vunpack.c.l.b16 %v316
        %v383 = vunpack.c.l.b16 %v317
        %v384 = vunpack.c.l.b16 %v318
        %v385 = vunpack.c.l.b16 %v319
        %v386 = vunpack.c.l.b16 %v320
        %v387 = vunpack.c.l.b16 %v321
        %v388 = vunpack.c.l.b16 %v322
        %v389 = vunpack.c.l.b16 %v323
        %v390 = vunpack.c.l.b16 %v324
        %v391 = vunpack.c.l.b16 %v325
        %v392 = vunpack.c.l.b16 %v326
        %v393 = vunpack.c.l.b16 %v327
        %v394 = vunpack.c.l.b16 %v328
        %v395 = vunpack.c.l.b16 %v329
        %v396 = vunpack.c.l.b16 %v330
        %v397 = vunpack.c.l.b16 %v331
        %v398 = vunpack.c.l.b16 %v332
        %v399 = vunpack.c.l.b16 %v333
        %v400 = vunpack.c.l.b16 %v334
        %v401 = vunpack.c.l.b16 %v335
        %v402 = vpack.c.b16 %v371, %v370
        %v403 = vpack.c.b16 %v373, %v372
        %v404 = vpack.c.b16 %v375, %v374
        %v405 = vpack.c.b16 %v377, %v376
        %v406 = vpack.c.b16 %v379, %v378
        %v407 = vpack.c.b16 %v381, %v380
        %v408 = vpack.c.b16 %v383, %v382
        %v409 = vpack.c.b16 %v385, %v384
        %v410 = vpack.c.b16 %v387, %v386
        %v411 = vpack.c.b16 %v389, %v388
        %v412 = vpack.c.b16 %v391, %v390
        %v413 = vpack.c.b16 %v393, %v392
        %v414 = vpack.c.b16 %v395, %v394
        %v415 = vpack.c.b16 %v397, %v396
        %v416 = vpack.c.b16 %v399, %v398
        %v417 = vpack.c.b16 %v401, %v400
        %v420 = vunpack.c.l.b16 %v336
        %v421 = vunpack.c.l.b16 %v337
        %v422 = vpack.c.b16 %v421, %v420
        %vm424 = vcmask 130048
        %v426 = vsel %vm424, %v402, 0
        %v429 = vsel %vm424, %v403, 0
        %v432 = vsel %vm424, %v404, 0
        %v435 = vsel %vm424, %v405, 0
        %v438 = vsel %vm424, %v406, 0
        %v441 = vsel %vm424, %v407, 0
        %v444 = vsel %vm424, %v408, 0
        %v447 = vsel %vm424, %v409, 0
        %v450 = vsel %vm424, %v410, 0
        %v453 = vsel %vm424, %v411, 0
        %v456 = vsel %vm424, %v412, 0
        %v459 = vsel %vm424, %v413, 0
        %v462 = vsel %vm424, %v414, 0
        %v465 = vsel %vm424, %v415, 0
        %v468 = vsel %vm424, %v416, 0
        %v471 = vsel %vm424, %v417, 0
        %473 = vmatprep.subr.bf16.mxu0 0
        %474 = vmatpush1.bf16.msra.mxu0 %v422
        %475 = vmatprep.subr.bf16.mxu0 0
        %476 = vmatpush1.bf16.msra.mxu0 0
        %477 = vmatprep.subr.bf16.mxu0 0
        %478 = vmatpush1.bf16.msra.mxu0 0
        %479 = vmatprep.subr.bf16.mxu0 0
        %480 = vmatpush1.bf16.msra.mxu0 0
        %481 = vmatprep.subr.bf16.mxu0 0
        %482 = vmatpush1.bf16.msra.mxu0 0
        %483 = vmatprep.subr.bf16.mxu0 0
        %484 = vmatpush1.bf16.msra.mxu0 0
        %485 = vmatprep.subr.bf16.mxu0 0
        %486 = vmatpush1.bf16.msra.mxu0 0
        %487 = vmatprep.subr.bf16.mxu0 0
        %488 = vmatpush1.bf16.msra.mxu0 0
        %489 = vmatprep.subr.bf16.mxu0 0
        %490 = vmatpush1.bf16.msra.mxu0 0
        %491 = vmatprep.subr.bf16.mxu0 0
        %492 = vmatpush1.bf16.msra.mxu0 0
        %493 = vmatprep.subr.bf16.mxu0 0
        %494 = vmatpush1.bf16.msra.mxu0 0
        %495 = vmatprep.subr.bf16.mxu0 0
        %496 = vmatpush1.bf16.msra.mxu0 0
        %497 = vmatprep.subr.bf16.mxu0 0
        %498 = vmatpush1.bf16.msra.mxu0 0
        %499 = vmatprep.subr.bf16.mxu0 0
        %500 = vmatpush1.bf16.msra.mxu0 0
        %501 = vmatprep.subr.bf16.mxu0 0
        %502 = vmatpush1.bf16.msra.mxu0 0
        %503 = vmatprep.subr.bf16.mxu0 0
        %504 = vmatpush1.bf16.msra.mxu0 0
        %505 = vmatprep.mubr.bf16.mxu0 0
        %506 = vmatmul.mubr.bf16.gmra.mrb[0].mxu0 %v426
        %v507 = vpop.f32.mrb[0].mxu0
        %v508 = vadd.f32 0.0, %v507
        %v509 = vpop.f32.mrb[0].mxu0
        %v510 = vpop.f32.mrb[0].mxu0
        %v511 = vadd.f32 0.0, %v510
        %v512 = vpop.f32.mrb[0].mxu0
        %513 = vmatprep.mubr.bf16.mxu0 0
        %514 = vmatmul.mubr.bf16.gmra.mrb[0].mxu0 %v429
        %v515 = vpop.f32.mrb[0].mxu0
        %v516 = vadd.f32 0.0, %v515
        %v517 = vpop.f32.mrb[0].mxu0
        %v518 = vpop.f32.mrb[0].mxu0
        %v519 = vadd.f32 0.0, %v518
        %v520 = vpop.f32.mrb[0].mxu0
        %521 = vmatprep.mubr.bf16.mxu0 0
        %522 = vmatmul.mubr.bf16.gmra.mrb[0].mxu0 %v432
        %v523 = vpop.f32.mrb[0].mxu0
        %v524 = vadd.f32 0.0, %v523
        %v525 = vpop.f32.mrb[0].mxu0
        %v526 = vpop.f32.mrb[0].mxu0
        %v527 = vadd.f32 0.0, %v526
        %v528 = vpop.f32.mrb[0].mxu0
        %529 = vmatprep.mubr.bf16.mxu0 0
        %530 = vmatmul.mubr.bf16.gmra.mrb[0].mxu0 %v435
        %v531 = vpop.f32.mrb[0].mxu0
        %v532 = vadd.f32 0.0, %v531
        %v533 = vpop.f32.mrb[0].mxu0
        %v534 = vpop.f32.mrb[0].mxu0
        %v535 = vadd.f32 0.0, %v534
        %v536 = vpop.f32.mrb[0].mxu0
        %537 = vmatprep.mubr.bf16.mxu0 0
        %538 = vmatmul.mubr.bf16.gmra.mrb[0].mxu0 %v438
        %v539 = vpop.f32.mrb[0].mxu0
        %v540 = vadd.f32 0.0, %v539
        %v541 = vpop.f32.mrb[0].mxu0
        %v542 = vpop.f32.mrb[0].mxu0
        %v543 = vadd.f32 0.0, %v542
        %v544 = vpop.f32.mrb[0].mxu0
        %545 = vmatprep.mubr.bf16.mxu0 0
        %546 = vmatmul.mubr.bf16.gmra.mrb[0].mxu0 %v441
        %v547 = vpop.f32.mrb[0].mxu0
        %v548 = vadd.f32 0.0, %v547
        %v549 = vpop.f32.mrb[0].mxu0
        %v550 = vpop.f32.mrb[0].mxu0
        %v551 = vadd.f32 0.0, %v550
        %v552 = vpop.f32.mrb[0].mxu0
        %553 = vmatprep.mubr.bf16.mxu0 0
        %554 = vmatmul.mubr.bf16.gmra.mrb[0].mxu0 %v444
        %v555 = vpop.f32.mrb[0].mxu0
        %v556 = vadd.f32 0.0, %v555
        %v557 = vpop.f32.mrb[0].mxu0
        %v558 = vpop.f32.mrb[0].mxu0
        %v559 = vadd.f32 0.0, %v558
        %v560 = vpop.f32.mrb[0].mxu0
        %561 = vmatprep.mubr.bf16.mxu0 0
        %562 = vmatmul.mubr.bf16.gmra.mrb[0].mxu0 %v447
        %v563 = vpop.f32.mrb[0].mxu0
        %v564 = vadd.f32 0.0, %v563
        %v565 = vpop.f32.mrb[0].mxu0
        %v566 = vpop.f32.mrb[0].mxu0
        %v567 = vadd.f32 0.0, %v566
        %v568 = vpop.f32.mrb[0].mxu0
        %569 = vmatprep.mubr.bf16.mxu0 0
        %570 = vmatmul.mubr.bf16.gmra.mrb[0].mxu0 %v450
        %v571 = vpop.f32.mrb[0].mxu0
        %v572 = vadd.f32 0.0, %v571
        %v573 = vpop.f32.mrb[0].mxu0
        %v574 = vpop.f32.mrb[0].mxu0
        %v575 = vadd.f32 0.0, %v574
        %v576 = vpop.f32.mrb[0].mxu0
        %577 = vmatprep.mubr.bf16.mxu0 0
        %578 = vmatmul.mubr.bf16.gmra.mrb[0].mxu0 %v453
        %v579 = vpop.f32.mrb[0].mxu0
        %v580 = vadd.f32 0.0, %v579
        %v581 = vpop.f32.mrb[0].mxu0
        %v582 = vpop.f32.mrb[0].mxu0
        %v583 = vadd.f32 0.0, %v582
        %v584 = vpop.f32.mrb[0].mxu0
        %585 = vmatprep.mubr.bf16.mxu0 0
        %586 = vmatmul.mubr.bf16.gmra.mrb[0].mxu0 %v456
        %v587 = vpop.f32.mrb[0].mxu0
        %v588 = vadd.f32 0.0, %v587
        %v589 = vpop.f32.mrb[0].mxu0
        %v590 = vpop.f32.mrb[0].mxu0
        %v591 = vadd.f32 0.0, %v590
        %v592 = vpop.f32.mrb[0].mxu0
        %593 = vmatprep.mubr.bf16.mxu0 0
        %594 = vmatmul.mubr.bf16.gmra.mrb[0].mxu0 %v459
        %v595 = vpop.f32.mrb[0].mxu0
        %v596 = vadd.f32 0.0, %v595
        %v597 = vpop.f32.mrb[0].mxu0
        %v598 = vpop.f32.mrb[0].mxu0
        %v599 = vadd.f32 0.0, %v598
        %v600 = vpop.f32.mrb[0].mxu0
        %601 = vmatprep.mubr.bf16.mxu0 0
        %602 = vmatmul.mubr.bf16.gmra.mrb[0].mxu0 %v462
        %v603 = vpop.f32.mrb[0].mxu0
        %v604 = vadd.f32 0.0, %v603
        %v605 = vpop.f32.mrb[0].mxu0
        %v606 = vpop.f32.mrb[0].mxu0
        %v607 = vadd.f32 0.0, %v606
        %v608 = vpop.f32.mrb[0].mxu0
        %609 = vmatprep.mubr.bf16.mxu0 0
        %610 = vmatmul.mubr.bf16.gmra.mrb[0].mxu0 %v465
        %v611 = vpop.f32.mrb[0].mxu0
        %v612 = vadd.f32 0.0, %v611
        %v613 = vpop.f32.mrb[0].mxu0
        %v614 = vpop.f32.mrb[0].mxu0
        %v615 = vadd.f32 0.0, %v614
        %v616 = vpop.f32.mrb[0].mxu0
        %617 = vmatprep.mubr.bf16.mxu0 0
        %618 = vmatmul.mubr.bf16.gmra.mrb[0].mxu0 %v468
        %v619 = vpop.f32.mrb[0].mxu0
        %v620 = vadd.f32 0.0, %v619
        %v621 = vpop.f32.mrb[0].mxu0
        %v622 = vpop.f32.mrb[0].mxu0
        %v623 = vadd.f32 0.0, %v622
        %v624 = vpop.f32.mrb[0].mxu0
        %625 = vmatprep.mubr.bf16.mxu0 0
        %626 = vmatmul.mubr.bf16.gmra.mrb[0].mxu0 %v471
        %v627 = vpop.f32.mrb[0].mxu0
        %v628 = vadd.f32 0.0, %v627
        %v629 = vpop.f32.mrb[0].mxu0
        %v630 = vpop.f32.mrb[0].mxu0
        %v631 = vadd.f32 0.0, %v630
        %v632 = vpop.f32.mrb[0].mxu0
        %633 = vdwg.mxu0
        %v634 = vlaneseq
        %v635 = vshrl.u32 %v634, 7
        %v636 = vsub.s32 0, %v635
        %v637 = vrot.slane %v298, %v636
        %v638 = vmul.f32 %v508, %v637
        %v639 = vmul.f32 %v511, %v637
        %v640 = vmul.f32 %v516, %v637
        %v641 = vmul.f32 %v519, %v637
        %v642 = vmul.f32 %v524, %v637
        %v643 = vmul.f32 %v527, %v637
        %v644 = vmul.f32 %v532, %v637
        %v645 = vmul.f32 %v535, %v637
        %v646 = vmul.f32 %v540, %v637
        %v647 = vmul.f32 %v543, %v637
        %v648 = vmul.f32 %v548, %v637
        %v649 = vmul.f32 %v551, %v637
        %v650 = vmul.f32 %v556, %v637
        %v651 = vmul.f32 %v559, %v637
        %v652 = vmul.f32 %v564, %v637
        %v653 = vmul.f32 %v567, %v637
        %v654 = vmul.f32 %v572, %v637
        %v655 = vmul.f32 %v575, %v637
        %v656 = vmul.f32 %v580, %v637
        %v657 = vmul.f32 %v583, %v637
        %v658 = vmul.f32 %v588, %v637
        %v659 = vmul.f32 %v591, %v637
        %v660 = vmul.f32 %v596, %v637
        %v661 = vmul.f32 %v599, %v637
        %v662 = vmul.f32 %v604, %v637
        %v663 = vmul.f32 %v607, %v637
        %v664 = vmul.f32 %v612, %v637
        %v665 = vmul.f32 %v615, %v637
        %v666 = vmul.f32 %v620, %v637
        %v667 = vmul.f32 %v623, %v637
        %v668 = vmul.f32 %v628, %v637
        %v669 = vmul.f32 %v631, %v637
        %v670 = vlaneseq
        %v671 = vshrl.u32 %v670, 7
        %v672 = vsub.s32 0, %v671
        %v673 = vrot.slane %v299, %v672
        %v674 = vadd.f32 %v638, %v673
        %v675 = vadd.f32 %v639, %v673
        %v676 = vadd.f32 %v640, %v673
        %v677 = vadd.f32 %v641, %v673
        %v678 = vadd.f32 %v642, %v673
        %v679 = vadd.f32 %v643, %v673
        %v680 = vadd.f32 %v644, %v673
        %v681 = vadd.f32 %v645, %v673
        %v682 = vadd.f32 %v646, %v673
        %v683 = vadd.f32 %v647, %v673
        %v684 = vadd.f32 %v648, %v673
        %v685 = vadd.f32 %v649, %v673
        %v686 = vadd.f32 %v650, %v673
        %v687 = vadd.f32 %v651, %v673
        %v688 = vadd.f32 %v652, %v673
        %v689 = vadd.f32 %v653, %v673
        %v690 = vadd.f32 %v654, %v673
        %v691 = vadd.f32 %v655, %v673
        %v692 = vadd.f32 %v656, %v673
        %v693 = vadd.f32 %v657, %v673
        %v694 = vadd.f32 %v658, %v673
        %v695 = vadd.f32 %v659, %v673
        %v696 = vadd.f32 %v660, %v673
        %v697 = vadd.f32 %v661, %v673
        %v698 = vadd.f32 %v662, %v673
        %v699 = vadd.f32 %v663, %v673
        %v700 = vadd.f32 %v664, %v673
        %v701 = vadd.f32 %v665, %v673
        %v702 = vadd.f32 %v666, %v673
        %v703 = vadd.f32 %v667, %v673
        %v704 = vadd.f32 %v668, %v673
        %v705 = vadd.f32 %v669, %v673
        %v706 = vmax.f32 %v674, 0.0
        %v707 = vmax.f32 %v675, 0.0
        %v708 = vmax.f32 %v676, 0.0
        %v709 = vmax.f32 %v677, 0.0
        %v710 = vmax.f32 %v678, 0.0
        %v711 = vmax.f32 %v679, 0.0
        %v712 = vmax.f32 %v680, 0.0
        %v713 = vmax.f32 %v681, 0.0
        %v714 = vmax.f32 %v682, 0.0
        %v715 = vmax.f32 %v683, 0.0
        %v716 = vmax.f32 %v684, 0.0
        %v717 = vmax.f32 %v685, 0.0
        %v718 = vmax.f32 %v686, 0.0
        %v719 = vmax.f32 %v687, 0.0
        %v720 = vmax.f32 %v688, 0.0
        %v721 = vmax.f32 %v689, 0.0
        %v722 = vmax.f32 %v690, 0.0
        %v723 = vmax.f32 %v691, 0.0
        %v724 = vmax.f32 %v692, 0.0
        %v725 = vmax.f32 %v693, 0.0
        %v726 = vmax.f32 %v694, 0.0
        %v727 = vmax.f32 %v695, 0.0
        %v728 = vmax.f32 %v696, 0.0
        %v729 = vmax.f32 %v697, 0.0
        %v730 = vmax.f32 %v698, 0.0
        %v731 = vmax.f32 %v699, 0.0
        %v732 = vmax.f32 %v700, 0.0
        %v733 = vmax.f32 %v701, 0.0
        %v734 = vmax.f32 %v702, 0.0
        %v735 = vmax.f32 %v703, 0.0
        %v736 = vmax.f32 %v704, 0.0
        %v737 = vmax.f32 %v705, 0.0
        %vm738 = vcmask 27648
        %739 = vst.msk [vmem:[#allocation2] sm:$0xf] %vm738, 0
        %740 = vst.msk [vmem:[#allocation2 + $0x4] sm:$0xf] %vm738, 0
        %vm741 = vcmask 24576
        %742 = vst.msk [vmem:[#allocation2 + $0x8] sm:$0x1] %vm741, 0
        %s743 = scalar_lea.vmem [#allocation2], 204
        %744 = vst.msk [vmem:[%s743] sm:$0xf] %vm738, 0
        %745 = vst.msk [vmem:[%s743 + $0x4] sm:$0xf] %vm738, 0
        %746 = vst.msk [vmem:[%s743 + $0x8] sm:$0x1] %vm741, 0
        %vm747 = vcmask 24576
        %vm748 = vsmask.f32 256
        %vm749 = vmand %vm747, %vm748
        %v750 = vld [vmem:[#allocation2] sm:$0x1]
        %v751 = vsel %vm749, 0, %v750
        %752 = vst [vmem:[#allocation2] sm:$0x1] %v751
        %v753 = vld [vmem:[#allocation2 + $0xc] sm:$0x1]
        %v754 = vsel %vm749, 0, %v753
        %755 = vst [vmem:[#allocation2 + $0xc] sm:$0x1] %v754
        %v756 = vld [vmem:[#allocation2 + $0x18] sm:$0x1]
        %v757 = vsel %vm749, 0, %v756
        %758 = vst [vmem:[#allocation2 + $0x18] sm:$0x1] %v757
        %v759 = vld [vmem:[#allocation2 + $0x24] sm:$0x1]
        %v760 = vsel %vm749, 0, %v759
        %761 = vst [vmem:[#allocation2 + $0x24] sm:$0x1] %v760
        %v762 = vld [vmem:[#allocation2 + $0x30] sm:$0x1]
        %v763 = vsel %vm749, 0, %v762
        %764 = vst [vmem:[#allocation2 + $0x30] sm:$0x1] %v763
        %v765 = vld [vmem:[#allocation2 + $0x3c] sm:$0x1]
        %v766 = vsel %vm749, 0, %v765
        %767 = vst [vmem:[#allocation2 + $0x3c] sm:$0x1] %v766
        %v768 = vld [vmem:[#allocation2 + $0x48] sm:$0x1]
        %v769 = vsel %vm749, 0, %v768
        %770 = vst [vmem:[#allocation2 + $0x48] sm:$0x1] %v769
        %v771 = vld [vmem:[#allocation2 + $0x54] sm:$0x1]
        %v772 = vsel %vm749, 0, %v771
        %773 = vst [vmem:[#allocation2 + $0x54] sm:$0x1] %v772
        %v774 = vld [vmem:[#allocation2 + $0x60] sm:$0x1]
        %v775 = vsel %vm749, 0, %v774
        %776 = vst [vmem:[#allocation2 + $0x60] sm:$0x1] %v775
        %v777 = vld [vmem:[#allocation2 + $0x6c] sm:$0x1]
        %v778 = vsel %vm749, 0, %v777
        %779 = vst [vmem:[#allocation2 + $0x6c] sm:$0x1] %v778
        %v780 = vld [vmem:[#allocation2 + $0x78] sm:$0x1]
        %v781 = vsel %vm749, 0, %v780
        %782 = vst [vmem:[#allocation2 + $0x78] sm:$0x1] %v781
        %v783 = vld [vmem:[#allocation2 + $0x84] sm:$0x1]
        %v784 = vsel %vm749, 0, %v783
        %785 = vst [vmem:[#allocation2 + $0x84] sm:$0x1] %v784
        %v786 = vld [vmem:[#allocation2 + $0x90] sm:$0x1]
        %v787 = vsel %vm749, 0, %v786
        %788 = vst [vmem:[#allocation2 + $0x90] sm:$0x1] %v787
        %v789 = vld [vmem:[#allocation2 + $0x9c] sm:$0x1]
        %v790 = vsel %vm749, 0, %v789
        %791 = vst [vmem:[#allocation2 + $0x9c] sm:$0x1] %v790
        %v792 = vld [vmem:[#allocation2 + $0xa8] sm:$0x1]
        %v793 = vsel %vm749, 0, %v792
        %794 = vst [vmem:[#allocation2 + $0xa8] sm:$0x1] %v793
        %v795 = vld [vmem:[#allocation2 + $0xb4] sm:$0x1]
        %v796 = vsel %vm749, 0, %v795
        %797 = vst [vmem:[#allocation2 + $0xb4] sm:$0x1] %v796
        %v798 = vld [vmem:[#allocation2 + $0xc0] sm:$0x1]
        %v799 = vsel %vm749, 0, %v798
        %800 = vst [vmem:[#allocation2 + $0xc0] sm:$0x1] %v799
        %v801 = vld [vmem:[#allocation2 + $0xcc] sm:$0x1]
        %v802 = vsel %vm749, 0, %v801
        %803 = vst [vmem:[#allocation2 + $0xcc] sm:$0x1] %v802
        %vm804 = vsmask.f32 7938
        %vm805 = vmand %vm747, %vm804
        %v806 = vld [vmem:[#allocation2 + $0x8] sm:$0x1]
        %v807 = vsel %vm805, 0, %v806
        %808 = vst [vmem:[#allocation2 + $0x8] sm:$0x1] %v807
        %v809 = vld [vmem:[#allocation2 + $0x14] sm:$0x1]
        %v810 = vsel %vm805, 0, %v809
        %811 = vst [vmem:[#allocation2 + $0x14] sm:$0x1] %v810
        %v812 = vld [vmem:[#allocation2 + $0x20] sm:$0x1]
        %v813 = vsel %vm805, 0, %v812
        %814 = vst [vmem:[#allocation2 + $0x20] sm:$0x1] %v813
        %v815 = vld [vmem:[#allocation2 + $0x2c] sm:$0x1]
        %v816 = vsel %vm805, 0, %v815
        %817 = vst [vmem:[#allocation2 + $0x2c] sm:$0x1] %v816
        %v818 = vld [vmem:[#allocation2 + $0x38] sm:$0x1]
        %v819 = vsel %vm805, 0, %v818
        %820 = vst [vmem:[#allocation2 + $0x38] sm:$0x1] %v819
        %v821 = vld [vmem:[#allocation2 + $0x44] sm:$0x1]
        %v822 = vsel %vm805, 0, %v821
        %823 = vst [vmem:[#allocation2 + $0x44] sm:$0x1] %v822
        %v824 = vld [vmem:[#allocation2 + $0x50] sm:$0x1]
        %v825 = vsel %vm805, 0, %v824
        %826 = vst [vmem:[#allocation2 + $0x50] sm:$0x1] %v825
        %v827 = vld [vmem:[#allocation2 + $0x5c] sm:$0x1]
        %v828 = vsel %vm805, 0, %v827
        %829 = vst [vmem:[#allocation2 + $0x5c] sm:$0x1] %v828
        %v830 = vld [vmem:[#allocation2 + $0x68] sm:$0x1]
        %v831 = vsel %vm805, 0, %v830
        %832 = vst [vmem:[#allocation2 + $0x68] sm:$0x1] %v831
        %v833 = vld [vmem:[#allocation2 + $0x74] sm:$0x1]
        %v834 = vsel %vm805, 0, %v833
        %835 = vst [vmem:[#allocation2 + $0x74] sm:$0x1] %v834
        %v836 = vld [vmem:[#allocation2 + $0x80] sm:$0x1]
        %v837 = vsel %vm805, 0, %v836
        %838 = vst [vmem:[#allocation2 + $0x80] sm:$0x1] %v837
        %v839 = vld [vmem:[#allocation2 + $0x8c] sm:$0x1]
        %v840 = vsel %vm805, 0, %v839
        %841 = vst [vmem:[#allocation2 + $0x8c] sm:$0x1] %v840
        %v842 = vld [vmem:[#allocation2 + $0x98] sm:$0x1]
        %v843 = vsel %vm805, 0, %v842
        %844 = vst [vmem:[#allocation2 + $0x98] sm:$0x1] %v843
        %v845 = vld [vmem:[#allocation2 + $0xa4] sm:$0x1]
        %v846 = vsel %vm805, 0, %v845
        %847 = vst [vmem:[#allocation2 + $0xa4] sm:$0x1] %v846
        %v848 = vld [vmem:[#allocation2 + $0xb0] sm:$0x1]
        %v849 = vsel %vm805, 0, %v848
        %850 = vst [vmem:[#allocation2 + $0xb0] sm:$0x1] %v849
        %v851 = vld [vmem:[#allocation2 + $0xbc] sm:$0x1]
        %v852 = vsel %vm805, 0, %v851
        %853 = vst [vmem:[#allocation2 + $0xbc] sm:$0x1] %v852
        %v854 = vld [vmem:[#allocation2 + $0xc8] sm:$0x1]
        %v855 = vsel %vm805, 0, %v854
        %856 = vst [vmem:[#allocation2 + $0xc8] sm:$0x1] %v855
        %v857 = vld [vmem:[#allocation2 + $0xd4] sm:$0x1]
        %v858 = vsel %vm805, 0, %v857
        %859 = vst [vmem:[#allocation2 + $0xd4] sm:$0x1] %v858
        %v860 = vpack.c.bf16 %v707, %v706
        %v861 = vpack.c.bf16 %v709, %v708
        %v862 = vpack.c.bf16 %v711, %v710
        %v863 = vpack.c.bf16 %v713, %v712
        %v864 = vpack.c.bf16 %v715, %v714
        %v865 = vpack.c.bf16 %v717, %v716
        %v866 = vpack.c.bf16 %v719, %v718
        %v867 = vpack.c.bf16 %v721, %v720
        %v868 = vpack.c.bf16 %v723, %v722
        %v869 = vpack.c.bf16 %v725, %v724
        %v870 = vpack.c.bf16 %v727, %v726
        %v871 = vpack.c.bf16 %v729, %v728
        %v872 = vpack.c.bf16 %v731, %v730
        %v873 = vpack.c.bf16 %v733, %v732
        %v874 = vpack.c.bf16 %v735, %v734
        %v875 = vpack.c.bf16 %v737, %v736
        %v892 = vunpack.c.l.b16 %v860
        %v893 = vunpack.c.h.b16 %v860
        %v894 = vunpack.c.l.b16 %v861
        %v895 = vunpack.c.h.b16 %v861
        %v896 = vunpack.c.l.b16 %v862
        %v897 = vunpack.c.h.b16 %v862
        %v898 = vunpack.c.l.b16 %v863
        %v899 = vunpack.c.h.b16 %v863
        %v900 = vunpack.c.l.b16 %v864
        %v901 = vunpack.c.h.b16 %v864
        %v902 = vunpack.c.l.b16 %v865
        %v903 = vunpack.c.h.b16 %v865
        %v904 = vunpack.c.l.b16 %v866
        %v905 = vunpack.c.h.b16 %v866
        %v906 = vunpack.c.l.b16 %v867
        %v907 = vunpack.c.h.b16 %v867
        %v908 = vunpack.c.l.b16 %v868
        %v909 = vunpack.c.h.b16 %v868
        %v910 = vunpack.c.l.b16 %v869
        %v911 = vunpack.c.h.b16 %v869
        %v912 = vunpack.c.l.b16 %v870
        %v913 = vunpack.c.h.b16 %v870
        %v914 = vunpack.c.l.b16 %v871
        %v915 = vunpack.c.h.b16 %v871
        %v916 = vunpack.c.l.b16 %v872
        %v917 = vunpack.c.h.b16 %v872
        %v918 = vunpack.c.l.b16 %v873
        %v919 = vunpack.c.h.b16 %v873
        %v920 = vunpack.c.l.b16 %v874
        %v921 = vunpack.c.h.b16 %v874
        %v922 = vunpack.c.l.b16 %v875
        %v923 = vunpack.c.h.b16 %v875
        %v924 = vpack.c.b16 %v892, %v892
        %v925 = vpack.c.b16 %v893, %v893
        %v926 = vpack.c.b16 %v894, %v894
        %v927 = vpack.c.b16 %v895, %v895
        %v928 = vpack.c.b16 %v896, %v896
        %v929 = vpack.c.b16 %v897, %v897
        %v930 = vpack.c.b16 %v898, %v898
        %v931 = vpack.c.b16 %v899, %v899
        %v932 = vpack.c.b16 %v900, %v900
        %v933 = vpack.c.b16 %v901, %v901
        %v934 = vpack.c.b16 %v902, %v902
        %v935 = vpack.c.b16 %v903, %v903
        %v936 = vpack.c.b16 %v904, %v904
        %v937 = vpack.c.b16 %v905, %v905
        %v938 = vpack.c.b16 %v906, %v906
        %v939 = vpack.c.b16 %v907, %v907
        %v940 = vpack.c.b16 %v908, %v908
        %v941 = vpack.c.b16 %v909, %v909
        %v942 = vpack.c.b16 %v910, %v910
        %v943 = vpack.c.b16 %v911, %v911
        %v944 = vpack.c.b16 %v912, %v912
        %v945 = vpack.c.b16 %v913, %v913
        %v946 = vpack.c.b16 %v914, %v914
        %v947 = vpack.c.b16 %v915, %v915
        %v948 = vpack.c.b16 %v916, %v916
        %v949 = vpack.c.b16 %v917, %v917
        %v950 = vpack.c.b16 %v918, %v918
        %v951 = vpack.c.b16 %v919, %v919
        %v952 = vpack.c.b16 %v920, %v920
        %v953 = vpack.c.b16 %v921, %v921
        %v954 = vpack.c.b16 %v922, %v922
        %v955 = vpack.c.b16 %v923, %v923
        %vm956 = vsmask.f32 4368
        %vm957 = vmor %vm748, %vm956
        %v959 = vshrl.u32 %v924, 16
        %v961 = vrot.slane %v959, 7
        %v962 = vshll.u32 %v924, 16
        %v964 = vor.u32 %v961, %v962
        %v965 = vrot.slane %v961, 4
        %v967 = vshrl.u32 %v925, 16
        %v969 = vrot.slane %v967, 7
        %v970 = vshll.u32 %v925, 16
        %v972 = vor.u32 %v969, %v970
        %v973 = vsel %vm957, %v965, %v972
        %v974 = vrot.slane %v969, 4
        %v976 = vshrl.u32 %v926, 16
        %v978 = vrot.slane %v976, 7
        %v979 = vshll.u32 %v926, 16
        %v981 = vor.u32 %v978, %v979
        %v982 = vrot.slane %v978, 4
        %v984 = vshrl.u32 %v927, 16
        %v986 = vrot.slane %v984, 7
        %v987 = vshll.u32 %v927, 16
        %v989 = vor.u32 %v986, %v987
        %v990 = vsel %vm957, %v982, %v989
        %v991 = vrot.slane %v986, 4
        %v993 = vshrl.u32 %v928, 16
        %v995 = vrot.slane %v993, 7
        %v996 = vshll.u32 %v928, 16
        %v998 = vor.u32 %v995, %v996
        %v999 = vrot.slane %v995, 4
        %v1001 = vshrl.u32 %v929, 16
        %v1003 = vrot.slane %v1001, 7
        %v1004 = vshll.u32 %v929, 16
        %v1006 = vor.u32 %v1003, %v1004
        %v1007 = vsel %vm957, %v999, %v1006
        %v1008 = vrot.slane %v1003, 4
        %v1010 = vshrl.u32 %v930, 16
        %v1012 = vrot.slane %v1010, 7
        %v1013 = vshll.u32 %v930, 16
        %v1015 = vor.u32 %v1012, %v1013
        %v1016 = vrot.slane %v1012, 4
        %v1018 = vshrl.u32 %v931, 16
        %v1020 = vrot.slane %v1018, 7
        %v1021 = vshll.u32 %v931, 16
        %v1023 = vor.u32 %v1020, %v1021
        %v1024 = vsel %vm957, %v1016, %v1023
        %v1025 = vrot.slane %v1020, 4
        %v1027 = vshrl.u32 %v932, 16
        %v1029 = vrot.slane %v1027, 7
        %v1030 = vshll.u32 %v932, 16
        %v1032 = vor.u32 %v1029, %v1030
        %v1033 = vrot.slane %v1029, 4
        %v1035 = vshrl.u32 %v933, 16
        %v1037 = vrot.slane %v1035, 7
        %v1038 = vshll.u32 %v933, 16
        %v1040 = vor.u32 %v1037, %v1038
        %v1041 = vsel %vm957, %v1033, %v1040
        %v1042 = vrot.slane %v1037, 4
        %v1044 = vshrl.u32 %v934, 16
        %v1046 = vrot.slane %v1044, 7
        %v1047 = vshll.u32 %v934, 16
        %v1049 = vor.u32 %v1046, %v1047
        %v1050 = vrot.slane %v1046, 4
        %v1052 = vshrl.u32 %v935, 16
        %v1054 = vrot.slane %v1052, 7
        %v1055 = vshll.u32 %v935, 16
        %v1057 = vor.u32 %v1054, %v1055
        %v1058 = vsel %vm957, %v1050, %v1057
        %v1059 = vrot.slane %v1054, 4
        %v1061 = vshrl.u32 %v936, 16
        %v1063 = vrot.slane %v1061, 7
        %v1064 = vshll.u32 %v936, 16
        %v1066 = vor.u32 %v1063, %v1064
        %v1067 = vrot.slane %v1063, 4
        %v1069 = vshrl.u32 %v937, 16
        %v1071 = vrot.slane %v1069, 7
        %v1072 = vshll.u32 %v937, 16
        %v1074 = vor.u32 %v1071, %v1072
        %v1075 = vsel %vm957, %v1067, %v1074
        %v1076 = vrot.slane %v1071, 4
        %v1078 = vshrl.u32 %v938, 16
        %v1080 = vrot.slane %v1078, 7
        %v1081 = vshll.u32 %v938, 16
        %v1083 = vor.u32 %v1080, %v1081
        %v1084 = vrot.slane %v1080, 4
        %v1086 = vshrl.u32 %v939, 16
        %v1088 = vrot.slane %v1086, 7
        %v1089 = vshll.u32 %v939, 16
        %v1091 = vor.u32 %v1088, %v1089
        %v1092 = vsel %vm957, %v1084, %v1091
        %v1093 = vrot.slane %v1088, 4
        %v1095 = vshrl.u32 %v940, 16
        %v1097 = vrot.slane %v1095, 7
        %v1098 = vshll.u32 %v940, 16
        %v1100 = vor.u32 %v1097, %v1098
        %v1101 = vrot.slane %v1097, 4
        %v1103 = vshrl.u32 %v941, 16
        %v1105 = vrot.slane %v1103, 7
        %v1106 = vshll.u32 %v941, 16
        %v1108 = vor.u32 %v1105, %v1106
        %v1109 = vsel %vm957, %v1101, %v1108
        %v1110 = vrot.slane %v1105, 4
        %v1112 = vshrl.u32 %v942, 16
        %v1114 = vrot.slane %v1112, 7
        %v1115 = vshll.u32 %v942, 16
        %v1117 = vor.u32 %v1114, %v1115
        %v1118 = vrot.slane %v1114, 4
        %v1120 = vshrl.u32 %v943, 16
        %v1122 = vrot.slane %v1120, 7
        %v1123 = vshll.u32 %v943, 16
        %v1125 = vor.u32 %v1122, %v1123
        %v1126 = vsel %vm957, %v1118, %v1125
        %v1127 = vrot.slane %v1122, 4
        %v1129 = vshrl.u32 %v944, 16
        %v1131 = vrot.slane %v1129, 7
        %v1132 = vshll.u32 %v944, 16
        %v1134 = vor.u32 %v1131, %v1132
        %v1135 = vrot.slane %v1131, 4
        %v1137 = vshrl.u32 %v945, 16
        %v1139 = vrot.slane %v1137, 7
        %v1140 = vshll.u32 %v945, 16
        %v1142 = vor.u32 %v1139, %v1140
        %v1143 = vsel %vm957, %v1135, %v1142
        %v1144 = vrot.slane %v1139, 4
        %v1146 = vshrl.u32 %v946, 16
        %v1148 = vrot.slane %v1146, 7
        %v1149 = vshll.u32 %v946, 16
        %v1151 = vor.u32 %v1148, %v1149
        %v1152 = vrot.slane %v1148, 4
        %v1154 = vshrl.u32 %v947, 16
        %v1156 = vrot.slane %v1154, 7
        %v1157 = vshll.u32 %v947, 16
        %v1159 = vor.u32 %v1156, %v1157
        %v1160 = vsel %vm957, %v1152, %v1159
        %v1161 = vrot.slane %v1156, 4
        %v1163 = vshrl.u32 %v948, 16
        %v1165 = vrot.slane %v1163, 7
        %v1166 = vshll.u32 %v948, 16
        %v1168 = vor.u32 %v1165, %v1166
        %v1169 = vrot.slane %v1165, 4
        %v1171 = vshrl.u32 %v949, 16
        %v1173 = vrot.slane %v1171, 7
        %v1174 = vshll.u32 %v949, 16
        %v1176 = vor.u32 %v1173, %v1174
        %v1177 = vsel %vm957, %v1169, %v1176
        %v1178 = vrot.slane %v1173, 4
        %v1180 = vshrl.u32 %v950, 16
        %v1182 = vrot.slane %v1180, 7
        %v1183 = vshll.u32 %v950, 16
        %v1185 = vor.u32 %v1182, %v1183
        %v1186 = vrot.slane %v1182, 4
        %v1188 = vshrl.u32 %v951, 16
        %v1190 = vrot.slane %v1188, 7
        %v1191 = vshll.u32 %v951, 16
        %v1193 = vor.u32 %v1190, %v1191
        %v1194 = vsel %vm957, %v1186, %v1193
        %v1195 = vrot.slane %v1190, 4
        %v1197 = vshrl.u32 %v952, 16
        %v1199 = vrot.slane %v1197, 7
        %v1200 = vshll.u32 %v952, 16
        %v1202 = vor.u32 %v1199, %v1200
        %v1203 = vrot.slane %v1199, 4
        %v1205 = vshrl.u32 %v953, 16
        %v1207 = vrot.slane %v1205, 7
        %v1208 = vshll.u32 %v953, 16
        %v1210 = vor.u32 %v1207, %v1208
        %v1211 = vsel %vm957, %v1203, %v1210
        %v1212 = vrot.slane %v1207, 4
        %v1214 = vshrl.u32 %v954, 16
        %v1216 = vrot.slane %v1214, 7
        %v1217 = vshll.u32 %v954, 16
        %v1219 = vor.u32 %v1216, %v1217
        %v1220 = vrot.slane %v1216, 4
        %v1222 = vshrl.u32 %v955, 16
        %v1224 = vrot.slane %v1222, 7
        %v1225 = vshll.u32 %v955, 16
        %v1227 = vor.u32 %v1224, %v1225
        %v1228 = vsel %vm957, %v1220, %v1227
        %v1229 = vrot.slane %v1224, 4
        %s1278 = scalar_lea.vmem [#allocation2], 12
        %vm1279 = vcmask 27648
        %vm1280 = vmand %vm1279, %vm804
        %v1281 = vld [vmem:[%s1278] sm:$0xf]
        %v1282 = vsel %vm1280, %v964, %v1281
        %1283 = vst [vmem:[%s1278] sm:$0xf] %v1282
        %1284 = vst.msk [vmem:[%s1278 + $0x4] sm:$0xf] %vm738, %v973
        %v1285 = vld [vmem:[%s1278 + $0x8] sm:$0x1]
        %v1286 = vsel %vm749, %v974, %v1285
        %1287 = vst [vmem:[%s1278 + $0x8] sm:$0x1] %v1286
        %v1288 = vld [vmem:[%s1278 + $0xc] sm:$0xf]
        %v1289 = vsel %vm1280, %v981, %v1288
        %1290 = vst [vmem:[%s1278 + $0xc] sm:$0xf] %v1289
        %1291 = vst.msk [vmem:[%s1278 + $0x10] sm:$0xf] %vm738, %v990
        %v1292 = vld [vmem:[%s1278 + $0x14] sm:$0x1]
        %v1293 = vsel %vm749, %v991, %v1292
        %1294 = vst [vmem:[%s1278 + $0x14] sm:$0x1] %v1293
        %v1295 = vld [vmem:[%s1278 + $0x18] sm:$0xf]
        %v1296 = vsel %vm1280, %v998, %v1295
        %1297 = vst [vmem:[%s1278 + $0x18] sm:$0xf] %v1296
        %1298 = vst.msk [vmem:[%s1278 + $0x1c] sm:$0xf] %vm738, %v1007
        %v1299 = vld [vmem:[%s1278 + $0x20] sm:$0x1]
        %v1300 = vsel %vm749, %v1008, %v1299
        %1301 = vst [vmem:[%s1278 + $0x20] sm:$0x1] %v1300
        %v1302 = vld [vmem:[%s1278 + $0x24] sm:$0xf]
        %v1303 = vsel %vm1280, %v1015, %v1302
        %1304 = vst [vmem:[%s1278 + $0x24] sm:$0xf] %v1303
        %1305 = vst.msk [vmem:[%s1278 + $0x28] sm:$0xf] %vm738, %v1024
        %v1306 = vld [vmem:[%s1278 + $0x2c] sm:$0x1]
        %v1307 = vsel %vm749, %v1025, %v1306
        %1308 = vst [vmem:[%s1278 + $0x2c] sm:$0x1] %v1307
        %v1309 = vld [vmem:[%s1278 + $0x30] sm:$0xf]
        %v1310 = vsel %vm1280, %v1032, %v1309
        %1311 = vst [vmem:[%s1278 + $0x30] sm:$0xf] %v1310
        %1312 = vst.msk [vmem:[%s1278 + $0x34] sm:$0xf] %vm738, %v1041
        %v1313 = vld [vmem:[%s1278 + $0x38] sm:$0x1]
        %v1314 = vsel %vm749, %v1042, %v1313
        %1315 = vst [vmem:[%s1278 + $0x38] sm:$0x1] %v1314
        %v1316 = vld [vmem:[%s1278 + $0x3c] sm:$0xf]
        %v1317 = vsel %vm1280, %v1049, %v1316
        %1318 = vst [vmem:[%s1278 + $0x3c] sm:$0xf] %v1317
        %1319 = vst.msk [vmem:[%s1278 + $0x40] sm:$0xf] %vm738, %v1058
        %v1320 = vld [vmem:[%s1278 + $0x44] sm:$0x1]
        %v1321 = vsel %vm749, %v1059, %v1320
        %1322 = vst [vmem:[%s1278 + $0x44] sm:$0x1] %v1321
        %v1323 = vld [vmem:[%s1278 + $0x48] sm:$0xf]
        %v1324 = vsel %vm1280, %v1066, %v1323
        %1325 = vst [vmem:[%s1278 + $0x48] sm:$0xf] %v1324
        %1326 = vst.msk [vmem:[%s1278 + $0x4c] sm:$0xf] %vm738, %v1075
        %v1327 = vld [vmem:[%s1278 + $0x50] sm:$0x1]
        %v1328 = vsel %vm749, %v1076, %v1327
        %1329 = vst [vmem:[%s1278 + $0x50] sm:$0x1] %v1328
        %v1330 = vld [vmem:[%s1278 + $0x54] sm:$0xf]
        %v1331 = vsel %vm1280, %v1083, %v1330
        %1332 = vst [vmem:[%s1278 + $0x54] sm:$0xf] %v1331
        %1333 = vst.msk [vmem:[%s1278 + $0x58] sm:$0xf] %vm738, %v1092
        %v1334 = vld [vmem:[%s1278 + $0x5c] sm:$0x1]
        %v1335 = vsel %vm749, %v1093, %v1334
        %1336 = vst [vmem:[%s1278 + $0x5c] sm:$0x1] %v1335
        %v1337 = vld [vmem:[%s1278 + $0x60] sm:$0xf]
        %v1338 = vsel %vm1280, %v1100, %v1337
        %1339 = vst [vmem:[%s1278 + $0x60] sm:$0xf] %v1338
        %1340 = vst.msk [vmem:[%s1278 + $0x64] sm:$0xf] %vm738, %v1109
        %v1341 = vld [vmem:[%s1278 + $0x68] sm:$0x1]
        %v1342 = vsel %vm749, %v1110, %v1341
        %1343 = vst [vmem:[%s1278 + $0x68] sm:$0x1] %v1342
        %v1344 = vld [vmem:[%s1278 + $0x6c] sm:$0xf]
        %v1345 = vsel %vm1280, %v1117, %v1344
        %1346 = vst [vmem:[%s1278 + $0x6c] sm:$0xf] %v1345
        %1347 = vst.msk [vmem:[%s1278 + $0x70] sm:$0xf] %vm738, %v1126
        %v1348 = vld [vmem:[%s1278 + $0x74] sm:$0x1]
        %v1349 = vsel %vm749, %v1127, %v1348
        %1350 = vst [vmem:[%s1278 + $0x74] sm:$0x1] %v1349
        %v1351 = vld [vmem:[%s1278 + $0x78] sm:$0xf]
        %v1352 = vsel %vm1280, %v1134, %v1351
        %1353 = vst [vmem:[%s1278 + $0x78] sm:$0xf] %v1352
        %1354 = vst.msk [vmem:[%s1278 + $0x7c] sm:$0xf] %vm738, %v1143
        %v1355 = vld [vmem:[%s1278 + $0x80] sm:$0x1]
        %v1356 = vsel %vm749, %v1144, %v1355
        %1357 = vst [vmem:[%s1278 + $0x80] sm:$0x1] %v1356
        %v1358 = vld [vmem:[%s1278 + $0x84] sm:$0xf]
        %v1359 = vsel %vm1280, %v1151, %v1358
        %1360 = vst [vmem:[%s1278 + $0x84] sm:$0xf] %v1359
        %1361 = vst.msk [vmem:[%s1278 + $0x88] sm:$0xf] %vm738, %v1160
        %v1362 = vld [vmem:[%s1278 + $0x8c] sm:$0x1]
        %v1363 = vsel %vm749, %v1161, %v1362
        %1364 = vst [vmem:[%s1278 + $0x8c] sm:$0x1] %v1363
        %v1365 = vld [vmem:[%s1278 + $0x90] sm:$0xf]
        %v1366 = vsel %vm1280, %v1168, %v1365
        %1367 = vst [vmem:[%s1278 + $0x90] sm:$0xf] %v1366
        %1368 = vst.msk [vmem:[%s1278 + $0x94] sm:$0xf] %vm738, %v1177
        %v1369 = vld [vmem:[%s1278 + $0x98] sm:$0x1]
        %v1370 = vsel %vm749, %v1178, %v1369
        %1371 = vst [vmem:[%s1278 + $0x98] sm:$0x1] %v1370
        %v1372 = vld [vmem:[%s1278 + $0x9c] sm:$0xf]
        %v1373 = vsel %vm1280, %v1185, %v1372
        %1374 = vst [vmem:[%s1278 + $0x9c] sm:$0xf] %v1373
        %1375 = vst.msk [vmem:[%s1278 + $0xa0] sm:$0xf] %vm738, %v1194
        %v1376 = vld [vmem:[%s1278 + $0xa4] sm:$0x1]
        %v1377 = vsel %vm749, %v1195, %v1376
        %1378 = vst [vmem:[%s1278 + $0xa4] sm:$0x1] %v1377
        %v1379 = vld [vmem:[%s1278 + $0xa8] sm:$0xf]
        %v1380 = vsel %vm1280, %v1202, %v1379
        %1381 = vst [vmem:[%s1278 + $0xa8] sm:$0xf] %v1380
        %1382 = vst.msk [vmem:[%s1278 + $0xac] sm:$0xf] %vm738, %v1211
        %v1383 = vld [vmem:[%s1278 + $0xb0] sm:$0x1]
        %v1384 = vsel %vm749, %v1212, %v1383
        %1385 = vst [vmem:[%s1278 + $0xb0] sm:$0x1] %v1384
        %v1386 = vld [vmem:[%s1278 + $0xb4] sm:$0xf]
        %v1387 = vsel %vm1280, %v1219, %v1386
        %1388 = vst [vmem:[%s1278 + $0xb4] sm:$0xf] %v1387
        %1389 = vst.msk [vmem:[%s1278 + $0xb8] sm:$0xf] %vm738, %v1228
        %v1390 = vld [vmem:[%s1278 + $0xbc] sm:$0x1]
        %v1391 = vsel %vm749, %v1229, %v1390
        %1392 = vst [vmem:[%s1278 + $0xbc] sm:$0x1] %v1391
        %v1393 = vld [vmem:[#allocation2] sm:$0xf]
        %v1394 = vld [vmem:[#allocation2 + $0x4] sm:$0xf]
        %v1395 = vld [vmem:[#allocation2 + $0xc] sm:$0xf]
        %v1396 = vld [vmem:[#allocation2 + $0x10] sm:$0xf]
        %v1397 = vld [vmem:[#allocation2 + $0x18] sm:$0xf]
        %v1398 = vld [vmem:[#allocation2 + $0x1c] sm:$0xf]
        %v1399 = vld [vmem:[#allocation2 + $0x24] sm:$0xf]
        %v1400 = vld [vmem:[#allocation2 + $0x28] sm:$0xf]
        %v1401 = vld [vmem:[#allocation2 + $0x30] sm:$0xf]
        %v1402 = vld [vmem:[#allocation2 + $0x34] sm:$0xf]
        %v1403 = vld [vmem:[#allocation2 + $0x3c] sm:$0xf]
        %v1404 = vld [vmem:[#allocation2 + $0x40] sm:$0xf]
        %v1405 = vld [vmem:[#allocation2 + $0x48] sm:$0xf]
        %v1406 = vld [vmem:[#allocation2 + $0x4c] sm:$0xf]
        %v1407 = vld [vmem:[#allocation2 + $0x54] sm:$0xf]
        %v1408 = vld [vmem:[#allocation2 + $0x58] sm:$0xf]
        %v1409 = vld [vmem:[#allocation2 + $0x60] sm:$0xf]
        %v1410 = vld [vmem:[#allocation2 + $0x64] sm:$0xf]
        %v1411 = vld [vmem:[#allocation2 + $0x6c] sm:$0xf]
        %v1412 = vld [vmem:[#allocation2 + $0x70] sm:$0xf]
        %v1413 = vld [vmem:[#allocation2 + $0x78] sm:$0xf]
        %v1414 = vld [vmem:[#allocation2 + $0x7c] sm:$0xf]
        %v1415 = vld [vmem:[#allocation2 + $0x84] sm:$0xf]
        %v1416 = vld [vmem:[#allocation2 + $0x88] sm:$0xf]
        %v1417 = vld [vmem:[#allocation2 + $0x90] sm:$0xf]
        %v1418 = vld [vmem:[#allocation2 + $0x94] sm:$0xf]
        %v1419 = vld [vmem:[#allocation2 + $0x9c] sm:$0xf]
        %v1420 = vld [vmem:[#allocation2 + $0xa0] sm:$0xf]
        %v1421 = vld [vmem:[#allocation2 + $0xa8] sm:$0xf]
        %v1422 = vld [vmem:[#allocation2 + $0xac] sm:$0xf]
        %v1423 = vld [vmem:[#allocation2 + $0xb4] sm:$0xf]
        %v1424 = vld [vmem:[#allocation2 + $0xb8] sm:$0xf]
        %v1425 = vld [vmem:[#allocation8] sm:$0x3]
        %v1426 = vld [vmem:[#allocation2 + $0x8] sm:$0x1]
        %v1427 = vld [vmem:[#allocation2 + $0x14] sm:$0x1]
        %v1428 = vld [vmem:[#allocation2 + $0x20] sm:$0x1]
        %v1429 = vld [vmem:[#allocation2 + $0x2c] sm:$0x1]
        %v1430 = vld [vmem:[#allocation2 + $0x38] sm:$0x1]
        %v1431 = vld [vmem:[#allocation2 + $0x44] sm:$0x1]
        %v1432 = vld [vmem:[#allocation2 + $0x50] sm:$0x1]
        %v1433 = vld [vmem:[#allocation2 + $0x5c] sm:$0x1]
        %v1434 = vld [vmem:[#allocation2 + $0x68] sm:$0x1]
        %v1435 = vld [vmem:[#allocation2 + $0x74] sm:$0x1]
        %v1436 = vld [vmem:[#allocation2 + $0x80] sm:$0x1]
        %v1437 = vld [vmem:[#allocation2 + $0x8c] sm:$0x1]
        %v1438 = vld [vmem:[#allocation2 + $0x98] sm:$0x1]
        %v1439 = vld [vmem:[#allocation2 + $0xa4] sm:$0x1]
        %v1440 = vld [vmem:[#allocation2 + $0xb0] sm:$0x1]
        %v1441 = vld [vmem:[#allocation2 + $0xbc] sm:$0x1]
        %vm1442 = vsmask.f32 3328
        %vm1443 = vsmask.f32 7440
        %vm1444 = vmor %vm1442, %vm1443
        %v1446 = vshrl.u32 %v1393, 16
        %v1448 = vrot.slane %v1446, 4
        %v1449 = vshll.u32 %v1393, 16
        %v1451 = vrot.slane %v1449, 5
        %v1452 = vor.u32 %v1448, %v1451
        %v1453 = vrot.slane %v1452, 4
        %v1455 = vshll.u32 %v1394, 16
        %v1457 = vrot.slane %v1455, 5
        %v1458 = vsel %vm1444, %v1453, %v1457
        %v1459 = vshrl.u32 %v1394, 16
        %v1461 = vrot.slane %v1459, 4
        %v1462 = vor.u32 %v1461, %v1457
        %v1463 = vrot.slane %v1462, 4
        %v1465 = vshll.u32 %v1426, 16
        %v1467 = vrot.slane %v1465, 5
        %v1468 = vsel %vm1444, %v1463, %v1467
        %v1470 = vshrl.u32 %v1395, 16
        %v1472 = vrot.slane %v1470, 4
        %v1473 = vshll.u32 %v1395, 16
        %v1475 = vrot.slane %v1473, 5
        %v1476 = vor.u32 %v1472, %v1475
        %v1477 = vrot.slane %v1476, 4
        %v1479 = vshll.u32 %v1396, 16
        %v1481 = vrot.slane %v1479, 5
        %v1482 = vsel %vm1444, %v1477, %v1481
        %v1483 = vshrl.u32 %v1396, 16
        %v1485 = vrot.slane %v1483, 4
        %v1486 = vor.u32 %v1485, %v1481
        %v1487 = vrot.slane %v1486, 4
        %v1489 = vshll.u32 %v1427, 16
        %v1491 = vrot.slane %v1489, 5
        %v1492 = vsel %vm1444, %v1487, %v1491
        %v1494 = vshrl.u32 %v1397, 16
        %v1496 = vrot.slane %v1494, 4
        %v1497 = vshll.u32 %v1397, 16
        %v1499 = vrot.slane %v1497, 5
        %v1500 = vor.u32 %v1496, %v1499
        %v1501 = vrot.slane %v1500, 4
        %v1503 = vshll.u32 %v1398, 16
        %v1505 = vrot.slane %v1503, 5
        %v1506 = vsel %vm1444, %v1501, %v1505
        %v1507 = vshrl.u32 %v1398, 16
        %v1509 = vrot.slane %v1507, 4
        %v1510 = vor.u32 %v1509, %v1505
        %v1511 = vrot.slane %v1510, 4
        %v1513 = vshll.u32 %v1428, 16
        %v1515 = vrot.slane %v1513, 5
        %v1516 = vsel %vm1444, %v1511, %v1515
        %v1518 = vshrl.u32 %v1399, 16
        %v1520 = vrot.slane %v1518, 4
        %v1521 = vshll.u32 %v1399, 16
        %v1523 = vrot.slane %v1521, 5
        %v1524 = vor.u32 %v1520, %v1523
        %v1525 = vrot.slane %v1524, 4
        %v1527 = vshll.u32 %v1400, 16
        %v1529 = vrot.slane %v1527, 5
        %v1530 = vsel %vm1444, %v1525, %v1529
        %v1531 = vshrl.u32 %v1400, 16
        %v1533 = vrot.slane %v1531, 4
        %v1534 = vor.u32 %v1533, %v1529
        %v1535 = vrot.slane %v1534, 4
        %v1537 = vshll.u32 %v1429, 16
        %v1539 = vrot.slane %v1537, 5
        %v1540 = vsel %vm1444, %v1535, %v1539
        %v1542 = vshrl.u32 %v1401, 16
        %v1544 = vrot.slane %v1542, 4
        %v1545 = vshll.u32 %v1401, 16
        %v1547 = vrot.slane %v1545, 5
        %v1548 = vor.u32 %v1544, %v1547
        %v1549 = vrot.slane %v1548, 4
        %v1551 = vshll.u32 %v1402, 16
        %v1553 = vrot.slane %v1551, 5
        %v1554 = vsel %vm1444, %v1549, %v1553
        %v1555 = vshrl.u32 %v1402, 16
        %v1557 = vrot.slane %v1555, 4
        %v1558 = vor.u32 %v1557, %v1553
        %v1559 = vrot.slane %v1558, 4
        %v1561 = vshll.u32 %v1430, 16
        %v1563 = vrot.slane %v1561, 5
        %v1564 = vsel %vm1444, %v1559, %v1563
        %v1566 = vshrl.u32 %v1403, 16
        %v1568 = vrot.slane %v1566, 4
        %v1569 = vshll.u32 %v1403, 16
        %v1571 = vrot.slane %v1569, 5
        %v1572 = vor.u32 %v1568, %v1571
        %v1573 = vrot.slane %v1572, 4
        %v1575 = vshll.u32 %v1404, 16
        %v1577 = vrot.slane %v1575, 5
        %v1578 = vsel %vm1444, %v1573, %v1577
        %v1579 = vshrl.u32 %v1404, 16
        %v1581 = vrot.slane %v1579, 4
        %v1582 = vor.u32 %v1581, %v1577
        %v1583 = vrot.slane %v1582, 4
        %v1585 = vshll.u32 %v1431, 16
        %v1587 = vrot.slane %v1585, 5
        %v1588 = vsel %vm1444, %v1583, %v1587
        %v1590 = vshrl.u32 %v1405, 16
        %v1592 = vrot.slane %v1590, 4
        %v1593 = vshll.u32 %v1405, 16
        %v1595 = vrot.slane %v1593, 5
        %v1596 = vor.u32 %v1592, %v1595
        %v1597 = vrot.slane %v1596, 4
        %v1599 = vshll.u32 %v1406, 16
        %v1601 = vrot.slane %v1599, 5
        %v1602 = vsel %vm1444, %v1597, %v1601
        %v1603 = vshrl.u32 %v1406, 16
        %v1605 = vrot.slane %v1603, 4
        %v1606 = vor.u32 %v1605, %v1601
        %v1607 = vrot.slane %v1606, 4
        %v1609 = vshll.u32 %v1432, 16
        %v1611 = vrot.slane %v1609, 5
        %v1612 = vsel %vm1444, %v1607, %v1611
        %v1614 = vshrl.u32 %v1407, 16
        %v1616 = vrot.slane %v1614, 4
        %v1617 = vshll.u32 %v1407, 16
        %v1619 = vrot.slane %v1617, 5
        %v1620 = vor.u32 %v1616, %v1619
        %v1621 = vrot.slane %v1620, 4
        %v1623 = vshll.u32 %v1408, 16
        %v1625 = vrot.slane %v1623, 5
        %v1626 = vsel %vm1444, %v1621, %v1625
        %v1627 = vshrl.u32 %v1408, 16
        %v1629 = vrot.slane %v1627, 4
        %v1630 = vor.u32 %v1629, %v1625
        %v1631 = vrot.slane %v1630, 4
        %v1633 = vshll.u32 %v1433, 16
        %v1635 = vrot.slane %v1633, 5
        %v1636 = vsel %vm1444, %v1631, %v1635
        %v1638 = vshrl.u32 %v1409, 16
        %v1640 = vrot.slane %v1638, 4
        %v1641 = vshll.u32 %v1409, 16
        %v1643 = vrot.slane %v1641, 5
        %v1644 = vor.u32 %v1640, %v1643
        %v1645 = vrot.slane %v1644, 4
        %v1647 = vshll.u32 %v1410, 16
        %v1649 = vrot.slane %v1647, 5
        %v1650 = vsel %vm1444, %v1645, %v1649
        %v1651 = vshrl.u32 %v1410, 16
        %v1653 = vrot.slane %v1651, 4
        %v1654 = vor.u32 %v1653, %v1649
        %v1655 = vrot.slane %v1654, 4
        %v1657 = vshll.u32 %v1434, 16
        %v1659 = vrot.slane %v1657, 5
        %v1660 = vsel %vm1444, %v1655, %v1659
        %v1662 = vshrl.u32 %v1411, 16
        %v1664 = vrot.slane %v1662, 4
        %v1665 = vshll.u32 %v1411, 16
        %v1667 = vrot.slane %v1665, 5
        %v1668 = vor.u32 %v1664, %v1667
        %v1669 = vrot.slane %v1668, 4
        %v1671 = vshll.u32 %v1412, 16
        %v1673 = vrot.slane %v1671, 5
        %v1674 = vsel %vm1444, %v1669, %v1673
        %v1675 = vshrl.u32 %v1412, 16
        %v1677 = vrot.slane %v1675, 4
        %v1678 = vor.u32 %v1677, %v1673
        %v1679 = vrot.slane %v1678, 4
        %v1681 = vshll.u32 %v1435, 16
        %v1683 = vrot.slane %v1681, 5
        %v1684 = vsel %vm1444, %v1679, %v1683
        %v1686 = vshrl.u32 %v1413, 16
        %v1688 = vrot.slane %v1686, 4
        %v1689 = vshll.u32 %v1413, 16
        %v1691 = vrot.slane %v1689, 5
        %v1692 = vor.u32 %v1688, %v1691
        %v1693 = vrot.slane %v1692, 4
        %v1695 = vshll.u32 %v1414, 16
        %v1697 = vrot.slane %v1695, 5
        %v1698 = vsel %vm1444, %v1693, %v1697
        %v1699 = vshrl.u32 %v1414, 16
        %v1701 = vrot.slane %v1699, 4
        %v1702 = vor.u32 %v1701, %v1697
        %v1703 = vrot.slane %v1702, 4
        %v1705 = vshll.u32 %v1436, 16
        %v1707 = vrot.slane %v1705, 5
        %v1708 = vsel %vm1444, %v1703, %v1707
        %v1710 = vshrl.u32 %v1415, 16
        %v1712 = vrot.slane %v1710, 4
        %v1713 = vshll.u32 %v1415, 16
        %v1715 = vrot.slane %v1713, 5
        %v1716 = vor.u32 %v1712, %v1715
        %v1717 = vrot.slane %v1716, 4
        %v1719 = vshll.u32 %v1416, 16
        %v1721 = vrot.slane %v1719, 5
        %v1722 = vsel %vm1444, %v1717, %v1721
        %v1723 = vshrl.u32 %v1416, 16
        %v1725 = vrot.slane %v1723, 4
        %v1726 = vor.u32 %v1725, %v1721
        %v1727 = vrot.slane %v1726, 4
        %v1729 = vshll.u32 %v1437, 16
        %v1731 = vrot.slane %v1729, 5
        %v1732 = vsel %vm1444, %v1727, %v1731
        %v1734 = vshrl.u32 %v1417, 16
        %v1736 = vrot.slane %v1734, 4
        %v1737 = vshll.u32 %v1417, 16
        %v1739 = vrot.slane %v1737, 5
        %v1740 = vor.u32 %v1736, %v1739
        %v1741 = vrot.slane %v1740, 4
        %v1743 = vshll.u32 %v1418, 16
        %v1745 = vrot.slane %v1743, 5
        %v1746 = vsel %vm1444, %v1741, %v1745
        %v1747 = vshrl.u32 %v1418, 16
        %v1749 = vrot.slane %v1747, 4
        %v1750 = vor.u32 %v1749, %v1745
        %v1751 = vrot.slane %v1750, 4
        %v1753 = vshll.u32 %v1438, 16
        %v1755 = vrot.slane %v1753, 5
        %v1756 = vsel %vm1444, %v1751, %v1755
        %v1758 = vshrl.u32 %v1419, 16
        %v1760 = vrot.slane %v1758, 4
        %v1761 = vshll.u32 %v1419, 16
        %v1763 = vrot.slane %v1761, 5
        %v1764 = vor.u32 %v1760, %v1763
        %v1765 = vrot.slane %v1764, 4
        %v1767 = vshll.u32 %v1420, 16
        %v1769 = vrot.slane %v1767, 5
        %v1770 = vsel %vm1444, %v1765, %v1769
        %v1771 = vshrl.u32 %v1420, 16
        %v1773 = vrot.slane %v1771, 4
        %v1774 = vor.u32 %v1773, %v1769
        %v1775 = vrot.slane %v1774, 4
        %v1777 = vshll.u32 %v1439, 16
        %v1779 = vrot.slane %v1777, 5
        %v1780 = vsel %vm1444, %v1775, %v1779
        %v1782 = vshrl.u32 %v1421, 16
        %v1784 = vrot.slane %v1782, 4
        %v1785 = vshll.u32 %v1421, 16
        %v1787 = vrot.slane %v1785, 5
        %v1788 = vor.u32 %v1784, %v1787
        %v1789 = vrot.slane %v1788, 4
        %v1791 = vshll.u32 %v1422, 16
        %v1793 = vrot.slane %v1791, 5
        %v1794 = vsel %vm1444, %v1789, %v1793
        %v1795 = vshrl.u32 %v1422, 16
        %v1797 = vrot.slane %v1795, 4
        %v1798 = vor.u32 %v1797, %v1793
        %v1799 = vrot.slane %v1798, 4
        %v1801 = vshll.u32 %v1440, 16
        %v1803 = vrot.slane %v1801, 5
        %v1804 = vsel %vm1444, %v1799, %v1803
        %v1806 = vshrl.u32 %v1423, 16
        %v1808 = vrot.slane %v1806, 4
        %v1809 = vshll.u32 %v1423, 16
        %v1811 = vrot.slane %v1809, 5
        %v1812 = vor.u32 %v1808, %v1811
        %v1813 = vrot.slane %v1812, 4
        %v1815 = vshll.u32 %v1424, 16
        %v1817 = vrot.slane %v1815, 5
        %v1818 = vsel %vm1444, %v1813, %v1817
        %v1819 = vshrl.u32 %v1424, 16
        %v1821 = vrot.slane %v1819, 4
        %v1822 = vor.u32 %v1821, %v1817
        %v1823 = vrot.slane %v1822, 4
        %v1825 = vshll.u32 %v1441, 16
        %v1827 = vrot.slane %v1825, 5
        %v1828 = vsel %vm1444, %v1823, %v1827
        %s1829 = scalar_lea.vmem [#allocation8], 2
        %v1830 = vld [vmem:[%s1829] sm:$0x3]
        %v1831 = vunpack.c.l.b16 %v1458
        %v1832 = vunpack.c.l.b16 %v1468
        %v1833 = vunpack.c.l.b16 %v1482
        %v1834 = vunpack.c.l.b16 %v1492
        %v1835 = vunpack.c.l.b16 %v1506
        %v1836 = vunpack.c.l.b16 %v1516
        %v1837 = vunpack.c.l.b16 %v1530
        %v1838 = vunpack.c.l.b16 %v1540
        %v1839 = vunpack.c.l.b16 %v1554
        %v1840 = vunpack.c.l.b16 %v1564
        %v1841 = vunpack.c.l.b16 %v1578
        %v1842 = vunpack.c.l.b16 %v1588
        %v1843 = vunpack.c.l.b16 %v1602
        %v1844 = vunpack.c.l.b16 %v1612
        %v1845 = vunpack.c.l.b16 %v1626
        %v1846 = vunpack.c.l.b16 %v1636
        %v1847 = vunpack.c.l.b16 %v1650
        %v1848 = vunpack.c.l.b16 %v1660
        %v1849 = vunpack.c.l.b16 %v1674
        %v1850 = vunpack.c.l.b16 %v1684
        %v1851 = vunpack.c.l.b16 %v1698
        %v1852 = vunpack.c.l.b16 %v1708
        %v1853 = vunpack.c.l.b16 %v1722
        %v1854 = vunpack.c.l.b16 %v1732
        %v1855 = vunpack.c.l.b16 %v1746
        %v1856 = vunpack.c.l.b16 %v1756
        %v1857 = vunpack.c.l.b16 %v1770
        %v1858 = vunpack.c.l.b16 %v1780
        %v1859 = vunpack.c.l.b16 %v1794
        %v1860 = vunpack.c.l.b16 %v1804
        %v1861 = vunpack.c.l.b16 %v1818
        %v1862 = vunpack.c.l.b16 %v1828
        %v1863 = vpack.c.b16 %v1832, %v1831
        %v1864 = vpack.c.b16 %v1834, %v1833
        %v1865 = vpack.c.b16 %v1836, %v1835
        %v1866 = vpack.c.b16 %v1838, %v1837
        %v1867 = vpack.c.b16 %v1840, %v1839
        %v1868 = vpack.c.b16 %v1842, %v1841
        %v1869 = vpack.c.b16 %v1844, %v1843
        %v1870 = vpack.c.b16 %v1846, %v1845
        %v1871 = vpack.c.b16 %v1848, %v1847
        %v1872 = vpack.c.b16 %v1850, %v1849
        %v1873 = vpack.c.b16 %v1852, %v1851
        %v1874 = vpack.c.b16 %v1854, %v1853
        %v1875 = vpack.c.b16 %v1856, %v1855
        %v1876 = vpack.c.b16 %v1858, %v1857
        %v1877 = vpack.c.b16 %v1860, %v1859
        %v1878 = vpack.c.b16 %v1862, %v1861
        %vm1879 = vcmask 31744
        %v1881 = vsel %vm1879, %v1863, 0
        %v1884 = vsel %vm1879, %v1864, 0
        %v1887 = vsel %vm1879, %v1865, 0
        %v1890 = vsel %vm1879, %v1866, 0
        %v1893 = vsel %vm1879, %v1867, 0
        %v1896 = vsel %vm1879, %v1868, 0
        %v1899 = vsel %vm1879, %v1869, 0
        %v1902 = vsel %vm1879, %v1870, 0
        %v1905 = vsel %vm1879, %v1871, 0
        %v1908 = vsel %vm1879, %v1872, 0
        %v1911 = vsel %vm1879, %v1873, 0
        %v1914 = vsel %vm1879, %v1874, 0
        %v1917 = vsel %vm1879, %v1875, 0
        %v1920 = vsel %vm1879, %v1876, 0
        %v1923 = vsel %vm1879, %v1877, 0
        %v1926 = vsel %vm1879, %v1878, 0
        %vm1928 = vcmask 1041408
        %v1930 = vsel %vm1928, %v1830, 0
        %1932 = vmatprep.subr.bf16.mxu0 0
        %1933 = vmatpush1.bf16.msra.mxu0 %v1930
        %1934 = vmatprep.subr.bf16.mxu0 0
        %1935 = vmatpush1.bf16.msra.mxu0 0
        %1936 = vmatprep.subr.bf16.mxu0 0
        %1937 = vmatpush1.bf16.msra.mxu0 0
        %1938 = vmatprep.subr.bf16.mxu0 0
        %1939 = vmatpush1.bf16.msra.mxu0 0
        %1940 = vmatprep.subr.bf16.mxu0 0
        %1941 = vmatpush1.bf16.msra.mxu0 0
        %1942 = vmatprep.subr.bf16.mxu0 0
        %1943 = vmatpush1.bf16.msra.mxu0 0
        %1944 = vmatprep.subr.bf16.mxu0 0
        %1945 = vmatpush1.bf16.msra.mxu0 0
        %1946 = vmatprep.subr.bf16.mxu0 0
        %1947 = vmatpush1.bf16.msra.mxu0 0
        %1948 = vmatprep.subr.bf16.mxu0 0
        %1949 = vmatpush1.bf16.msra.mxu0 0
        %1950 = vmatprep.subr.bf16.mxu0 0
        %1951 = vmatpush1.bf16.msra.mxu0 0
        %1952 = vmatprep.subr.bf16.mxu0 0
        %1953 = vmatpush1.bf16.msra.mxu0 0
        %1954 = vmatprep.subr.bf16.mxu0 0
        %1955 = vmatpush1.bf16.msra.mxu0 0
        %1956 = vmatprep.subr.bf16.mxu0 0
        %1957 = vmatpush1.bf16.msra.mxu0 0
        %1958 = vmatprep.subr.bf16.mxu0 0
        %1959 = vmatpush1.bf16.msra.mxu0 0
        %1960 = vmatprep.subr.bf16.mxu0 0
        %1961 = vmatpush1.bf16.msra.mxu0 0
        %1962 = vmatprep.subr.bf16.mxu0 0
        %1963 = vmatpush1.bf16.msra.mxu0 0
        %1964 = vmatprep.mubr.bf16.mxu0 0
        %1965 = vmatmul.mubr.bf16.gmra.mrb[0].mxu0 %v1881
        %v1966 = vpop.f32.mrb[0].mxu0
        %v1967 = vadd.f32 0.0, %v1966
        %v1968 = vpop.f32.mrb[0].mxu0
        %v1969 = vpop.f32.mrb[0].mxu0
        %v1970 = vadd.f32 0.0, %v1969
        %v1971 = vpop.f32.mrb[0].mxu0
        %1972 = vmatprep.mubr.bf16.mxu0 0
        %1973 = vmatmul.mubr.bf16.gmra.mrb[0].mxu0 %v1884
        %v1974 = vpop.f32.mrb[0].mxu0
        %v1975 = vadd.f32 0.0, %v1974
        %v1976 = vpop.f32.mrb[0].mxu0
        %v1977 = vpop.f32.mrb[0].mxu0
        %v1978 = vadd.f32 0.0, %v1977
        %v1979 = vpop.f32.mrb[0].mxu0
        %1980 = vmatprep.mubr.bf16.mxu0 0
        %1981 = vmatmul.mubr.bf16.gmra.mrb[0].mxu0 %v1887
        %v1982 = vpop.f32.mrb[0].mxu0
        %v1983 = vadd.f32 0.0, %v1982
        %v1984 = vpop.f32.mrb[0].mxu0
        %v1985 = vpop.f32.mrb[0].mxu0
        %v1986 = vadd.f32 0.0, %v1985
        %v1987 = vpop.f32.mrb[0].mxu0
        %1988 = vmatprep.mubr.bf16.mxu0 0
        %1989 = vmatmul.mubr.bf16.gmra.mrb[0].mxu0 %v1890
        %v1990 = vpop.f32.mrb[0].mxu0
        %v1991 = vadd.f32 0.0, %v1990
        %v1992 = vpop.f32.mrb[0].mxu0
        %v1993 = vpop.f32.mrb[0].mxu0
        %v1994 = vadd.f32 0.0, %v1993
        %v1995 = vpop.f32.mrb[0].mxu0
        %1996 = vmatprep.mubr.bf16.mxu0 0
        %1997 = vmatmul.mubr.bf16.gmra.mrb[0].mxu0 %v1893
        %v1998 = vpop.f32.mrb[0].mxu0
        %v1999 = vadd.f32 0.0, %v1998
        %v2000 = vpop.f32.mrb[0].mxu0
        %v2001 = vpop.f32.mrb[0].mxu0
        %v2002 = vadd.f32 0.0, %v2001
        %v2003 = vpop.f32.mrb[0].mxu0
        %2004 = vmatprep.mubr.bf16.mxu0 0
        %2005 = vmatmul.mubr.bf16.gmra.mrb[0].mxu0 %v1896
        %v2006 = vpop.f32.mrb[0].mxu0
        %v2007 = vadd.f32 0.0, %v2006
        %v2008 = vpop.f32.mrb[0].mxu0
        %v2009 = vpop.f32.mrb[0].mxu0
        %v2010 = vadd.f32 0.0, %v2009
        %v2011 = vpop.f32.mrb[0].mxu0
        %2012 = vmatprep.mubr.bf16.mxu0 0
        %2013 = vmatmul.mubr.bf16.gmra.mrb[0].mxu0 %v1899
        %v2014 = vpop.f32.mrb[0].mxu0
        %v2015 = vadd.f32 0.0, %v2014
        %v2016 = vpop.f32.mrb[0].mxu0
        %v2017 = vpop.f32.mrb[0].mxu0
        %v2018 = vadd.f32 0.0, %v2017
        %v2019 = vpop.f32.mrb[0].mxu0
        %2020 = vmatprep.mubr.bf16.mxu0 0
        %2021 = vmatmul.mubr.bf16.gmra.mrb[0].mxu0 %v1902
        %v2022 = vpop.f32.mrb[0].mxu0
        %v2023 = vadd.f32 0.0, %v2022
        %v2024 = vpop.f32.mrb[0].mxu0
        %v2025 = vpop.f32.mrb[0].mxu0
        %v2026 = vadd.f32 0.0, %v2025
        %v2027 = vpop.f32.mrb[0].mxu0
        %2028 = vmatprep.mubr.bf16.mxu0 0
        %2029 = vmatmul.mubr.bf16.gmra.mrb[0].mxu0 %v1905
        %v2030 = vpop.f32.mrb[0].mxu0
        %v2031 = vadd.f32 0.0, %v2030
        %v2032 = vpop.f32.mrb[0].mxu0
        %v2033 = vpop.f32.mrb[0].mxu0
        %v2034 = vadd.f32 0.0, %v2033
        %v2035 = vpop.f32.mrb[0].mxu0
        %2036 = vmatprep.mubr.bf16.mxu0 0
        %2037 = vmatmul.mubr.bf16.gmra.mrb[0].mxu0 %v1908
        %v2038 = vpop.f32.mrb[0].mxu0
        %v2039 = vadd.f32 0.0, %v2038
        %v2040 = vpop.f32.mrb[0].mxu0
        %v2041 = vpop.f32.mrb[0].mxu0
        %v2042 = vadd.f32 0.0, %v2041
        %v2043 = vpop.f32.mrb[0].mxu0
        %2044 = vmatprep.mubr.bf16.mxu0 0
        %2045 = vmatmul.mubr.bf16.gmra.mrb[0].mxu0 %v1911
        %v2046 = vpop.f32.mrb[0].mxu0
        %v2047 = vadd.f32 0.0, %v2046
        %v2048 = vpop.f32.mrb[0].mxu0
        %v2049 = vpop.f32.mrb[0].mxu0
        %v2050 = vadd.f32 0.0, %v2049
        %v2051 = vpop.f32.mrb[0].mxu0
        %2052 = vmatprep.mubr.bf16.mxu0 0
        %2053 = vmatmul.mubr.bf16.gmra.mrb[0].mxu0 %v1914
        %v2054 = vpop.f32.mrb[0].mxu0
        %v2055 = vadd.f32 0.0, %v2054
        %v2056 = vpop.f32.mrb[0].mxu0
        %v2057 = vpop.f32.mrb[0].mxu0
        %v2058 = vadd.f32 0.0, %v2057
        %v2059 = vpop.f32.mrb[0].mxu0
        %2060 = vmatprep.mubr.bf16.mxu0 0
        %2061 = vmatmul.mubr.bf16.gmra.mrb[0].mxu0 %v1917
        %v2062 = vpop.f32.mrb[0].mxu0
        %v2063 = vadd.f32 0.0, %v2062
        %v2064 = vpop.f32.mrb[0].mxu0
        %v2065 = vpop.f32.mrb[0].mxu0
        %v2066 = vadd.f32 0.0, %v2065
        %v2067 = vpop.f32.mrb[0].mxu0
        %2068 = vmatprep.mubr.bf16.mxu0 0
        %2069 = vmatmul.mubr.bf16.gmra.mrb[0].mxu0 %v1920
        %v2070 = vpop.f32.mrb[0].mxu0
        %v2071 = vadd.f32 0.0, %v2070
        %v2072 = vpop.f32.mrb[0].mxu0
        %v2073 = vpop.f32.mrb[0].mxu0
        %v2074 = vadd.f32 0.0, %v2073
        %v2075 = vpop.f32.mrb[0].mxu0
        %2076 = vmatprep.mubr.bf16.mxu0 0
        %2077 = vmatmul.mubr.bf16.gmra.mrb[0].mxu0 %v1923
        %v2078 = vpop.f32.mrb[0].mxu0
        %v2079 = vadd.f32 0.0, %v2078
        %v2080 = vpop.f32.mrb[0].mxu0
        %v2081 = vpop.f32.mrb[0].mxu0
        %v2082 = vadd.f32 0.0, %v2081
        %v2083 = vpop.f32.mrb[0].mxu0
        %2084 = vmatprep.mubr.bf16.mxu0 0
        %2085 = vmatmul.mubr.bf16.gmra.mrb[0].mxu0 %v1926
        %v2086 = vpop.f32.mrb[0].mxu0
        %v2087 = vadd.f32 0.0, %v2086
        %v2088 = vpop.f32.mrb[0].mxu0
        %v2089 = vpop.f32.mrb[0].mxu0
        %v2090 = vadd.f32 0.0, %v2089
        %v2091 = vpop.f32.mrb[0].mxu0
        %2092 = vdwg.mxu0
        %v2125 = vunpack.c.l.b16 %v1393
        %v2126 = vunpack.c.l.b16 %v1394
        %v2127 = vunpack.c.l.b16 %v1395
        %v2128 = vunpack.c.l.b16 %v1396
        %v2129 = vunpack.c.l.b16 %v1397
        %v2130 = vunpack.c.l.b16 %v1398
        %v2131 = vunpack.c.l.b16 %v1399
        %v2132 = vunpack.c.l.b16 %v1400
        %v2133 = vunpack.c.l.b16 %v1401
        %v2134 = vunpack.c.l.b16 %v1402
        %v2135 = vunpack.c.l.b16 %v1403
        %v2136 = vunpack.c.l.b16 %v1404
        %v2137 = vunpack.c.l.b16 %v1405
        %v2138 = vunpack.c.l.b16 %v1406
        %v2139 = vunpack.c.l.b16 %v1407
        %v2140 = vunpack.c.l.b16 %v1408
        %v2141 = vunpack.c.l.b16 %v1409
        %v2142 = vunpack.c.l.b16 %v1410
        %v2143 = vunpack.c.l.b16 %v1411
        %v2144 = vunpack.c.l.b16 %v1412
        %v2145 = vunpack.c.l.b16 %v1413
        %v2146 = vunpack.c.l.b16 %v1414
        %v2147 = vunpack.c.l.b16 %v1415
        %v2148 = vunpack.c.l.b16 %v1416
        %v2149 = vunpack.c.l.b16 %v1417
        %v2150 = vunpack.c.l.b16 %v1418
        %v2151 = vunpack.c.l.b16 %v1419
        %v2152 = vunpack.c.l.b16 %v1420
        %v2153 = vunpack.c.l.b16 %v1421
        %v2154 = vunpack.c.l.b16 %v1422
        %v2155 = vunpack.c.l.b16 %v1423
        %v2156 = vunpack.c.l.b16 %v1424
        %v2157 = vpack.c.b16 %v2126, %v2125
        %v2158 = vpack.c.b16 %v2128, %v2127
        %v2159 = vpack.c.b16 %v2130, %v2129
        %v2160 = vpack.c.b16 %v2132, %v2131
        %v2161 = vpack.c.b16 %v2134, %v2133
        %v2162 = vpack.c.b16 %v2136, %v2135
        %v2163 = vpack.c.b16 %v2138, %v2137
        %v2164 = vpack.c.b16 %v2140, %v2139
        %v2165 = vpack.c.b16 %v2142, %v2141
        %v2166 = vpack.c.b16 %v2144, %v2143
        %v2167 = vpack.c.b16 %v2146, %v2145
        %v2168 = vpack.c.b16 %v2148, %v2147
        %v2169 = vpack.c.b16 %v2150, %v2149
        %v2170 = vpack.c.b16 %v2152, %v2151
        %v2171 = vpack.c.b16 %v2154, %v2153
        %v2172 = vpack.c.b16 %v2156, %v2155
        %v2174 = vsel %vm1879, %v2157, 0
        %v2177 = vsel %vm1879, %v2158, 0
        %v2180 = vsel %vm1879, %v2159, 0
        %v2183 = vsel %vm1879, %v2160, 0
        %v2186 = vsel %vm1879, %v2161, 0
        %v2189 = vsel %vm1879, %v2162, 0
        %v2192 = vsel %vm1879, %v2163, 0
        %v2195 = vsel %vm1879, %v2164, 0
        %v2198 = vsel %vm1879, %v2165, 0
        %v2201 = vsel %vm1879, %v2166, 0
        %v2204 = vsel %vm1879, %v2167, 0
        %v2207 = vsel %vm1879, %v2168, 0
        %v2210 = vsel %vm1879, %v2169, 0
        %v2213 = vsel %vm1879, %v2170, 0
        %v2216 = vsel %vm1879, %v2171, 0
        %v2219 = vsel %vm1879, %v2172, 0
        %v2222 = vsel %vm1928, %v1425, 0
        %2224 = vmatprep.subr.bf16.mxu0 0
        %2225 = vmatpush1.bf16.msra.mxu0 %v2222
        %2226 = vmatprep.subr.bf16.mxu0 0
        %2227 = vmatpush1.bf16.msra.mxu0 0
        %2228 = vmatprep.subr.bf16.mxu0 0
        %2229 = vmatpush1.bf16.msra.mxu0 0
        %2230 = vmatprep.subr.bf16.mxu0 0
        %2231 = vmatpush1.bf16.msra.mxu0 0
        %2232 = vmatprep.subr.bf16.mxu0 0
        %2233 = vmatpush1.bf16.msra.mxu0 0
        %2234 = vmatprep.subr.bf16.mxu0 0
        %2235 = vmatpush1.bf16.msra.mxu0 0
        %2236 = vmatprep.subr.bf16.mxu0 0
        %2237 = vmatpush1.bf16.msra.mxu0 0
        %2238 = vmatprep.subr.bf16.mxu0 0
        %2239 = vmatpush1.bf16.msra.mxu0 0
        %2240 = vmatprep.subr.bf16.mxu0 0
        %2241 = vmatpush1.bf16.msra.mxu0 0
        %2242 = vmatprep.subr.bf16.mxu0 0
        %2243 = vmatpush1.bf16.msra.mxu0 0
        %2244 = vmatprep.subr.bf16.mxu0 0
        %2245 = vmatpush1.bf16.msra.mxu0 0
        %2246 = vmatprep.subr.bf16.mxu0 0
        %2247 = vmatpush1.bf16.msra.mxu0 0
        %2248 = vmatprep.subr.bf16.mxu0 0
        %2249 = vmatpush1.bf16.msra.mxu0 0
        %2250 = vmatprep.subr.bf16.mxu0 0
        %2251 = vmatpush1.bf16.msra.mxu0 0
        %2252 = vmatprep.subr.bf16.mxu0 0
        %2253 = vmatpush1.bf16.msra.mxu0 0
        %2254 = vmatprep.subr.bf16.mxu0 0
        %2255 = vmatpush1.bf16.msra.mxu0 0
        %2256 = vmatprep.mubr.bf16.mxu0 0
        %2257 = vmatmul.mubr.bf16.gmra.mrb[0].mxu0 %v2174
        %v2258 = vpop.f32.mrb[0].mxu0
        %v2259 = vadd.f32 %v1967, %v2258
        %v2260 = vpop.f32.mrb[0].mxu0
        %v2261 = vpop.f32.mrb[0].mxu0
        %v2262 = vadd.f32 %v1970, %v2261
        %v2263 = vpop.f32.mrb[0].mxu0
        %2264 = vmatprep.mubr.bf16.mxu0 0
        %2265 = vmatmul.mubr.bf16.gmra.mrb[0].mxu0 %v2177
        %v2266 = vpop.f32.mrb[0].mxu0
        %v2267 = vadd.f32 %v1975, %v2266
        %v2268 = vpop.f32.mrb[0].mxu0
        %v2269 = vpop.f32.mrb[0].mxu0
        %v2270 = vadd.f32 %v1978, %v2269
        %v2271 = vpop.f32.mrb[0].mxu0
        %2272 = vmatprep.mubr.bf16.mxu0 0
        %2273 = vmatmul.mubr.bf16.gmra.mrb[0].mxu0 %v2180
        %v2274 = vpop.f32.mrb[0].mxu0
        %v2275 = vadd.f32 %v1983, %v2274
        %v2276 = vpop.f32.mrb[0].mxu0
        %v2277 = vpop.f32.mrb[0].mxu0
        %v2278 = vadd.f32 %v1986, %v2277
        %v2279 = vpop.f32.mrb[0].mxu0
        %2280 = vmatprep.mubr.bf16.mxu0 0
        %2281 = vmatmul.mubr.bf16.gmra.mrb[0].mxu0 %v2183
        %v2282 = vpop.f32.mrb[0].mxu0
        %v2283 = vadd.f32 %v1991, %v2282
        %v2284 = vpop.f32.mrb[0].mxu0
        %v2285 = vpop.f32.mrb[0].mxu0
        %v2286 = vadd.f32 %v1994, %v2285
        %v2287 = vpop.f32.mrb[0].mxu0
        %2288 = vmatprep.mubr.bf16.mxu0 0
        %2289 = vmatmul.mubr.bf16.gmra.mrb[0].mxu0 %v2186
        %v2290 = vpop.f32.mrb[0].mxu0
        %v2291 = vadd.f32 %v1999, %v2290
        %v2292 = vpop.f32.mrb[0].mxu0
        %v2293 = vpop.f32.mrb[0].mxu0
        %v2294 = vadd.f32 %v2002, %v2293
        %v2295 = vpop.f32.mrb[0].mxu0
        %2296 = vmatprep.mubr.bf16.mxu0 0
        %2297 = vmatmul.mubr.bf16.gmra.mrb[0].mxu0 %v2189
        %v2298 = vpop.f32.mrb[0].mxu0
        %v2299 = vadd.f32 %v2007, %v2298
        %v2300 = vpop.f32.mrb[0].mxu0
        %v2301 = vpop.f32.mrb[0].mxu0
        %v2302 = vadd.f32 %v2010, %v2301
        %v2303 = vpop.f32.mrb[0].mxu0
        %2304 = vmatprep.mubr.bf16.mxu0 0
        %2305 = vmatmul.mubr.bf16.gmra.mrb[0].mxu0 %v2192
        %v2306 = vpop.f32.mrb[0].mxu0
        %v2307 = vadd.f32 %v2015, %v2306
        %v2308 = vpop.f32.mrb[0].mxu0
        %v2309 = vpop.f32.mrb[0].mxu0
        %v2310 = vadd.f32 %v2018, %v2309
        %v2311 = vpop.f32.mrb[0].mxu0
        %2312 = vmatprep.mubr.bf16.mxu0 0
        %2313 = vmatmul.mubr.bf16.gmra.mrb[0].mxu0 %v2195
        %v2314 = vpop.f32.mrb[0].mxu0
        %v2315 = vadd.f32 %v2023, %v2314
        %v2316 = vpop.f32.mrb[0].mxu0
        %v2317 = vpop.f32.mrb[0].mxu0
        %v2318 = vadd.f32 %v2026, %v2317
        %v2319 = vpop.f32.mrb[0].mxu0
        %2320 = vmatprep.mubr.bf16.mxu0 0
        %2321 = vmatmul.mubr.bf16.gmra.mrb[0].mxu0 %v2198
        %v2322 = vpop.f32.mrb[0].mxu0
        %v2323 = vadd.f32 %v2031, %v2322
        %v2324 = vpop.f32.mrb[0].mxu0
        %v2325 = vpop.f32.mrb[0].mxu0
        %v2326 = vadd.f32 %v2034, %v2325
        %v2327 = vpop.f32.mrb[0].mxu0
        %2328 = vmatprep.mubr.bf16.mxu0 0
        %2329 = vmatmul.mubr.bf16.gmra.mrb[0].mxu0 %v2201
        %v2330 = vpop.f32.mrb[0].mxu0
        %v2331 = vadd.f32 %v2039, %v2330
        %v2332 = vpop.f32.mrb[0].mxu0
        %v2333 = vpop.f32.mrb[0].mxu0
        %v2334 = vadd.f32 %v2042, %v2333
        %v2335 = vpop.f32.mrb[0].mxu0
        %2336 = vmatprep.mubr.bf16.mxu0 0
        %2337 = vmatmul.mubr.bf16.gmra.mrb[0].mxu0 %v2204
        %v2338 = vpop.f32.mrb[0].mxu0
        %v2339 = vadd.f32 %v2047, %v2338
        %v2340 = vpop.f32.mrb[0].mxu0
        %v2341 = vpop.f32.mrb[0].mxu0
        %v2342 = vadd.f32 %v2050, %v2341
        %v2343 = vpop.f32.mrb[0].mxu0
        %2344 = vmatprep.mubr.bf16.mxu0 0
        %2345 = vmatmul.mubr.bf16.gmra.mrb[0].mxu0 %v2207
        %v2346 = vpop.f32.mrb[0].mxu0
        %v2347 = vadd.f32 %v2055, %v2346
        %v2348 = vpop.f32.mrb[0].mxu0
        %v2349 = vpop.f32.mrb[0].mxu0
        %v2350 = vadd.f32 %v2058, %v2349
        %v2351 = vpop.f32.mrb[0].mxu0
        %2352 = vmatprep.mubr.bf16.mxu0 0
        %2353 = vmatmul.mubr.bf16.gmra.mrb[0].mxu0 %v2210
        %v2354 = vpop.f32.mrb[0].mxu0
        %v2355 = vadd.f32 %v2063, %v2354
        %v2356 = vpop.f32.mrb[0].mxu0
        %v2357 = vpop.f32.mrb[0].mxu0
        %v2358 = vadd.f32 %v2066, %v2357
        %v2359 = vpop.f32.mrb[0].mxu0
        %2360 = vmatprep.mubr.bf16.mxu0 0
        %2361 = vmatmul.mubr.bf16.gmra.mrb[0].mxu0 %v2213
        %v2362 = vpop.f32.mrb[0].mxu0
        %v2363 = vadd.f32 %v2071, %v2362
        %v2364 = vpop.f32.mrb[0].mxu0
        %v2365 = vpop.f32.mrb[0].mxu0
        %v2366 = vadd.f32 %v2074, %v2365
        %v2367 = vpop.f32.mrb[0].mxu0
        %2368 = vmatprep.mubr.bf16.mxu0 0
        %2369 = vmatmul.mubr.bf16.gmra.mrb[0].mxu0 %v2216
        %v2370 = vpop.f32.mrb[0].mxu0
        %v2371 = vadd.f32 %v2079, %v2370
        %v2372 = vpop.f32.mrb[0].mxu0
        %v2373 = vpop.f32.mrb[0].mxu0
        %v2374 = vadd.f32 %v2082, %v2373
        %v2375 = vpop.f32.mrb[0].mxu0
        %2376 = vmatprep.mubr.bf16.mxu0 0
        %2377 = vmatmul.mubr.bf16.gmra.mrb[0].mxu0 %v2219
        %v2378 = vpop.f32.mrb[0].mxu0
        %v2379 = vadd.f32 %v2087, %v2378
        %v2380 = vpop.f32.mrb[0].mxu0
        %v2381 = vpop.f32.mrb[0].mxu0
        %v2382 = vadd.f32 %v2090, %v2381
        %v2383 = vpop.f32.mrb[0].mxu0
        %2384 = vdwg.mxu0
        %v2385 = vld [vmem:[#allocation2] sm:$0xe]
        %v2386 = vld [vmem:[#allocation2 + $0xc] sm:$0xe]
        %v2387 = vld [vmem:[#allocation2 + $0x18] sm:$0xe]
        %v2388 = vld [vmem:[#allocation2 + $0x24] sm:$0xe]
        %v2389 = vld [vmem:[#allocation2 + $0x30] sm:$0xe]
        %v2390 = vld [vmem:[#allocation2 + $0x3c] sm:$0xe]
        %v2391 = vld [vmem:[#allocation2 + $0x48] sm:$0xe]
        %v2392 = vld [vmem:[#allocation2 + $0x54] sm:$0xe]
        %v2393 = vld [vmem:[#allocation2 + $0x60] sm:$0xe]
        %v2394 = vld [vmem:[#allocation2 + $0x6c] sm:$0xe]
        %v2395 = vld [vmem:[#allocation2 + $0x78] sm:$0xe]
        %v2396 = vld [vmem:[#allocation2 + $0x84] sm:$0xe]
        %v2397 = vld [vmem:[#allocation2 + $0x90] sm:$0xe]
        %v2398 = vld [vmem:[#allocation2 + $0x9c] sm:$0xe]
        %v2399 = vld [vmem:[#allocation2 + $0xa8] sm:$0xe]
        %v2400 = vld [vmem:[#allocation2 + $0xb4] sm:$0xe]
        %vm2433 = vcmask 1042432
        %vm2434 = vcmask 1046532
        %vm2435 = vmor %vm2433, %vm2434
        %v2436 = vrot.slane %v2385, 5
        %v2437 = vrot.slane %v2436, 4
        %v2438 = vrot.slane %v1394, 5
        %v2439 = vsel %vm2435, %v2437, %v2438
        %v2440 = vrot.slane %v2438, 4
        %v2441 = vrot.slane %v1426, 5
        %v2442 = vsel %vm2435, %v2440, %v2441
        %v2443 = vrot.slane %v2386, 5
        %v2444 = vrot.slane %v2443, 4
        %v2445 = vrot.slane %v1396, 5
        %v2446 = vsel %vm2435, %v2444, %v2445
        %v2447 = vrot.slane %v2445, 4
        %v2448 = vrot.slane %v1427, 5
        %v2449 = vsel %vm2435, %v2447, %v2448
        %v2450 = vrot.slane %v2387, 5
        %v2451 = vrot.slane %v2450, 4
        %v2452 = vrot.slane %v1398, 5
        %v2453 = vsel %vm2435, %v2451, %v2452
        %v2454 = vrot.slane %v2452, 4
        %v2455 = vrot.slane %v1428, 5
        %v2456 = vsel %vm2435, %v2454, %v2455
        %v2457 = vrot.slane %v2388, 5
        %v2458 = vrot.slane %v2457, 4
        %v2459 = vrot.slane %v1400, 5
        %v2460 = vsel %vm2435, %v2458, %v2459
        %v2461 = vrot.slane %v2459, 4
        %v2462 = vrot.slane %v1429, 5
        %v2463 = vsel %vm2435, %v2461, %v2462
        %v2464 = vrot.slane %v2389, 5
        %v2465 = vrot.slane %v2464, 4
        %v2466 = vrot.slane %v1402, 5
        %v2467 = vsel %vm2435, %v2465, %v2466
        %v2468 = vrot.slane %v2466, 4
        %v2469 = vrot.slane %v1430, 5
        %v2470 = vsel %vm2435, %v2468, %v2469
        %v2471 = vrot.slane %v2390, 5
        %v2472 = vrot.slane %v2471, 4
        %v2473 = vrot.slane %v1404, 5
        %v2474 = vsel %vm2435, %v2472, %v2473
        %v2475 = vrot.slane %v2473, 4
        %v2476 = vrot.slane %v1431, 5
        %v2477 = vsel %vm2435, %v2475, %v2476
        %v2478 = vrot.slane %v2391, 5
        %v2479 = vrot.slane %v2478, 4
        %v2480 = vrot.slane %v1406, 5
        %v2481 = vsel %vm2435, %v2479, %v2480
        %v2482 = vrot.slane %v2480, 4
        %v2483 = vrot.slane %v1432, 5
        %v2484 = vsel %vm2435, %v2482, %v2483
        %v2485 = vrot.slane %v2392, 5
        %v2486 = vrot.slane %v2485, 4
        %v2487 = vrot.slane %v1408, 5
        %v2488 = vsel %vm2435, %v2486, %v2487
        %v2489 = vrot.slane %v2487, 4
        %v2490 = vrot.slane %v1433, 5
        %v2491 = vsel %vm2435, %v2489, %v2490
        %v2492 = vrot.slane %v2393, 5
        %v2493 = vrot.slane %v2492, 4
        %v2494 = vrot.slane %v1410, 5
        %v2495 = vsel %vm2435, %v2493, %v2494
        %v2496 = vrot.slane %v2494, 4
        %v2497 = vrot.slane %v1434, 5
        %v2498 = vsel %vm2435, %v2496, %v2497
        %v2499 = vrot.slane %v2394, 5
        %v2500 = vrot.slane %v2499, 4
        %v2501 = vrot.slane %v1412, 5
        %v2502 = vsel %vm2435, %v2500, %v2501
        %v2503 = vrot.slane %v2501, 4
        %v2504 = vrot.slane %v1435, 5
        %v2505 = vsel %vm2435, %v2503, %v2504
        %v2506 = vrot.slane %v2395, 5
        %v2507 = vrot.slane %v2506, 4
        %v2508 = vrot.slane %v1414, 5
        %v2509 = vsel %vm2435, %v2507, %v2508
        %v2510 = vrot.slane %v2508, 4
        %v2511 = vrot.slane %v1436, 5
        %v2512 = vsel %vm2435, %v2510, %v2511
        %v2513 = vrot.slane %v2396, 5
        %v2514 = vrot.slane %v2513, 4
        %v2515 = vrot.slane %v1416, 5
        %v2516 = vsel %vm2435, %v2514, %v2515
        %v2517 = vrot.slane %v2515, 4
        %v2518 = vrot.slane %v1437, 5
        %v2519 = vsel %vm2435, %v2517, %v2518
        %v2520 = vrot.slane %v2397, 5
        %v2521 = vrot.slane %v2520, 4
        %v2522 = vrot.slane %v1418, 5
        %v2523 = vsel %vm2435, %v2521, %v2522
        %v2524 = vrot.slane %v2522, 4
        %v2525 = vrot.slane %v1438, 5
        %v2526 = vsel %vm2435, %v2524, %v2525
        %v2527 = vrot.slane %v2398, 5
        %v2528 = vrot.slane %v2527, 4
        %v2529 = vrot.slane %v1420, 5
        %v2530 = vsel %vm2435, %v2528, %v2529
        %v2531 = vrot.slane %v2529, 4
        %v2532 = vrot.slane %v1439, 5
        %v2533 = vsel %vm2435, %v2531, %v2532
        %v2534 = vrot.slane %v2399, 5
        %v2535 = vrot.slane %v2534, 4
        %v2536 = vrot.slane %v1422, 5
        %v2537 = vsel %vm2435, %v2535, %v2536
        %v2538 = vrot.slane %v2536, 4
        %v2539 = vrot.slane %v1440, 5
        %v2540 = vsel %vm2435, %v2538, %v2539
        %v2541 = vrot.slane %v2400, 5
        %v2542 = vrot.slane %v2541, 4
        %v2543 = vrot.slane %v1424, 5
        %v2544 = vsel %vm2435, %v2542, %v2543
        %v2545 = vrot.slane %v2543, 4
        %v2546 = vrot.slane %v1441, 5
        %v2547 = vsel %vm2435, %v2545, %v2546
        %s2548 = scalar_lea.vmem [#allocation8], 4
        %v2549 = vld [vmem:[%s2548] sm:$0x3]
        %v2550 = vunpack.c.l.b16 %v2439
        %v2551 = vunpack.c.l.b16 %v2442
        %v2552 = vunpack.c.l.b16 %v2446
        %v2553 = vunpack.c.l.b16 %v2449
        %v2554 = vunpack.c.l.b16 %v2453
        %v2555 = vunpack.c.l.b16 %v2456
        %v2556 = vunpack.c.l.b16 %v2460
        %v2557 = vunpack.c.l.b16 %v2463
        %v2558 = vunpack.c.l.b16 %v2467
        %v2559 = vunpack.c.l.b16 %v2470
        %v2560 = vunpack.c.l.b16 %v2474
        %v2561 = vunpack.c.l.b16 %v2477
        %v2562 = vunpack.c.l.b16 %v2481
        %v2563 = vunpack.c.l.b16 %v2484
        %v2564 = vunpack.c.l.b16 %v2488
        %v2565 = vunpack.c.l.b16 %v2491
        %v2566 = vunpack.c.l.b16 %v2495
        %v2567 = vunpack.c.l.b16 %v2498
        %v2568 = vunpack.c.l.b16 %v2502
        %v2569 = vunpack.c.l.b16 %v2505
        %v2570 = vunpack.c.l.b16 %v2509
        %v2571 = vunpack.c.l.b16 %v2512
        %v2572 = vunpack.c.l.b16 %v2516
        %v2573 = vunpack.c.l.b16 %v2519
        %v2574 = vunpack.c.l.b16 %v2523
        %v2575 = vunpack.c.l.b16 %v2526
        %v2576 = vunpack.c.l.b16 %v2530
        %v2577 = vunpack.c.l.b16 %v2533
        %v2578 = vunpack.c.l.b16 %v2537
        %v2579 = vunpack.c.l.b16 %v2540
        %v2580 = vunpack.c.l.b16 %v2544
        %v2581 = vunpack.c.l.b16 %v2547
        %v2582 = vpack.c.b16 %v2551, %v2550
        %v2583 = vpack.c.b16 %v2553, %v2552
        %v2584 = vpack.c.b16 %v2555, %v2554
        %v2585 = vpack.c.b16 %v2557, %v2556
        %v2586 = vpack.c.b16 %v2559, %v2558
        %v2587 = vpack.c.b16 %v2561, %v2560
        %v2588 = vpack.c.b16 %v2563, %v2562
        %v2589 = vpack.c.b16 %v2565, %v2564
        %v2590 = vpack.c.b16 %v2567, %v2566
        %v2591 = vpack.c.b16 %v2569, %v2568
        %v2592 = vpack.c.b16 %v2571, %v2570
        %v2593 = vpack.c.b16 %v2573, %v2572
        %v2594 = vpack.c.b16 %v2575, %v2574
        %v2595 = vpack.c.b16 %v2577, %v2576
        %v2596 = vpack.c.b16 %v2579, %v2578
        %v2597 = vpack.c.b16 %v2581, %v2580
        %v2599 = vsel %vm1879, %v2582, 0
        %v2602 = vsel %vm1879, %v2583, 0
        %v2605 = vsel %vm1879, %v2584, 0
        %v2608 = vsel %vm1879, %v2585, 0
        %v2611 = vsel %vm1879, %v2586, 0
        %v2614 = vsel %vm1879, %v2587, 0
        %v2617 = vsel %vm1879, %v2588, 0
        %v2620 = vsel %vm1879, %v2589, 0
        %v2623 = vsel %vm1879, %v2590, 0
        %v2626 = vsel %vm1879, %v2591, 0
        %v2629 = vsel %vm1879, %v2592, 0
        %v2632 = vsel %vm1879, %v2593, 0
        %v2635 = vsel %vm1879, %v2594, 0
        %v2638 = vsel %vm1879, %v2595, 0
        %v2641 = vsel %vm1879, %v2596, 0
        %v2644 = vsel %vm1879, %v2597, 0
        %v2647 = vsel %vm1928, %v2549, 0
        %2649 = vmatprep.subr.bf16.mxu0 0
        %2650 = vmatpush1.bf16.msra.mxu0 %v2647
        %2651 = vmatprep.subr.bf16.mxu0 0
        %2652 = vmatpush1.bf16.msra.mxu0 0
        %2653 = vmatprep.subr.bf16.mxu0 0
        %2654 = vmatpush1.bf16.msra.mxu0 0
        %2655 = vmatprep.subr.bf16.mxu0 0
        %2656 = vmatpush1.bf16.msra.mxu0 0
        %2657 = vmatprep.subr.bf16.mxu0 0
        %2658 = vmatpush1.bf16.msra.mxu0 0
        %2659 = vmatprep.subr.bf16.mxu0 0
        %2660 = vmatpush1.bf16.msra.mxu0 0
        %2661 = vmatprep.subr.bf16.mxu0 0
        %2662 = vmatpush1.bf16.msra.mxu0 0
        %2663 = vmatprep.subr.bf16.mxu0 0
        %2664 = vmatpush1.bf16.msra.mxu0 0
        %2665 = vmatprep.subr.bf16.mxu0 0
        %2666 = vmatpush1.bf16.msra.mxu0 0
        %2667 = vmatprep.subr.bf16.mxu0 0
        %2668 = vmatpush1.bf16.msra.mxu0 0
        %2669 = vmatprep.subr.bf16.mxu0 0
        %2670 = vmatpush1.bf16.msra.mxu0 0
        %2671 = vmatprep.subr.bf16.mxu0 0
        %2672 = vmatpush1.bf16.msra.mxu0 0
        %2673 = vmatprep.subr.bf16.mxu0 0
        %2674 = vmatpush1.bf16.msra.mxu0 0
        %2675 = vmatprep.subr.bf16.mxu0 0
        %2676 = vmatpush1.bf16.msra.mxu0 0
        %2677 = vmatprep.subr.bf16.mxu0 0
        %2678 = vmatpush1.bf16.msra.mxu0 0
        %2679 = vmatprep.subr.bf16.mxu0 0
        %2680 = vmatpush1.bf16.msra.mxu0 0
        %2681 = vmatprep.mubr.bf16.mxu0 0
        %2682 = vmatmul.mubr.bf16.gmra.mrb[0].mxu0 %v2599
        %v2683 = vpop.f32.mrb[0].mxu0
        %v2684 = vadd.f32 0.0, %v2683
        %v2685 = vpop.f32.mrb[0].mxu0
        %v2686 = vpop.f32.mrb[0].mxu0
        %v2687 = vadd.f32 0.0, %v2686
        %v2688 = vpop.f32.mrb[0].mxu0
        %2689 = vmatprep.mubr.bf16.mxu0 0
        %2690 = vmatmul.mubr.bf16.gmra.mrb[0].mxu0 %v2602
        %v2691 = vpop.f32.mrb[0].mxu0
        %v2692 = vadd.f32 0.0, %v2691
        %v2693 = vpop.f32.mrb[0].mxu0
        %v2694 = vpop.f32.mrb[0].mxu0
        %v2695 = vadd.f32 0.0, %v2694
        %v2696 = vpop.f32.mrb[0].mxu0
        %2697 = vmatprep.mubr.bf16.mxu0 0
        %2698 = vmatmul.mubr.bf16.gmra.mrb[0].mxu0 %v2605
        %v2699 = vpop.f32.mrb[0].mxu0
        %v2700 = vadd.f32 0.0, %v2699
        %v2701 = vpop.f32.mrb[0].mxu0
        %v2702 = vpop.f32.mrb[0].mxu0
        %v2703 = vadd.f32 0.0, %v2702
        %v2704 = vpop.f32.mrb[0].mxu0
        %2705 = vmatprep.mubr.bf16.mxu0 0
        %2706 = vmatmul.mubr.bf16.gmra.mrb[0].mxu0 %v2608
        %v2707 = vpop.f32.mrb[0].mxu0
        %v2708 = vadd.f32 0.0, %v2707
        %v2709 = vpop.f32.mrb[0].mxu0
        %v2710 = vpop.f32.mrb[0].mxu0
        %v2711 = vadd.f32 0.0, %v2710
        %v2712 = vpop.f32.mrb[0].mxu0
        %2713 = vmatprep.mubr.bf16.mxu0 0
        %2714 = vmatmul.mubr.bf16.gmra.mrb[0].mxu0 %v2611
        %v2715 = vpop.f32.mrb[0].mxu0
        %v2716 = vadd.f32 0.0, %v2715
        %v2717 = vpop.f32.mrb[0].mxu0
        %v2718 = vpop.f32.mrb[0].mxu0
        %v2719 = vadd.f32 0.0, %v2718
        %v2720 = vpop.f32.mrb[0].mxu0
        %2721 = vmatprep.mubr.bf16.mxu0 0
        %2722 = vmatmul.mubr.bf16.gmra.mrb[0].mxu0 %v2614
        %v2723 = vpop.f32.mrb[0].mxu0
        %v2724 = vadd.f32 0.0, %v2723
        %v2725 = vpop.f32.mrb[0].mxu0
        %v2726 = vpop.f32.mrb[0].mxu0
        %v2727 = vadd.f32 0.0, %v2726
        %v2728 = vpop.f32.mrb[0].mxu0
        %2729 = vmatprep.mubr.bf16.mxu0 0
        %2730 = vmatmul.mubr.bf16.gmra.mrb[0].mxu0 %v2617
        %v2731 = vpop.f32.mrb[0].mxu0
        %v2732 = vadd.f32 0.0, %v2731
        %v2733 = vpop.f32.mrb[0].mxu0
        %v2734 = vpop.f32.mrb[0].mxu0
        %v2735 = vadd.f32 0.0, %v2734
        %v2736 = vpop.f32.mrb[0].mxu0
        %2737 = vmatprep.mubr.bf16.mxu0 0
        %2738 = vmatmul.mubr.bf16.gmra.mrb[0].mxu0 %v2620
        %v2739 = vpop.f32.mrb[0].mxu0
        %v2740 = vadd.f32 0.0, %v2739
        %v2741 = vpop.f32.mrb[0].mxu0
        %v2742 = vpop.f32.mrb[0].mxu0
        %v2743 = vadd.f32 0.0, %v2742
        %v2744 = vpop.f32.mrb[0].mxu0
        %2745 = vmatprep.mubr.bf16.mxu0 0
        %2746 = vmatmul.mubr.bf16.gmra.mrb[0].mxu0 %v2623
        %v2747 = vpop.f32.mrb[0].mxu0
        %v2748 = vadd.f32 0.0, %v2747
        %v2749 = vpop.f32.mrb[0].mxu0
        %v2750 = vpop.f32.mrb[0].mxu0
        %v2751 = vadd.f32 0.0, %v2750
        %v2752 = vpop.f32.mrb[0].mxu0
        %2753 = vmatprep.mubr.bf16.mxu0 0
        %2754 = vmatmul.mubr.bf16.gmra.mrb[0].mxu0 %v2626
        %v2755 = vpop.f32.mrb[0].mxu0
        %v2756 = vadd.f32 0.0, %v2755
        %v2757 = vpop.f32.mrb[0].mxu0
        %v2758 = vpop.f32.mrb[0].mxu0
        %v2759 = vadd.f32 0.0, %v2758
        %v2760 = vpop.f32.mrb[0].mxu0
        %2761 = vmatprep.mubr.bf16.mxu0 0
        %2762 = vmatmul.mubr.bf16.gmra.mrb[0].mxu0 %v2629
        %v2763 = vpop.f32.mrb[0].mxu0
        %v2764 = vadd.f32 0.0, %v2763
        %v2765 = vpop.f32.mrb[0].mxu0
        %v2766 = vpop.f32.mrb[0].mxu0
        %v2767 = vadd.f32 0.0, %v2766
        %v2768 = vpop.f32.mrb[0].mxu0
        %2769 = vmatprep.mubr.bf16.mxu0 0
        %2770 = vmatmul.mubr.bf16.gmra.mrb[0].mxu0 %v2632
        %v2771 = vpop.f32.mrb[0].mxu0
        %v2772 = vadd.f32 0.0, %v2771
        %v2773 = vpop.f32.mrb[0].mxu0
        %v2774 = vpop.f32.mrb[0].mxu0
        %v2775 = vadd.f32 0.0, %v2774
        %v2776 = vpop.f32.mrb[0].mxu0
        %2777 = vmatprep.mubr.bf16.mxu0 0
        %2778 = vmatmul.mubr.bf16.gmra.mrb[0].mxu0 %v2635
        %v2779 = vpop.f32.mrb[0].mxu0
        %v2780 = vadd.f32 0.0, %v2779
        %v2781 = vpop.f32.mrb[0].mxu0
        %v2782 = vpop.f32.mrb[0].mxu0
        %v2783 = vadd.f32 0.0, %v2782
        %v2784 = vpop.f32.mrb[0].mxu0
        %2785 = vmatprep.mubr.bf16.mxu0 0
        %2786 = vmatmul.mubr.bf16.gmra.mrb[0].mxu0 %v2638
        %v2787 = vpop.f32.mrb[0].mxu0
        %v2788 = vadd.f32 0.0, %v2787
        %v2789 = vpop.f32.mrb[0].mxu0
        %v2790 = vpop.f32.mrb[0].mxu0
        %v2791 = vadd.f32 0.0, %v2790
        %v2792 = vpop.f32.mrb[0].mxu0
        %2793 = vmatprep.mubr.bf16.mxu0 0
        %2794 = vmatmul.mubr.bf16.gmra.mrb[0].mxu0 %v2641
        %v2795 = vpop.f32.mrb[0].mxu0
        %v2796 = vadd.f32 0.0, %v2795
        %v2797 = vpop.f32.mrb[0].mxu0
        %v2798 = vpop.f32.mrb[0].mxu0
        %v2799 = vadd.f32 0.0, %v2798
        %v2800 = vpop.f32.mrb[0].mxu0
        %2801 = vmatprep.mubr.bf16.mxu0 0
        %2802 = vmatmul.mubr.bf16.gmra.mrb[0].mxu0 %v2644
        %v2803 = vpop.f32.mrb[0].mxu0
        %v2804 = vadd.f32 0.0, %v2803
        %v2805 = vpop.f32.mrb[0].mxu0
        %v2806 = vpop.f32.mrb[0].mxu0
        %v2807 = vadd.f32 0.0, %v2806
        %v2808 = vpop.f32.mrb[0].mxu0
        %2809 = vdwg.mxu0
        %v2810 = vadd.f32 %v2259, %v2684
        %v2811 = vadd.f32 %v2262, %v2687
        %v2812 = vadd.f32 %v2267, %v2692
        %v2813 = vadd.f32 %v2270, %v2695
        %v2814 = vadd.f32 %v2275, %v2700
        %v2815 = vadd.f32 %v2278, %v2703
        %v2816 = vadd.f32 %v2283, %v2708
        %v2817 = vadd.f32 %v2286, %v2711
        %v2818 = vadd.f32 %v2291, %v2716
        %v2819 = vadd.f32 %v2294, %v2719
        %v2820 = vadd.f32 %v2299, %v2724
        %v2821 = vadd.f32 %v2302, %v2727
        %v2822 = vadd.f32 %v2307, %v2732
        %v2823 = vadd.f32 %v2310, %v2735
        %v2824 = vadd.f32 %v2315, %v2740
        %v2825 = vadd.f32 %v2318, %v2743
        %v2826 = vadd.f32 %v2323, %v2748
        %v2827 = vadd.f32 %v2326, %v2751
        %v2828 = vadd.f32 %v2331, %v2756
        %v2829 = vadd.f32 %v2334, %v2759
        %v2830 = vadd.f32 %v2339, %v2764
        %v2831 = vadd.f32 %v2342, %v2767
        %v2832 = vadd.f32 %v2347, %v2772
        %v2833 = vadd.f32 %v2350, %v2775
        %v2834 = vadd.f32 %v2355, %v2780
        %v2835 = vadd.f32 %v2358, %v2783
        %v2836 = vadd.f32 %v2363, %v2788
        %v2837 = vadd.f32 %v2366, %v2791
        %v2838 = vadd.f32 %v2371, %v2796
        %v2839 = vadd.f32 %v2374, %v2799
        %v2840 = vadd.f32 %v2379, %v2804
        %v2841 = vadd.f32 %v2382, %v2807
        %v2842 = vld [vmem:[%s1278] sm:$0xf]
        %v2843 = vld [vmem:[%s1278 + $0x4] sm:$0xf]
        %v2844 = vld [vmem:[%s1278 + $0xc] sm:$0xf]
        %v2845 = vld [vmem:[%s1278 + $0x10] sm:$0xf]
        %v2846 = vld [vmem:[%s1278 + $0x18] sm:$0xf]
        %v2847 = vld [vmem:[%s1278 + $0x1c] sm:$0xf]
        %v2848 = vld [vmem:[%s1278 + $0x24] sm:$0xf]
        %v2849 = vld [vmem:[%s1278 + $0x28] sm:$0xf]
        %v2850 = vld [vmem:[%s1278 + $0x30] sm:$0xf]
        %v2851 = vld [vmem:[%s1278 + $0x34] sm:$0xf]
        %v2852 = vld [vmem:[%s1278 + $0x3c] sm:$0xf]
        %v2853 = vld [vmem:[%s1278 + $0x40] sm:$0xf]
        %v2854 = vld [vmem:[%s1278 + $0x48] sm:$0xf]
        %v2855 = vld [vmem:[%s1278 + $0x4c] sm:$0xf]
        %v2856 = vld [vmem:[%s1278 + $0x54] sm:$0xf]
        %v2857 = vld [vmem:[%s1278 + $0x58] sm:$0xf]
        %v2858 = vld [vmem:[%s1278 + $0x60] sm:$0xf]
        %v2859 = vld [vmem:[%s1278 + $0x64] sm:$0xf]
        %v2860 = vld [vmem:[%s1278 + $0x6c] sm:$0xf]
        %v2861 = vld [vmem:[%s1278 + $0x70] sm:$0xf]
        %v2862 = vld [vmem:[%s1278 + $0x78] sm:$0xf]
        %v2863 = vld [vmem:[%s1278 + $0x7c] sm:$0xf]
        %v2864 = vld [vmem:[%s1278 + $0x84] sm:$0xf]
        %v2865 = vld [vmem:[%s1278 + $0x88] sm:$0xf]
        %v2866 = vld [vmem:[%s1278 + $0x90] sm:$0xf]
        %v2867 = vld [vmem:[%s1278 + $0x94] sm:$0xf]
        %v2868 = vld [vmem:[%s1278 + $0x9c] sm:$0xf]
        %v2869 = vld [vmem:[%s1278 + $0xa0] sm:$0xf]
        %v2870 = vld [vmem:[%s1278 + $0xa8] sm:$0xf]
        %v2871 = vld [vmem:[%s1278 + $0xac] sm:$0xf]
        %v2872 = vld [vmem:[%s1278 + $0xb4] sm:$0xf]
        %v2873 = vld [vmem:[%s1278 + $0xb8] sm:$0xf]
        %s2874 = scalar_lea.vmem [#allocation8], 6
        %v2875 = vld [vmem:[%s2874] sm:$0x3]
        %v2908 = vunpack.c.l.b16 %v2842
        %v2909 = vunpack.c.l.b16 %v2843
        %v2910 = vunpack.c.l.b16 %v2844
        %v2911 = vunpack.c.l.b16 %v2845
        %v2912 = vunpack.c.l.b16 %v2846
        %v2913 = vunpack.c.l.b16 %v2847
        %v2914 = vunpack.c.l.b16 %v2848
        %v2915 = vunpack.c.l.b16 %v2849
        %v2916 = vunpack.c.l.b16 %v2850
        %v2917 = vunpack.c.l.b16 %v2851
        %v2918 = vunpack.c.l.b16 %v2852
        %v2919 = vunpack.c.l.b16 %v2853
        %v2920 = vunpack.c.l.b16 %v2854
        %v2921 = vunpack.c.l.b16 %v2855
        %v2922 = vunpack.c.l.b16 %v2856
        %v2923 = vunpack.c.l.b16 %v2857
        %v2924 = vunpack.c.l.b16 %v2858
        %v2925 = vunpack.c.l.b16 %v2859
        %v2926 = vunpack.c.l.b16 %v2860
        %v2927 = vunpack.c.l.b16 %v2861
        %v2928 = vunpack.c.l.b16 %v2862
        %v2929 = vunpack.c.l.b16 %v2863
        %v2930 = vunpack.c.l.b16 %v2864
        %v2931 = vunpack.c.l.b16 %v2865
        %v2932 = vunpack.c.l.b16 %v2866
        %v2933 = vunpack.c.l.b16 %v2867
        %v2934 = vunpack.c.l.b16 %v2868
        %v2935 = vunpack.c.l.b16 %v2869
        %v2936 = vunpack.c.l.b16 %v2870
        %v2937 = vunpack.c.l.b16 %v2871
        %v2938 = vunpack.c.l.b16 %v2872
        %v2939 = vunpack.c.l.b16 %v2873
        %v2940 = vpack.c.b16 %v2909, %v2908
        %v2941 = vpack.c.b16 %v2911, %v2910
        %v2942 = vpack.c.b16 %v2913, %v2912
        %v2943 = vpack.c.b16 %v2915, %v2914
        %v2944 = vpack.c.b16 %v2917, %v2916
        %v2945 = vpack.c.b16 %v2919, %v2918
        %v2946 = vpack.c.b16 %v2921, %v2920
        %v2947 = vpack.c.b16 %v2923, %v2922
        %v2948 = vpack.c.b16 %v2925, %v2924
        %v2949 = vpack.c.b16 %v2927, %v2926
        %v2950 = vpack.c.b16 %v2929, %v2928
        %v2951 = vpack.c.b16 %v2931, %v2930
        %v2952 = vpack.c.b16 %v2933, %v2932
        %v2953 = vpack.c.b16 %v2935, %v2934
        %v2954 = vpack.c.b16 %v2937, %v2936
        %v2955 = vpack.c.b16 %v2939, %v2938
        %v2957 = vsel %vm1879, %v2940, 0
        %v2960 = vsel %vm1879, %v2941, 0
        %v2963 = vsel %vm1879, %v2942, 0
        %v2966 = vsel %vm1879, %v2943, 0
        %v2969 = vsel %vm1879, %v2944, 0
        %v2972 = vsel %vm1879, %v2945, 0
        %v2975 = vsel %vm1879, %v2946, 0
        %v2978 = vsel %vm1879, %v2947, 0
        %v2981 = vsel %vm1879, %v2948, 0
        %v2984 = vsel %vm1879, %v2949, 0
        %v2987 = vsel %vm1879, %v2950, 0
        %v2990 = vsel %vm1879, %v2951, 0
        %v2993 = vsel %vm1879, %v2952, 0
        %v2996 = vsel %vm1879, %v2953, 0
        %v2999 = vsel %vm1879, %v2954, 0
        %v3002 = vsel %vm1879, %v2955, 0
        %v3005 = vsel %vm1928, %v2875, 0
        %3007 = vmatprep.subr.bf16.mxu0 0
        %3008 = vmatpush1.bf16.msra.mxu0 %v3005
        %3009 = vmatprep.subr.bf16.mxu0 0
        %3010 = vmatpush1.bf16.msra.mxu0 0
        %3011 = vmatprep.subr.bf16.mxu0 0
        %3012 = vmatpush1.bf16.msra.mxu0 0
        %3013 = vmatprep.subr.bf16.mxu0 0
        %3014 = vmatpush1.bf16.msra.mxu0 0
        %3015 = vmatprep.subr.bf16.mxu0 0
        %3016 = vmatpush1.bf16.msra.mxu0 0
        %3017 = vmatprep.subr.bf16.mxu0 0
        %3018 = vmatpush1.bf16.msra.mxu0 0
        %3019 = vmatprep.subr.bf16.mxu0 0
        %3020 = vmatpush1.bf16.msra.mxu0 0
        %3021 = vmatprep.subr.bf16.mxu0 0
        %3022 = vmatpush1.bf16.msra.mxu0 0
        %3023 = vmatprep.subr.bf16.mxu0 0
        %3024 = vmatpush1.bf16.msra.mxu0 0
        %3025 = vmatprep.subr.bf16.mxu0 0
        %3026 = vmatpush1.bf16.msra.mxu0 0
        %3027 = vmatprep.subr.bf16.mxu0 0
        %3028 = vmatpush1.bf16.msra.mxu0 0
        %3029 = vmatprep.subr.bf16.mxu0 0
        %3030 = vmatpush1.bf16.msra.mxu0 0
        %3031 = vmatprep.subr.bf16.mxu0 0
        %3032 = vmatpush1.bf16.msra.mxu0 0
        %3033 = vmatprep.subr.bf16.mxu0 0
        %3034 = vmatpush1.bf16.msra.mxu0 0
        %3035 = vmatprep.subr.bf16.mxu0 0
        %3036 = vmatpush1.bf16.msra.mxu0 0
        %3037 = vmatprep.subr.bf16.mxu0 0
        %3038 = vmatpush1.bf16.msra.mxu0 0
        %3039 = vmatprep.mubr.bf16.mxu0 0
        %3040 = vmatmul.mubr.bf16.gmra.mrb[0].mxu0 %v2957
        %v3041 = vpop.f32.mrb[0].mxu0
        %v3042 = vadd.f32 0.0, %v3041
        %v3043 = vpop.f32.mrb[0].mxu0
        %v3044 = vpop.f32.mrb[0].mxu0
        %v3045 = vadd.f32 0.0, %v3044
        %v3046 = vpop.f32.mrb[0].mxu0
        %3047 = vmatprep.mubr.bf16.mxu0 0
        %3048 = vmatmul.mubr.bf16.gmra.mrb[0].mxu0 %v2960
        %v3049 = vpop.f32.mrb[0].mxu0
        %v3050 = vadd.f32 0.0, %v3049
        %v3051 = vpop.f32.mrb[0].mxu0
        %v3052 = vpop.f32.mrb[0].mxu0
        %v3053 = vadd.f32 0.0, %v3052
        %v3054 = vpop.f32.mrb[0].mxu0
        %3055 = vmatprep.mubr.bf16.mxu0 0
        %3056 = vmatmul.mubr.bf16.gmra.mrb[0].mxu0 %v2963
        %v3057 = vpop.f32.mrb[0].mxu0
        %v3058 = vadd.f32 0.0, %v3057
        %v3059 = vpop.f32.mrb[0].mxu0
        %v3060 = vpop.f32.mrb[0].mxu0
        %v3061 = vadd.f32 0.0, %v3060
        %v3062 = vpop.f32.mrb[0].mxu0
        %3063 = vmatprep.mubr.bf16.mxu0 0
        %3064 = vmatmul.mubr.bf16.gmra.mrb[0].mxu0 %v2966
        %v3065 = vpop.f32.mrb[0].mxu0
        %v3066 = vadd.f32 0.0, %v3065
        %v3067 = vpop.f32.mrb[0].mxu0
        %v3068 = vpop.f32.mrb[0].mxu0
        %v3069 = vadd.f32 0.0, %v3068
        %v3070 = vpop.f32.mrb[0].mxu0
        %3071 = vmatprep.mubr.bf16.mxu0 0
        %3072 = vmatmul.mubr.bf16.gmra.mrb[0].mxu0 %v2969
        %v3073 = vpop.f32.mrb[0].mxu0
        %v3074 = vadd.f32 0.0, %v3073
        %v3075 = vpop.f32.mrb[0].mxu0
        %v3076 = vpop.f32.mrb[0].mxu0
        %v3077 = vadd.f32 0.0, %v3076
        %v3078 = vpop.f32.mrb[0].mxu0
        %3079 = vmatprep.mubr.bf16.mxu0 0
        %3080 = vmatmul.mubr.bf16.gmra.mrb[0].mxu0 %v2972
        %v3081 = vpop.f32.mrb[0].mxu0
        %v3082 = vadd.f32 0.0, %v3081
        %v3083 = vpop.f32.mrb[0].mxu0
        %v3084 = vpop.f32.mrb[0].mxu0
        %v3085 = vadd.f32 0.0, %v3084
        %v3086 = vpop.f32.mrb[0].mxu0
        %3087 = vmatprep.mubr.bf16.mxu0 0
        %3088 = vmatmul.mubr.bf16.gmra.mrb[0].mxu0 %v2975
        %v3089 = vpop.f32.mrb[0].mxu0
        %v3090 = vadd.f32 0.0, %v3089
        %v3091 = vpop.f32.mrb[0].mxu0
        %v3092 = vpop.f32.mrb[0].mxu0
        %v3093 = vadd.f32 0.0, %v3092
        %v3094 = vpop.f32.mrb[0].mxu0
        %3095 = vmatprep.mubr.bf16.mxu0 0
        %3096 = vmatmul.mubr.bf16.gmra.mrb[0].mxu0 %v2978
        %v3097 = vpop.f32.mrb[0].mxu0
        %v3098 = vadd.f32 0.0, %v3097
        %v3099 = vpop.f32.mrb[0].mxu0
        %v3100 = vpop.f32.mrb[0].mxu0
        %v3101 = vadd.f32 0.0, %v3100
        %v3102 = vpop.f32.mrb[0].mxu0
        %3103 = vmatprep.mubr.bf16.mxu0 0
        %3104 = vmatmul.mubr.bf16.gmra.mrb[0].mxu0 %v2981
        %v3105 = vpop.f32.mrb[0].mxu0
        %v3106 = vadd.f32 0.0, %v3105
        %v3107 = vpop.f32.mrb[0].mxu0
        %v3108 = vpop.f32.mrb[0].mxu0
        %v3109 = vadd.f32 0.0, %v3108
        %v3110 = vpop.f32.mrb[0].mxu0
        %3111 = vmatprep.mubr.bf16.mxu0 0
        %3112 = vmatmul.mubr.bf16.gmra.mrb[0].mxu0 %v2984
        %v3113 = vpop.f32.mrb[0].mxu0
        %v3114 = vadd.f32 0.0, %v3113
        %v3115 = vpop.f32.mrb[0].mxu0
        %v3116 = vpop.f32.mrb[0].mxu0
        %v3117 = vadd.f32 0.0, %v3116
        %v3118 = vpop.f32.mrb[0].mxu0
        %3119 = vmatprep.mubr.bf16.mxu0 0
        %3120 = vmatmul.mubr.bf16.gmra.mrb[0].mxu0 %v2987
        %v3121 = vpop.f32.mrb[0].mxu0
        %v3122 = vadd.f32 0.0, %v3121
        %v3123 = vpop.f32.mrb[0].mxu0
        %v3124 = vpop.f32.mrb[0].mxu0
        %v3125 = vadd.f32 0.0, %v3124
        %v3126 = vpop.f32.mrb[0].mxu0
        %3127 = vmatprep.mubr.bf16.mxu0 0
        %3128 = vmatmul.mubr.bf16.gmra.mrb[0].mxu0 %v2990
        %v3129 = vpop.f32.mrb[0].mxu0
        %v3130 = vadd.f32 0.0, %v3129
        %v3131 = vpop.f32.mrb[0].mxu0
        %v3132 = vpop.f32.mrb[0].mxu0
        %v3133 = vadd.f32 0.0, %v3132
        %v3134 = vpop.f32.mrb[0].mxu0
        %3135 = vmatprep.mubr.bf16.mxu0 0
        %3136 = vmatmul.mubr.bf16.gmra.mrb[0].mxu0 %v2993
        %v3137 = vpop.f32.mrb[0].mxu0
        %v3138 = vadd.f32 0.0, %v3137
        %v3139 = vpop.f32.mrb[0].mxu0
        %v3140 = vpop.f32.mrb[0].mxu0
        %v3141 = vadd.f32 0.0, %v3140
        %v3142 = vpop.f32.mrb[0].mxu0
        %3143 = vmatprep.mubr.bf16.mxu0 0
        %3144 = vmatmul.mubr.bf16.gmra.mrb[0].mxu0 %v2996
        %v3145 = vpop.f32.mrb[0].mxu0
        %v3146 = vadd.f32 0.0, %v3145
        %v3147 = vpop.f32.mrb[0].mxu0
        %v3148 = vpop.f32.mrb[0].mxu0
        %v3149 = vadd.f32 0.0, %v3148
        %v3150 = vpop.f32.mrb[0].mxu0
        %3151 = vmatprep.mubr.bf16.mxu0 0
        %3152 = vmatmul.mubr.bf16.gmra.mrb[0].mxu0 %v2999
        %v3153 = vpop.f32.mrb[0].mxu0
        %v3154 = vadd.f32 0.0, %v3153
        %v3155 = vpop.f32.mrb[0].mxu0
        %v3156 = vpop.f32.mrb[0].mxu0
        %v3157 = vadd.f32 0.0, %v3156
        %v3158 = vpop.f32.mrb[0].mxu0
        %3159 = vmatprep.mubr.bf16.mxu0 0
        %3160 = vmatmul.mubr.bf16.gmra.mrb[0].mxu0 %v3002
        %v3161 = vpop.f32.mrb[0].mxu0
        %v3162 = vadd.f32 0.0, %v3161
        %v3163 = vpop.f32.mrb[0].mxu0
        %v3164 = vpop.f32.mrb[0].mxu0
        %v3165 = vadd.f32 0.0, %v3164
        %v3166 = vpop.f32.mrb[0].mxu0
        %3167 = vdwg.mxu0
        %v3168 = vadd.f32 %v2810, %v3042
        %v3169 = vadd.f32 %v2811, %v3045
        %v3170 = vadd.f32 %v2812, %v3050
        %v3171 = vadd.f32 %v2813, %v3053
        %v3172 = vadd.f32 %v2814, %v3058
        %v3173 = vadd.f32 %v2815, %v3061
        %v3174 = vadd.f32 %v2816, %v3066
        %v3175 = vadd.f32 %v2817, %v3069
        %v3176 = vadd.f32 %v2818, %v3074
        %v3177 = vadd.f32 %v2819, %v3077
        %v3178 = vadd.f32 %v2820, %v3082
        %v3179 = vadd.f32 %v2821, %v3085
        %v3180 = vadd.f32 %v2822, %v3090
        %v3181 = vadd.f32 %v2823, %v3093
        %v3182 = vadd.f32 %v2824, %v3098
        %v3183 = vadd.f32 %v2825, %v3101
        %v3184 = vadd.f32 %v2826, %v3106
        %v3185 = vadd.f32 %v2827, %v3109
        %v3186 = vadd.f32 %v2828, %v3114
        %v3187 = vadd.f32 %v2829, %v3117
        %v3188 = vadd.f32 %v2830, %v3122
        %v3189 = vadd.f32 %v2831, %v3125
        %v3190 = vadd.f32 %v2832, %v3130
        %v3191 = vadd.f32 %v2833, %v3133
        %v3192 = vadd.f32 %v2834, %v3138
        %v3193 = vadd.f32 %v2835, %v3141
        %v3194 = vadd.f32 %v2836, %v3146
        %v3195 = vadd.f32 %v2837, %v3149
        %v3196 = vadd.f32 %v2838, %v3154
        %v3197 = vadd.f32 %v2839, %v3157
        %v3198 = vadd.f32 %v2840, %v3162
        %v3199 = vadd.f32 %v2841, %v3165
        %v3200 = vld [vmem:[%s1278] sm:$0xf]
        %v3201 = vld [vmem:[%s1278 + $0x4] sm:$0xf]
        %v3202 = vld [vmem:[%s1278 + $0x8] sm:$0x1]
        %v3203 = vld [vmem:[%s1278 + $0xc] sm:$0xf]
        %v3204 = vld [vmem:[%s1278 + $0x10] sm:$0xf]
        %v3205 = vld [vmem:[%s1278 + $0x14] sm:$0x1]
        %v3206 = vld [vmem:[%s1278 + $0x18] sm:$0xf]
        %v3207 = vld [vmem:[%s1278 + $0x1c] sm:$0xf]
        %v3208 = vld [vmem:[%s1278 + $0x20] sm:$0x1]
        %v3209 = vld [vmem:[%s1278 + $0x24] sm:$0xf]
        %v3210 = vld [vmem:[%s1278 + $0x28] sm:$0xf]
        %v3211 = vld [vmem:[%s1278 + $0x2c] sm:$0x1]
        %v3212 = vld [vmem:[%s1278 + $0x30] sm:$0xf]
        %v3213 = vld [vmem:[%s1278 + $0x34] sm:$0xf]
        %v3214 = vld [vmem:[%s1278 + $0x38] sm:$0x1]
        %v3215 = vld [vmem:[%s1278 + $0x3c] sm:$0xf]
        %v3216 = vld [vmem:[%s1278 + $0x40] sm:$0xf]
        %v3217 = vld [vmem:[%s1278 + $0x44] sm:$0x1]
        %v3218 = vld [vmem:[%s1278 + $0x48] sm:$0xf]
        %v3219 = vld [vmem:[%s1278 + $0x4c] sm:$0xf]
        %v3220 = vld [vmem:[%s1278 + $0x50] sm:$0x1]
        %v3221 = vld [vmem:[%s1278 + $0x54] sm:$0xf]
        %v3222 = vld [vmem:[%s1278 + $0x58] sm:$0xf]
        %v3223 = vld [vmem:[%s1278 + $0x5c] sm:$0x1]
        %v3224 = vld [vmem:[%s1278 + $0x60] sm:$0xf]
        %v3225 = vld [vmem:[%s1278 + $0x64] sm:$0xf]
        %v3226 = vld [vmem:[%s1278 + $0x68] sm:$0x1]
        %v3227 = vld [vmem:[%s1278 + $0x6c] sm:$0xf]
        %v3228 = vld [vmem:[%s1278 + $0x70] sm:$0xf]
        %v3229 = vld [vmem:[%s1278 + $0x74] sm:$0x1]
        %v3230 = vld [vmem:[%s1278 + $0x78] sm:$0xf]
        %v3231 = vld [vmem:[%s1278 + $0x7c] sm:$0xf]
        %v3232 = vld [vmem:[%s1278 + $0x80] sm:$0x1]
        %v3233 = vld [vmem:[%s1278 + $0x84] sm:$0xf]
        %v3234 = vld [vmem:[%s1278 + $0x88] sm:$0xf]
        %v3235 = vld [vmem:[%s1278 + $0x8c] sm:$0x1]
        %v3236 = vld [vmem:[%s1278 + $0x90] sm:$0xf]
        %v3237 = vld [vmem:[%s1278 + $0x94] sm:$0xf]
        %v3238 = vld [vmem:[%s1278 + $0x98] sm:$0x1]
        %v3239 = vld [vmem:[%s1278 + $0x9c] sm:$0xf]
        %v3240 = vld [vmem:[%s1278 + $0xa0] sm:$0xf]
        %v3241 = vld [vmem:[%s1278 + $0xa4] sm:$0x1]
        %v3242 = vld [vmem:[%s1278 + $0xa8] sm:$0xf]
        %v3243 = vld [vmem:[%s1278 + $0xac] sm:$0xf]
        %v3244 = vld [vmem:[%s1278 + $0xb0] sm:$0x1]
        %v3245 = vld [vmem:[%s1278 + $0xb4] sm:$0xf]
        %v3246 = vld [vmem:[%s1278 + $0xb8] sm:$0xf]
        %v3247 = vld [vmem:[%s1278 + $0xbc] sm:$0x1]
        %v3249 = vshrl.u32 %v3200, 16
        %v3251 = vrot.slane %v3249, 4
        %v3252 = vshll.u32 %v3200, 16
        %v3254 = vrot.slane %v3252, 5
        %v3255 = vor.u32 %v3251, %v3254
        %v3256 = vrot.slane %v3255, 4
        %v3258 = vshll.u32 %v3201, 16
        %v3260 = vrot.slane %v3258, 5
        %v3261 = vsel %vm1444, %v3256, %v3260
        %v3262 = vshrl.u32 %v3201, 16
        %v3264 = vrot.slane %v3262, 4
        %v3265 = vor.u32 %v3264, %v3260
        %v3266 = vrot.slane %v3265, 4
        %v3268 = vshll.u32 %v3202, 16
        %v3270 = vrot.slane %v3268, 5
        %v3271 = vsel %vm1444, %v3266, %v3270
        %v3273 = vshrl.u32 %v3203, 16
        %v3275 = vrot.slane %v3273, 4
        %v3276 = vshll.u32 %v3203, 16
        %v3278 = vrot.slane %v3276, 5
        %v3279 = vor.u32 %v3275, %v3278
        %v3280 = vrot.slane %v3279, 4
        %v3282 = vshll.u32 %v3204, 16
        %v3284 = vrot.slane %v3282, 5
        %v3285 = vsel %vm1444, %v3280, %v3284
        %v3286 = vshrl.u32 %v3204, 16
        %v3288 = vrot.slane %v3286, 4
        %v3289 = vor.u32 %v3288, %v3284
        %v3290 = vrot.slane %v3289, 4
        %v3292 = vshll.u32 %v3205, 16
        %v3294 = vrot.slane %v3292, 5
        %v3295 = vsel %vm1444, %v3290, %v3294
        %v3297 = vshrl.u32 %v3206, 16
        %v3299 = vrot.slane %v3297, 4
        %v3300 = vshll.u32 %v3206, 16
        %v3302 = vrot.slane %v3300, 5
        %v3303 = vor.u32 %v3299, %v3302
        %v3304 = vrot.slane %v3303, 4
        %v3306 = vshll.u32 %v3207, 16
        %v3308 = vrot.slane %v3306, 5
        %v3309 = vsel %vm1444, %v3304, %v3308
        %v3310 = vshrl.u32 %v3207, 16
        %v3312 = vrot.slane %v3310, 4
        %v3313 = vor.u32 %v3312, %v3308
        %v3314 = vrot.slane %v3313, 4
        %v3316 = vshll.u32 %v3208, 16
        %v3318 = vrot.slane %v3316, 5
        %v3319 = vsel %vm1444, %v3314, %v3318
        %v3321 = vshrl.u32 %v3209, 16
        %v3323 = vrot.slane %v3321, 4
        %v3324 = vshll.u32 %v3209, 16
        %v3326 = vrot.slane %v3324, 5
        %v3327 = vor.u32 %v3323, %v3326
        %v3328 = vrot.slane %v3327, 4
        %v3330 = vshll.u32 %v3210, 16
        %v3332 = vrot.slane %v3330, 5
        %v3333 = vsel %vm1444, %v3328, %v3332
        %v3334 = vshrl.u32 %v3210, 16
        %v3336 = vrot.slane %v3334, 4
        %v3337 = vor.u32 %v3336, %v3332
        %v3338 = vrot.slane %v3337, 4
        %v3340 = vshll.u32 %v3211, 16
        %v3342 = vrot.slane %v3340, 5
        %v3343 = vsel %vm1444, %v3338, %v3342
        %v3345 = vshrl.u32 %v3212, 16
        %v3347 = vrot.slane %v3345, 4
        %v3348 = vshll.u32 %v3212, 16
        %v3350 = vrot.slane %v3348, 5
        %v3351 = vor.u32 %v3347, %v3350
        %v3352 = vrot.slane %v3351, 4
        %v3354 = vshll.u32 %v3213, 16
        %v3356 = vrot.slane %v3354, 5
        %v3357 = vsel %vm1444, %v3352, %v3356
        %v3358 = vshrl.u32 %v3213, 16
        %v3360 = vrot.slane %v3358, 4
        %v3361 = vor.u32 %v3360, %v3356
        %v3362 = vrot.slane %v3361, 4
        %v3364 = vshll.u32 %v3214, 16
        %v3366 = vrot.slane %v3364, 5
        %v3367 = vsel %vm1444, %v3362, %v3366
        %v3369 = vshrl.u32 %v3215, 16
        %v3371 = vrot.slane %v3369, 4
        %v3372 = vshll.u32 %v3215, 16
        %v3374 = vrot.slane %v3372, 5
        %v3375 = vor.u32 %v3371, %v3374
        %v3376 = vrot.slane %v3375, 4
        %v3378 = vshll.u32 %v3216, 16
        %v3380 = vrot.slane %v3378, 5
        %v3381 = vsel %vm1444, %v3376, %v3380
        %v3382 = vshrl.u32 %v3216, 16
        %v3384 = vrot.slane %v3382, 4
        %v3385 = vor.u32 %v3384, %v3380
        %v3386 = vrot.slane %v3385, 4
        %v3388 = vshll.u32 %v3217, 16
        %v3390 = vrot.slane %v3388, 5
        %v3391 = vsel %vm1444, %v3386, %v3390
        %v3393 = vshrl.u32 %v3218, 16
        %v3395 = vrot.slane %v3393, 4
        %v3396 = vshll.u32 %v3218, 16
        %v3398 = vrot.slane %v3396, 5
        %v3399 = vor.u32 %v3395, %v3398
        %v3400 = vrot.slane %v3399, 4
        %v3402 = vshll.u32 %v3219, 16
        %v3404 = vrot.slane %v3402, 5
        %v3405 = vsel %vm1444, %v3400, %v3404
        %v3406 = vshrl.u32 %v3219, 16
        %v3408 = vrot.slane %v3406, 4
        %v3409 = vor.u32 %v3408, %v3404
        %v3410 = vrot.slane %v3409, 4
        %v3412 = vshll.u32 %v3220, 16
        %v3414 = vrot.slane %v3412, 5
        %v3415 = vsel %vm1444, %v3410, %v3414
        %v3417 = vshrl.u32 %v3221, 16
        %v3419 = vrot.slane %v3417, 4
        %v3420 = vshll.u32 %v3221, 16
        %v3422 = vrot.slane %v3420, 5
        %v3423 = vor.u32 %v3419, %v3422
        %v3424 = vrot.slane %v3423, 4
        %v3426 = vshll.u32 %v3222, 16
        %v3428 = vrot.slane %v3426, 5
        %v3429 = vsel %vm1444, %v3424, %v3428
        %v3430 = vshrl.u32 %v3222, 16
        %v3432 = vrot.slane %v3430, 4
        %v3433 = vor.u32 %v3432, %v3428
        %v3434 = vrot.slane %v3433, 4
        %v3436 = vshll.u32 %v3223, 16
        %v3438 = vrot.slane %v3436, 5
        %v3439 = vsel %vm1444, %v3434, %v3438
        %v3441 = vshrl.u32 %v3224, 16
        %v3443 = vrot.slane %v3441, 4
        %v3444 = vshll.u32 %v3224, 16
        %v3446 = vrot.slane %v3444, 5
        %v3447 = vor.u32 %v3443, %v3446
        %v3448 = vrot.slane %v3447, 4
        %v3450 = vshll.u32 %v3225, 16
        %v3452 = vrot.slane %v3450, 5
        %v3453 = vsel %vm1444, %v3448, %v3452
        %v3454 = vshrl.u32 %v3225, 16
        %v3456 = vrot.slane %v3454, 4
        %v3457 = vor.u32 %v3456, %v3452
        %v3458 = vrot.slane %v3457, 4
        %v3460 = vshll.u32 %v3226, 16
        %v3462 = vrot.slane %v3460, 5
        %v3463 = vsel %vm1444, %v3458, %v3462
        %v3465 = vshrl.u32 %v3227, 16
        %v3467 = vrot.slane %v3465, 4
        %v3468 = vshll.u32 %v3227, 16
        %v3470 = vrot.slane %v3468, 5
        %v3471 = vor.u32 %v3467, %v3470
        %v3472 = vrot.slane %v3471, 4
        %v3474 = vshll.u32 %v3228, 16
        %v3476 = vrot.slane %v3474, 5
        %v3477 = vsel %vm1444, %v3472, %v3476
        %v3478 = vshrl.u32 %v3228, 16
        %v3480 = vrot.slane %v3478, 4
        %v3481 = vor.u32 %v3480, %v3476
        %v3482 = vrot.slane %v3481, 4
        %v3484 = vshll.u32 %v3229, 16
        %v3486 = vrot.slane %v3484, 5
        %v3487 = vsel %vm1444, %v3482, %v3486
        %v3489 = vshrl.u32 %v3230, 16
        %v3491 = vrot.slane %v3489, 4
        %v3492 = vshll.u32 %v3230, 16
        %v3494 = vrot.slane %v3492, 5
        %v3495 = vor.u32 %v3491, %v3494
        %v3496 = vrot.slane %v3495, 4
        %v3498 = vshll.u32 %v3231, 16
        %v3500 = vrot.slane %v3498, 5
        %v3501 = vsel %vm1444, %v3496, %v3500
        %v3502 = vshrl.u32 %v3231, 16
        %v3504 = vrot.slane %v3502, 4
        %v3505 = vor.u32 %v3504, %v3500
        %v3506 = vrot.slane %v3505, 4
        %v3508 = vshll.u32 %v3232, 16
        %v3510 = vrot.slane %v3508, 5
        %v3511 = vsel %vm1444, %v3506, %v3510
        %v3513 = vshrl.u32 %v3233, 16
        %v3515 = vrot.slane %v3513, 4
        %v3516 = vshll.u32 %v3233, 16
        %v3518 = vrot.slane %v3516, 5
        %v3519 = vor.u32 %v3515, %v3518
        %v3520 = vrot.slane %v3519, 4
        %v3522 = vshll.u32 %v3234, 16
        %v3524 = vrot.slane %v3522, 5
        %v3525 = vsel %vm1444, %v3520, %v3524
        %v3526 = vshrl.u32 %v3234, 16
        %v3528 = vrot.slane %v3526, 4
        %v3529 = vor.u32 %v3528, %v3524
        %v3530 = vrot.slane %v3529, 4
        %v3532 = vshll.u32 %v3235, 16
        %v3534 = vrot.slane %v3532, 5
        %v3535 = vsel %vm1444, %v3530, %v3534
        %v3537 = vshrl.u32 %v3236, 16
        %v3539 = vrot.slane %v3537, 4
        %v3540 = vshll.u32 %v3236, 16
        %v3542 = vrot.slane %v3540, 5
        %v3543 = vor.u32 %v3539, %v3542
        %v3544 = vrot.slane %v3543, 4
        %v3546 = vshll.u32 %v3237, 16
        %v3548 = vrot.slane %v3546, 5
        %v3549 = vsel %vm1444, %v3544, %v3548
        %v3550 = vshrl.u32 %v3237, 16
        %v3552 = vrot.slane %v3550, 4
        %v3553 = vor.u32 %v3552, %v3548
        %v3554 = vrot.slane %v3553, 4
        %v3556 = vshll.u32 %v3238, 16
        %v3558 = vrot.slane %v3556, 5
        %v3559 = vsel %vm1444, %v3554, %v3558
        %v3561 = vshrl.u32 %v3239, 16
        %v3563 = vrot.slane %v3561, 4
        %v3564 = vshll.u32 %v3239, 16
        %v3566 = vrot.slane %v3564, 5
        %v3567 = vor.u32 %v3563, %v3566
        %v3568 = vrot.slane %v3567, 4
        %v3570 = vshll.u32 %v3240, 16
        %v3572 = vrot.slane %v3570, 5
        %v3573 = vsel %vm1444, %v3568, %v3572
        %v3574 = vshrl.u32 %v3240, 16
        %v3576 = vrot.slane %v3574, 4
        %v3577 = vor.u32 %v3576, %v3572
        %v3578 = vrot.slane %v3577, 4
        %v3580 = vshll.u32 %v3241, 16
        %v3582 = vrot.slane %v3580, 5
        %v3583 = vsel %vm1444, %v3578, %v3582
        %v3585 = vshrl.u32 %v3242, 16
        %v3587 = vrot.slane %v3585, 4
        %v3588 = vshll.u32 %v3242, 16
        %v3590 = vrot.slane %v3588, 5
        %v3591 = vor.u32 %v3587, %v3590
        %v3592 = vrot.slane %v3591, 4
        %v3594 = vshll.u32 %v3243, 16
        %v3596 = vrot.slane %v3594, 5
        %v3597 = vsel %vm1444, %v3592, %v3596
        %v3598 = vshrl.u32 %v3243, 16
        %v3600 = vrot.slane %v3598, 4
        %v3601 = vor.u32 %v3600, %v3596
        %v3602 = vrot.slane %v3601, 4
        %v3604 = vshll.u32 %v3244, 16
        %v3606 = vrot.slane %v3604, 5
        %v3607 = vsel %vm1444, %v3602, %v3606
        %v3609 = vshrl.u32 %v3245, 16
        %v3611 = vrot.slane %v3609, 4
        %v3612 = vshll.u32 %v3245, 16
        %v3614 = vrot.slane %v3612, 5
        %v3615 = vor.u32 %v3611, %v3614
        %v3616 = vrot.slane %v3615, 4
        %v3618 = vshll.u32 %v3246, 16
        %v3620 = vrot.slane %v3618, 5
        %v3621 = vsel %vm1444, %v3616, %v3620
        %v3622 = vshrl.u32 %v3246, 16
        %v3624 = vrot.slane %v3622, 4
        %v3625 = vor.u32 %v3624, %v3620
        %v3626 = vrot.slane %v3625, 4
        %v3628 = vshll.u32 %v3247, 16
        %v3630 = vrot.slane %v3628, 5
        %v3631 = vsel %vm1444, %v3626, %v3630
        %s3632 = scalar_lea.vmem [#allocation8], 8
        %v3633 = vld [vmem:[%s3632] sm:$0x3]
        %v3634 = vunpack.c.l.b16 %v3261
        %v3635 = vunpack.c.l.b16 %v3271
        %v3636 = vunpack.c.l.b16 %v3285
        %v3637 = vunpack.c.l.b16 %v3295
        %v3638 = vunpack.c.l.b16 %v3309
        %v3639 = vunpack.c.l.b16 %v3319
        %v3640 = vunpack.c.l.b16 %v3333
        %v3641 = vunpack.c.l.b16 %v3343
        %v3642 = vunpack.c.l.b16 %v3357
        %v3643 = vunpack.c.l.b16 %v3367
        %v3644 = vunpack.c.l.b16 %v3381
        %v3645 = vunpack.c.l.b16 %v3391
        %v3646 = vunpack.c.l.b16 %v3405
        %v3647 = vunpack.c.l.b16 %v3415
        %v3648 = vunpack.c.l.b16 %v3429
        %v3649 = vunpack.c.l.b16 %v3439
        %v3650 = vunpack.c.l.b16 %v3453
        %v3651 = vunpack.c.l.b16 %v3463
        %v3652 = vunpack.c.l.b16 %v3477
        %v3653 = vunpack.c.l.b16 %v3487
        %v3654 = vunpack.c.l.b16 %v3501
        %v3655 = vunpack.c.l.b16 %v3511
        %v3656 = vunpack.c.l.b16 %v3525
        %v3657 = vunpack.c.l.b16 %v3535
        %v3658 = vunpack.c.l.b16 %v3549
        %v3659 = vunpack.c.l.b16 %v3559
        %v3660 = vunpack.c.l.b16 %v3573
        %v3661 = vunpack.c.l.b16 %v3583
        %v3662 = vunpack.c.l.b16 %v3597
        %v3663 = vunpack.c.l.b16 %v3607
        %v3664 = vunpack.c.l.b16 %v3621
        %v3665 = vunpack.c.l.b16 %v3631
        %v3666 = vpack.c.b16 %v3635, %v3634
        %v3667 = vpack.c.b16 %v3637, %v3636
        %v3668 = vpack.c.b16 %v3639, %v3638
        %v3669 = vpack.c.b16 %v3641, %v3640
        %v3670 = vpack.c.b16 %v3643, %v3642
        %v3671 = vpack.c.b16 %v3645, %v3644
        %v3672 = vpack.c.b16 %v3647, %v3646
        %v3673 = vpack.c.b16 %v3649, %v3648
        %v3674 = vpack.c.b16 %v3651, %v3650
        %v3675 = vpack.c.b16 %v3653, %v3652
        %v3676 = vpack.c.b16 %v3655, %v3654
        %v3677 = vpack.c.b16 %v3657, %v3656
        %v3678 = vpack.c.b16 %v3659, %v3658
        %v3679 = vpack.c.b16 %v3661, %v3660
        %v3680 = vpack.c.b16 %v3663, %v3662
        %v3681 = vpack.c.b16 %v3665, %v3664
        %v3683 = vsel %vm1879, %v3666, 0
        %v3686 = vsel %vm1879, %v3667, 0
        %v3689 = vsel %vm1879, %v3668, 0
        %v3692 = vsel %vm1879, %v3669, 0
        %v3695 = vsel %vm1879, %v3670, 0
        %v3698 = vsel %vm1879, %v3671, 0
        %v3701 = vsel %vm1879, %v3672, 0
        %v3704 = vsel %vm1879, %v3673, 0
        %v3707 = vsel %vm1879, %v3674, 0
        %v3710 = vsel %vm1879, %v3675, 0
        %v3713 = vsel %vm1879, %v3676, 0
        %v3716 = vsel %vm1879, %v3677, 0
        %v3719 = vsel %vm1879, %v3678, 0
        %v3722 = vsel %vm1879, %v3679, 0
        %v3725 = vsel %vm1879, %v3680, 0
        %v3728 = vsel %vm1879, %v3681, 0
        %v3731 = vsel %vm1928, %v3633, 0
        %3733 = vmatprep.subr.bf16.mxu0 0
        %3734 = vmatpush1.bf16.msra.mxu0 %v3731
        %3735 = vmatprep.subr.bf16.mxu0 0
        %3736 = vmatpush1.bf16.msra.mxu0 0
        %3737 = vmatprep.subr.bf16.mxu0 0
        %3738 = vmatpush1.bf16.msra.mxu0 0
        %3739 = vmatprep.subr.bf16.mxu0 0
        %3740 = vmatpush1.bf16.msra.mxu0 0
        %3741 = vmatprep.subr.bf16.mxu0 0
        %3742 = vmatpush1.bf16.msra.mxu0 0
        %3743 = vmatprep.subr.bf16.mxu0 0
        %3744 = vmatpush1.bf16.msra.mxu0 0
        %3745 = vmatprep.subr.bf16.mxu0 0
        %3746 = vmatpush1.bf16.msra.mxu0 0
        %3747 = vmatprep.subr.bf16.mxu0 0
        %3748 = vmatpush1.bf16.msra.mxu0 0
        %3749 = vmatprep.subr.bf16.mxu0 0
        %3750 = vmatpush1.bf16.msra.mxu0 0
        %3751 = vmatprep.subr.bf16.mxu0 0
        %3752 = vmatpush1.bf16.msra.mxu0 0
        %3753 = vmatprep.subr.bf16.mxu0 0
        %3754 = vmatpush1.bf16.msra.mxu0 0
        %3755 = vmatprep.subr.bf16.mxu0 0
        %3756 = vmatpush1.bf16.msra.mxu0 0
        %3757 = vmatprep.subr.bf16.mxu0 0
        %3758 = vmatpush1.bf16.msra.mxu0 0
        %3759 = vmatprep.subr.bf16.mxu0 0
        %3760 = vmatpush1.bf16.msra.mxu0 0
        %3761 = vmatprep.subr.bf16.mxu0 0
        %3762 = vmatpush1.bf16.msra.mxu0 0
        %3763 = vmatprep.subr.bf16.mxu0 0
        %3764 = vmatpush1.bf16.msra.mxu0 0
        %3765 = vmatprep.mubr.bf16.mxu0 0
        %3766 = vmatmul.mubr.bf16.gmra.mrb[0].mxu0 %v3683
        %v3767 = vpop.f32.mrb[0].mxu0
        %v3768 = vadd.f32 0.0, %v3767
        %v3769 = vpop.f32.mrb[0].mxu0
        %v3770 = vpop.f32.mrb[0].mxu0
        %v3771 = vadd.f32 0.0, %v3770
        %v3772 = vpop.f32.mrb[0].mxu0
        %3773 = vmatprep.mubr.bf16.mxu0 0
        %3774 = vmatmul.mubr.bf16.gmra.mrb[0].mxu0 %v3686
        %v3775 = vpop.f32.mrb[0].mxu0
        %v3776 = vadd.f32 0.0, %v3775
        %v3777 = vpop.f32.mrb[0].mxu0
        %v3778 = vpop.f32.mrb[0].mxu0
        %v3779 = vadd.f32 0.0, %v3778
        %v3780 = vpop.f32.mrb[0].mxu0
        %3781 = vmatprep.mubr.bf16.mxu0 0
        %3782 = vmatmul.mubr.bf16.gmra.mrb[0].mxu0 %v3689
        %v3783 = vpop.f32.mrb[0].mxu0
        %v3784 = vadd.f32 0.0, %v3783
        %v3785 = vpop.f32.mrb[0].mxu0
        %v3786 = vpop.f32.mrb[0].mxu0
        %v3787 = vadd.f32 0.0, %v3786
        %v3788 = vpop.f32.mrb[0].mxu0
        %3789 = vmatprep.mubr.bf16.mxu0 0
        %3790 = vmatmul.mubr.bf16.gmra.mrb[0].mxu0 %v3692
        %v3791 = vpop.f32.mrb[0].mxu0
        %v3792 = vadd.f32 0.0, %v3791
        %v3793 = vpop.f32.mrb[0].mxu0
        %v3794 = vpop.f32.mrb[0].mxu0
        %v3795 = vadd.f32 0.0, %v3794
        %v3796 = vpop.f32.mrb[0].mxu0
        %3797 = vmatprep.mubr.bf16.mxu0 0
        %3798 = vmatmul.mubr.bf16.gmra.mrb[0].mxu0 %v3695
        %v3799 = vpop.f32.mrb[0].mxu0
        %v3800 = vadd.f32 0.0, %v3799
        %v3801 = vpop.f32.mrb[0].mxu0
        %v3802 = vpop.f32.mrb[0].mxu0
        %v3803 = vadd.f32 0.0, %v3802
        %v3804 = vpop.f32.mrb[0].mxu0
        %3805 = vmatprep.mubr.bf16.mxu0 0
        %3806 = vmatmul.mubr.bf16.gmra.mrb[0].mxu0 %v3698
        %v3807 = vpop.f32.mrb[0].mxu0
        %v3808 = vadd.f32 0.0, %v3807
        %v3809 = vpop.f32.mrb[0].mxu0
        %v3810 = vpop.f32.mrb[0].mxu0
        %v3811 = vadd.f32 0.0, %v3810
        %v3812 = vpop.f32.mrb[0].mxu0
        %3813 = vmatprep.mubr.bf16.mxu0 0
        %3814 = vmatmul.mubr.bf16.gmra.mrb[0].mxu0 %v3701
        %v3815 = vpop.f32.mrb[0].mxu0
        %v3816 = vadd.f32 0.0, %v3815
        %v3817 = vpop.f32.mrb[0].mxu0
        %v3818 = vpop.f32.mrb[0].mxu0
        %v3819 = vadd.f32 0.0, %v3818
        %v3820 = vpop.f32.mrb[0].mxu0
        %3821 = vmatprep.mubr.bf16.mxu0 0
        %3822 = vmatmul.mubr.bf16.gmra.mrb[0].mxu0 %v3704
        %v3823 = vpop.f32.mrb[0].mxu0
        %v3824 = vadd.f32 0.0, %v3823
        %v3825 = vpop.f32.mrb[0].mxu0
        %v3826 = vpop.f32.mrb[0].mxu0
        %v3827 = vadd.f32 0.0, %v3826
        %v3828 = vpop.f32.mrb[0].mxu0
        %3829 = vmatprep.mubr.bf16.mxu0 0
        %3830 = vmatmul.mubr.bf16.gmra.mrb[0].mxu0 %v3707
        %v3831 = vpop.f32.mrb[0].mxu0
        %v3832 = vadd.f32 0.0, %v3831
        %v3833 = vpop.f32.mrb[0].mxu0
        %v3834 = vpop.f32.mrb[0].mxu0
        %v3835 = vadd.f32 0.0, %v3834
        %v3836 = vpop.f32.mrb[0].mxu0
        %3837 = vmatprep.mubr.bf16.mxu0 0
        %3838 = vmatmul.mubr.bf16.gmra.mrb[0].mxu0 %v3710
        %v3839 = vpop.f32.mrb[0].mxu0
        %v3840 = vadd.f32 0.0, %v3839
        %v3841 = vpop.f32.mrb[0].mxu0
        %v3842 = vpop.f32.mrb[0].mxu0
        %v3843 = vadd.f32 0.0, %v3842
        %v3844 = vpop.f32.mrb[0].mxu0
        %3845 = vmatprep.mubr.bf16.mxu0 0
        %3846 = vmatmul.mubr.bf16.gmra.mrb[0].mxu0 %v3713
        %v3847 = vpop.f32.mrb[0].mxu0
        %v3848 = vadd.f32 0.0, %v3847
        %v3849 = vpop.f32.mrb[0].mxu0
        %v3850 = vpop.f32.mrb[0].mxu0
        %v3851 = vadd.f32 0.0, %v3850
        %v3852 = vpop.f32.mrb[0].mxu0
        %3853 = vmatprep.mubr.bf16.mxu0 0
        %3854 = vmatmul.mubr.bf16.gmra.mrb[0].mxu0 %v3716
        %v3855 = vpop.f32.mrb[0].mxu0
        %v3856 = vadd.f32 0.0, %v3855
        %v3857 = vpop.f32.mrb[0].mxu0
        %v3858 = vpop.f32.mrb[0].mxu0
        %v3859 = vadd.f32 0.0, %v3858
        %v3860 = vpop.f32.mrb[0].mxu0
        %3861 = vmatprep.mubr.bf16.mxu0 0
        %3862 = vmatmul.mubr.bf16.gmra.mrb[0].mxu0 %v3719
        %v3863 = vpop.f32.mrb[0].mxu0
        %v3864 = vadd.f32 0.0, %v3863
        %v3865 = vpop.f32.mrb[0].mxu0
        %v3866 = vpop.f32.mrb[0].mxu0
        %v3867 = vadd.f32 0.0, %v3866
        %v3868 = vpop.f32.mrb[0].mxu0
        %3869 = vmatprep.mubr.bf16.mxu0 0
        %3870 = vmatmul.mubr.bf16.gmra.mrb[0].mxu0 %v3722
        %v3871 = vpop.f32.mrb[0].mxu0
        %v3872 = vadd.f32 0.0, %v3871
        %v3873 = vpop.f32.mrb[0].mxu0
        %v3874 = vpop.f32.mrb[0].mxu0
        %v3875 = vadd.f32 0.0, %v3874
        %v3876 = vpop.f32.mrb[0].mxu0
        %3877 = vmatprep.mubr.bf16.mxu0 0
        %3878 = vmatmul.mubr.bf16.gmra.mrb[0].mxu0 %v3725
        %v3879 = vpop.f32.mrb[0].mxu0
        %v3880 = vadd.f32 0.0, %v3879
        %v3881 = vpop.f32.mrb[0].mxu0
        %v3882 = vpop.f32.mrb[0].mxu0
        %v3883 = vadd.f32 0.0, %v3882
        %v3884 = vpop.f32.mrb[0].mxu0
        %3885 = vmatprep.mubr.bf16.mxu0 0
        %3886 = vmatmul.mubr.bf16.gmra.mrb[0].mxu0 %v3728
        %v3887 = vpop.f32.mrb[0].mxu0
        %v3888 = vadd.f32 0.0, %v3887
        %v3889 = vpop.f32.mrb[0].mxu0
        %v3890 = vpop.f32.mrb[0].mxu0
        %v3891 = vadd.f32 0.0, %v3890
        %v3892 = vpop.f32.mrb[0].mxu0
        %3893 = vdwg.mxu0
        %v3894 = vadd.f32 %v3168, %v3768
        %v3895 = vadd.f32 %v3169, %v3771
        %v3896 = vadd.f32 %v3170, %v3776
        %v3897 = vadd.f32 %v3171, %v3779
        %v3898 = vadd.f32 %v3172, %v3784
        %v3899 = vadd.f32 %v3173, %v3787
        %v3900 = vadd.f32 %v3174, %v3792
        %v3901 = vadd.f32 %v3175, %v3795
        %v3902 = vadd.f32 %v3176, %v3800
        %v3903 = vadd.f32 %v3177, %v3803
        %v3904 = vadd.f32 %v3178, %v3808
        %v3905 = vadd.f32 %v3179, %v3811
        %v3906 = vadd.f32 %v3180, %v3816
        %v3907 = vadd.f32 %v3181, %v3819
        %v3908 = vadd.f32 %v3182, %v3824
        %v3909 = vadd.f32 %v3183, %v3827
        %v3910 = vadd.f32 %v3184, %v3832
        %v3911 = vadd.f32 %v3185, %v3835
        %v3912 = vadd.f32 %v3186, %v3840
        %v3913 = vadd.f32 %v3187, %v3843
        %v3914 = vadd.f32 %v3188, %v3848
        %v3915 = vadd.f32 %v3189, %v3851
        %v3916 = vadd.f32 %v3190, %v3856
        %v3917 = vadd.f32 %v3191, %v3859
        %v3918 = vadd.f32 %v3192, %v3864
        %v3919 = vadd.f32 %v3193, %v3867
        %v3920 = vadd.f32 %v3194, %v3872
        %v3921 = vadd.f32 %v3195, %v3875
        %v3922 = vadd.f32 %v3196, %v3880
        %v3923 = vadd.f32 %v3197, %v3883
        %v3924 = vadd.f32 %v3198, %v3888
        %v3925 = vadd.f32 %v3199, %v3891
        %v3926 = vld [vmem:[%s1278] sm:$0xe]
        %v3927 = vld [vmem:[%s1278 + $0xc] sm:$0xe]
        %v3928 = vld [vmem:[%s1278 + $0x18] sm:$0xe]
        %v3929 = vld [vmem:[%s1278 + $0x24] sm:$0xe]
        %v3930 = vld [vmem:[%s1278 + $0x30] sm:$0xe]
        %v3931 = vld [vmem:[%s1278 + $0x3c] sm:$0xe]
        %v3932 = vld [vmem:[%s1278 + $0x48] sm:$0xe]
        %v3933 = vld [vmem:[%s1278 + $0x54] sm:$0xe]
        %v3934 = vld [vmem:[%s1278 + $0x60] sm:$0xe]
        %v3935 = vld [vmem:[%s1278 + $0x6c] sm:$0xe]
        %v3936 = vld [vmem:[%s1278 + $0x78] sm:$0xe]
        %v3937 = vld [vmem:[%s1278 + $0x84] sm:$0xe]
        %v3938 = vld [vmem:[%s1278 + $0x90] sm:$0xe]
        %v3939 = vld [vmem:[%s1278 + $0x9c] sm:$0xe]
        %v3940 = vld [vmem:[%s1278 + $0xa8] sm:$0xe]
        %v3941 = vld [vmem:[%s1278 + $0xb4] sm:$0xe]
        %v3990 = vrot.slane %v3926, 5
        %v3991 = vrot.slane %v3990, 4
        %v3992 = vrot.slane %v3201, 5
        %v3993 = vsel %vm2435, %v3991, %v3992
        %v3994 = vrot.slane %v3992, 4
        %v3995 = vrot.slane %v3202, 5
        %v3996 = vsel %vm2435, %v3994, %v3995
        %v3997 = vrot.slane %v3927, 5
        %v3998 = vrot.slane %v3997, 4
        %v3999 = vrot.slane %v3204, 5
        %v4000 = vsel %vm2435, %v3998, %v3999
        %v4001 = vrot.slane %v3999, 4
        %v4002 = vrot.slane %v3205, 5
        %v4003 = vsel %vm2435, %v4001, %v4002
        %v4004 = vrot.slane %v3928, 5
        %v4005 = vrot.slane %v4004, 4
        %v4006 = vrot.slane %v3207, 5
        %v4007 = vsel %vm2435, %v4005, %v4006
        %v4008 = vrot.slane %v4006, 4
        %v4009 = vrot.slane %v3208, 5
        %v4010 = vsel %vm2435, %v4008, %v4009
        %v4011 = vrot.slane %v3929, 5
        %v4012 = vrot.slane %v4011, 4
        %v4013 = vrot.slane %v3210, 5
        %v4014 = vsel %vm2435, %v4012, %v4013
        %v4015 = vrot.slane %v4013, 4
        %v4016 = vrot.slane %v3211, 5
        %v4017 = vsel %vm2435, %v4015, %v4016
        %v4018 = vrot.slane %v3930, 5
        %v4019 = vrot.slane %v4018, 4
        %v4020 = vrot.slane %v3213, 5
        %v4021 = vsel %vm2435, %v4019, %v4020
        %v4022 = vrot.slane %v4020, 4
        %v4023 = vrot.slane %v3214, 5
        %v4024 = vsel %vm2435, %v4022, %v4023
        %v4025 = vrot.slane %v3931, 5
        %v4026 = vrot.slane %v4025, 4
        %v4027 = vrot.slane %v3216, 5
        %v4028 = vsel %vm2435, %v4026, %v4027
        %v4029 = vrot.slane %v4027, 4
        %v4030 = vrot.slane %v3217, 5
        %v4031 = vsel %vm2435, %v4029, %v4030
        %v4032 = vrot.slane %v3932, 5
        %v4033 = vrot.slane %v4032, 4
        %v4034 = vrot.slane %v3219, 5
        %v4035 = vsel %vm2435, %v4033, %v4034
        %v4036 = vrot.slane %v4034, 4
        %v4037 = vrot.slane %v3220, 5
        %v4038 = vsel %vm2435, %v4036, %v4037
        %v4039 = vrot.slane %v3933, 5
        %v4040 = vrot.slane %v4039, 4
        %v4041 = vrot.slane %v3222, 5
        %v4042 = vsel %vm2435, %v4040, %v4041
        %v4043 = vrot.slane %v4041, 4
        %v4044 = vrot.slane %v3223, 5
        %v4045 = vsel %vm2435, %v4043, %v4044
        %v4046 = vrot.slane %v3934, 5
        %v4047 = vrot.slane %v4046, 4
        %v4048 = vrot.slane %v3225, 5
        %v4049 = vsel %vm2435, %v4047, %v4048
        %v4050 = vrot.slane %v4048, 4
        %v4051 = vrot.slane %v3226, 5
        %v4052 = vsel %vm2435, %v4050, %v4051
        %v4053 = vrot.slane %v3935, 5
        %v4054 = vrot.slane %v4053, 4
        %v4055 = vrot.slane %v3228, 5
        %v4056 = vsel %vm2435, %v4054, %v4055
        %v4057 = vrot.slane %v4055, 4
        %v4058 = vrot.slane %v3229, 5
        %v4059 = vsel %vm2435, %v4057, %v4058
        %v4060 = vrot.slane %v3936, 5
        %v4061 = vrot.slane %v4060, 4
        %v4062 = vrot.slane %v3231, 5
        %v4063 = vsel %vm2435, %v4061, %v4062
        %v4064 = vrot.slane %v4062, 4
        %v4065 = vrot.slane %v3232, 5
        %v4066 = vsel %vm2435, %v4064, %v4065
        %v4067 = vrot.slane %v3937, 5
        %v4068 = vrot.slane %v4067, 4
        %v4069 = vrot.slane %v3234, 5
        %v4070 = vsel %vm2435, %v4068, %v4069
        %v4071 = vrot.slane %v4069, 4
        %v4072 = vrot.slane %v3235, 5
        %v4073 = vsel %vm2435, %v4071, %v4072
        %v4074 = vrot.slane %v3938, 5
        %v4075 = vrot.slane %v4074, 4
        %v4076 = vrot.slane %v3237, 5
        %v4077 = vsel %vm2435, %v4075, %v4076
        %v4078 = vrot.slane %v4076, 4
        %v4079 = vrot.slane %v3238, 5
        %v4080 = vsel %vm2435, %v4078, %v4079
        %v4081 = vrot.slane %v3939, 5
        %v4082 = vrot.slane %v4081, 4
        %v4083 = vrot.slane %v3240, 5
        %v4084 = vsel %vm2435, %v4082, %v4083
        %v4085 = vrot.slane %v4083, 4
        %v4086 = vrot.slane %v3241, 5
        %v4087 = vsel %vm2435, %v4085, %v4086
        %v4088 = vrot.slane %v3940, 5
        %v4089 = vrot.slane %v4088, 4
        %v4090 = vrot.slane %v3243, 5
        %v4091 = vsel %vm2435, %v4089, %v4090
        %v4092 = vrot.slane %v4090, 4
        %v4093 = vrot.slane %v3244, 5
        %v4094 = vsel %vm2435, %v4092, %v4093
        %v4095 = vrot.slane %v3941, 5
        %v4096 = vrot.slane %v4095, 4
        %v4097 = vrot.slane %v3246, 5
        %v4098 = vsel %vm2435, %v4096, %v4097
        %v4099 = vrot.slane %v4097, 4
        %v4100 = vrot.slane %v3247, 5
        %v4101 = vsel %vm2435, %v4099, %v4100
        %s4102 = scalar_lea.vmem [#allocation8], 10
        %v4103 = vld [vmem:[%s4102] sm:$0x3]
        %v4104 = vunpack.c.l.b16 %v3993
        %v4105 = vunpack.c.l.b16 %v3996
        %v4106 = vunpack.c.l.b16 %v4000
        %v4107 = vunpack.c.l.b16 %v4003
        %v4108 = vunpack.c.l.b16 %v4007
        %v4109 = vunpack.c.l.b16 %v4010
        %v4110 = vunpack.c.l.b16 %v4014
        %v4111 = vunpack.c.l.b16 %v4017
        %v4112 = vunpack.c.l.b16 %v4021
        %v4113 = vunpack.c.l.b16 %v4024
        %v4114 = vunpack.c.l.b16 %v4028
        %v4115 = vunpack.c.l.b16 %v4031
        %v4116 = vunpack.c.l.b16 %v4035
        %v4117 = vunpack.c.l.b16 %v4038
        %v4118 = vunpack.c.l.b16 %v4042
        %v4119 = vunpack.c.l.b16 %v4045
        %v4120 = vunpack.c.l.b16 %v4049
        %v4121 = vunpack.c.l.b16 %v4052
        %v4122 = vunpack.c.l.b16 %v4056
        %v4123 = vunpack.c.l.b16 %v4059
        %v4124 = vunpack.c.l.b16 %v4063
        %v4125 = vunpack.c.l.b16 %v4066
        %v4126 = vunpack.c.l.b16 %v4070
        %v4127 = vunpack.c.l.b16 %v4073
        %v4128 = vunpack.c.l.b16 %v4077
        %v4129 = vunpack.c.l.b16 %v4080
        %v4130 = vunpack.c.l.b16 %v4084
        %v4131 = vunpack.c.l.b16 %v4087
        %v4132 = vunpack.c.l.b16 %v4091
        %v4133 = vunpack.c.l.b16 %v4094
        %v4134 = vunpack.c.l.b16 %v4098
        %v4135 = vunpack.c.l.b16 %v4101
        %v4136 = vpack.c.b16 %v4105, %v4104
        %v4137 = vpack.c.b16 %v4107, %v4106
        %v4138 = vpack.c.b16 %v4109, %v4108
        %v4139 = vpack.c.b16 %v4111, %v4110
        %v4140 = vpack.c.b16 %v4113, %v4112
        %v4141 = vpack.c.b16 %v4115, %v4114
        %v4142 = vpack.c.b16 %v4117, %v4116
        %v4143 = vpack.c.b16 %v4119, %v4118
        %v4144 = vpack.c.b16 %v4121, %v4120
        %v4145 = vpack.c.b16 %v4123, %v4122
        %v4146 = vpack.c.b16 %v4125, %v4124
        %v4147 = vpack.c.b16 %v4127, %v4126
        %v4148 = vpack.c.b16 %v4129, %v4128
        %v4149 = vpack.c.b16 %v4131, %v4130
        %v4150 = vpack.c.b16 %v4133, %v4132
        %v4151 = vpack.c.b16 %v4135, %v4134
        %v4153 = vsel %vm1879, %v4136, 0
        %v4156 = vsel %vm1879, %v4137, 0
        %v4159 = vsel %vm1879, %v4138, 0
        %v4162 = vsel %vm1879, %v4139, 0
        %v4165 = vsel %vm1879, %v4140, 0
        %v4168 = vsel %vm1879, %v4141, 0
        %v4171 = vsel %vm1879, %v4142, 0
        %v4174 = vsel %vm1879, %v4143, 0
        %v4177 = vsel %vm1879, %v4144, 0
        %v4180 = vsel %vm1879, %v4145, 0
        %v4183 = vsel %vm1879, %v4146, 0
        %v4186 = vsel %vm1879, %v4147, 0
        %v4189 = vsel %vm1879, %v4148, 0
        %v4192 = vsel %vm1879, %v4149, 0
        %v4195 = vsel %vm1879, %v4150, 0
        %v4198 = vsel %vm1879, %v4151, 0
        %v4201 = vsel %vm1928, %v4103, 0
        %4203 = vmatprep.subr.bf16.mxu0 0
        %4204 = vmatpush1.bf16.msra.mxu0 %v4201
        %4205 = vmatprep.subr.bf16.mxu0 0
        %4206 = vmatpush1.bf16.msra.mxu0 0
        %4207 = vmatprep.subr.bf16.mxu0 0
        %4208 = vmatpush1.bf16.msra.mxu0 0
        %4209 = vmatprep.subr.bf16.mxu0 0
        %4210 = vmatpush1.bf16.msra.mxu0 0
        %4211 = vmatprep.subr.bf16.mxu0 0
        %4212 = vmatpush1.bf16.msra.mxu0 0
        %4213 = vmatprep.subr.bf16.mxu0 0
        %4214 = vmatpush1.bf16.msra.mxu0 0
        %4215 = vmatprep.subr.bf16.mxu0 0
        %4216 = vmatpush1.bf16.msra.mxu0 0
        %4217 = vmatprep.subr.bf16.mxu0 0
        %4218 = vmatpush1.bf16.msra.mxu0 0
        %4219 = vmatprep.subr.bf16.mxu0 0
        %4220 = vmatpush1.bf16.msra.mxu0 0
        %4221 = vmatprep.subr.bf16.mxu0 0
        %4222 = vmatpush1.bf16.msra.mxu0 0
        %4223 = vmatprep.subr.bf16.mxu0 0
        %4224 = vmatpush1.bf16.msra.mxu0 0
        %4225 = vmatprep.subr.bf16.mxu0 0
        %4226 = vmatpush1.bf16.msra.mxu0 0
        %4227 = vmatprep.subr.bf16.mxu0 0
        %4228 = vmatpush1.bf16.msra.mxu0 0
        %4229 = vmatprep.subr.bf16.mxu0 0
        %4230 = vmatpush1.bf16.msra.mxu0 0
        %4231 = vmatprep.subr.bf16.mxu0 0
        %4232 = vmatpush1.bf16.msra.mxu0 0
        %4233 = vmatprep.subr.bf16.mxu0 0
        %4234 = vmatpush1.bf16.msra.mxu0 0
        %4235 = vmatprep.mubr.bf16.mxu0 0
        %4236 = vmatmul.mubr.bf16.gmra.mrb[0].mxu0 %v4153
        %v4237 = vpop.f32.mrb[0].mxu0
        %v4238 = vadd.f32 0.0, %v4237
        %v4239 = vpop.f32.mrb[0].mxu0
        %v4240 = vpop.f32.mrb[0].mxu0
        %v4241 = vadd.f32 0.0, %v4240
        %v4242 = vpop.f32.mrb[0].mxu0
        %4243 = vmatprep.mubr.bf16.mxu0 0
        %4244 = vmatmul.mubr.bf16.gmra.mrb[0].mxu0 %v4156
        %v4245 = vpop.f32.mrb[0].mxu0
        %v4246 = vadd.f32 0.0, %v4245
        %v4247 = vpop.f32.mrb[0].mxu0
        %v4248 = vpop.f32.mrb[0].mxu0
        %v4249 = vadd.f32 0.0, %v4248
        %v4250 = vpop.f32.mrb[0].mxu0
        %4251 = vmatprep.mubr.bf16.mxu0 0
        %4252 = vmatmul.mubr.bf16.gmra.mrb[0].mxu0 %v4159
        %v4253 = vpop.f32.mrb[0].mxu0
        %v4254 = vadd.f32 0.0, %v4253
        %v4255 = vpop.f32.mrb[0].mxu0
        %v4256 = vpop.f32.mrb[0].mxu0
        %v4257 = vadd.f32 0.0, %v4256
        %v4258 = vpop.f32.mrb[0].mxu0
        %4259 = vmatprep.mubr.bf16.mxu0 0
        %4260 = vmatmul.mubr.bf16.gmra.mrb[0].mxu0 %v4162
        %v4261 = vpop.f32.mrb[0].mxu0
        %v4262 = vadd.f32 0.0, %v4261
        %v4263 = vpop.f32.mrb[0].mxu0
        %v4264 = vpop.f32.mrb[0].mxu0
        %v4265 = vadd.f32 0.0, %v4264
        %v4266 = vpop.f32.mrb[0].mxu0
        %4267 = vmatprep.mubr.bf16.mxu0 0
        %4268 = vmatmul.mubr.bf16.gmra.mrb[0].mxu0 %v4165
        %v4269 = vpop.f32.mrb[0].mxu0
        %v4270 = vadd.f32 0.0, %v4269
        %v4271 = vpop.f32.mrb[0].mxu0
        %v4272 = vpop.f32.mrb[0].mxu0
        %v4273 = vadd.f32 0.0, %v4272
        %v4274 = vpop.f32.mrb[0].mxu0
        %4275 = vmatprep.mubr.bf16.mxu0 0
        %4276 = vmatmul.mubr.bf16.gmra.mrb[0].mxu0 %v4168
        %v4277 = vpop.f32.mrb[0].mxu0
        %v4278 = vadd.f32 0.0, %v4277
        %v4279 = vpop.f32.mrb[0].mxu0
        %v4280 = vpop.f32.mrb[0].mxu0
        %v4281 = vadd.f32 0.0, %v4280
        %v4282 = vpop.f32.mrb[0].mxu0
        %4283 = vmatprep.mubr.bf16.mxu0 0
        %4284 = vmatmul.mubr.bf16.gmra.mrb[0].mxu0 %v4171
        %v4285 = vpop.f32.mrb[0].mxu0
        %v4286 = vadd.f32 0.0, %v4285
        %v4287 = vpop.f32.mrb[0].mxu0
        %v4288 = vpop.f32.mrb[0].mxu0
        %v4289 = vadd.f32 0.0, %v4288
        %v4290 = vpop.f32.mrb[0].mxu0
        %4291 = vmatprep.mubr.bf16.mxu0 0
        %4292 = vmatmul.mubr.bf16.gmra.mrb[0].mxu0 %v4174
        %v4293 = vpop.f32.mrb[0].mxu0
        %v4294 = vadd.f32 0.0, %v4293
        %v4295 = vpop.f32.mrb[0].mxu0
        %v4296 = vpop.f32.mrb[0].mxu0
        %v4297 = vadd.f32 0.0, %v4296
        %v4298 = vpop.f32.mrb[0].mxu0
        %4299 = vmatprep.mubr.bf16.mxu0 0
        %4300 = vmatmul.mubr.bf16.gmra.mrb[0].mxu0 %v4177
        %v4301 = vpop.f32.mrb[0].mxu0
        %v4302 = vadd.f32 0.0, %v4301
        %v4303 = vpop.f32.mrb[0].mxu0
        %v4304 = vpop.f32.mrb[0].mxu0
        %v4305 = vadd.f32 0.0, %v4304
        %v4306 = vpop.f32.mrb[0].mxu0
        %4307 = vmatprep.mubr.bf16.mxu0 0
        %4308 = vmatmul.mubr.bf16.gmra.mrb[0].mxu0 %v4180
        %v4309 = vpop.f32.mrb[0].mxu0
        %v4310 = vadd.f32 0.0, %v4309
        %v4311 = vpop.f32.mrb[0].mxu0
        %v4312 = vpop.f32.mrb[0].mxu0
        %v4313 = vadd.f32 0.0, %v4312
        %v4314 = vpop.f32.mrb[0].mxu0
        %4315 = vmatprep.mubr.bf16.mxu0 0
        %4316 = vmatmul.mubr.bf16.gmra.mrb[0].mxu0 %v4183
        %v4317 = vpop.f32.mrb[0].mxu0
        %v4318 = vadd.f32 0.0, %v4317
        %v4319 = vpop.f32.mrb[0].mxu0
        %v4320 = vpop.f32.mrb[0].mxu0
        %v4321 = vadd.f32 0.0, %v4320
        %v4322 = vpop.f32.mrb[0].mxu0
        %4323 = vmatprep.mubr.bf16.mxu0 0
        %4324 = vmatmul.mubr.bf16.gmra.mrb[0].mxu0 %v4186
        %v4325 = vpop.f32.mrb[0].mxu0
        %v4326 = vadd.f32 0.0, %v4325
        %v4327 = vpop.f32.mrb[0].mxu0
        %v4328 = vpop.f32.mrb[0].mxu0
        %v4329 = vadd.f32 0.0, %v4328
        %v4330 = vpop.f32.mrb[0].mxu0
        %4331 = vmatprep.mubr.bf16.mxu0 0
        %4332 = vmatmul.mubr.bf16.gmra.mrb[0].mxu0 %v4189
        %v4333 = vpop.f32.mrb[0].mxu0
        %v4334 = vadd.f32 0.0, %v4333
        %v4335 = vpop.f32.mrb[0].mxu0
        %v4336 = vpop.f32.mrb[0].mxu0
        %v4337 = vadd.f32 0.0, %v4336
        %v4338 = vpop.f32.mrb[0].mxu0
        %4339 = vmatprep.mubr.bf16.mxu0 0
        %4340 = vmatmul.mubr.bf16.gmra.mrb[0].mxu0 %v4192
        %v4341 = vpop.f32.mrb[0].mxu0
        %v4342 = vadd.f32 0.0, %v4341
        %v4343 = vpop.f32.mrb[0].mxu0
        %v4344 = vpop.f32.mrb[0].mxu0
        %v4345 = vadd.f32 0.0, %v4344
        %v4346 = vpop.f32.mrb[0].mxu0
        %4347 = vmatprep.mubr.bf16.mxu0 0
        %4348 = vmatmul.mubr.bf16.gmra.mrb[0].mxu0 %v4195
        %v4349 = vpop.f32.mrb[0].mxu0
        %v4350 = vadd.f32 0.0, %v4349
        %v4351 = vpop.f32.mrb[0].mxu0
        %v4352 = vpop.f32.mrb[0].mxu0
        %v4353 = vadd.f32 0.0, %v4352
        %v4354 = vpop.f32.mrb[0].mxu0
        %4355 = vmatprep.mubr.bf16.mxu0 0
        %4356 = vmatmul.mubr.bf16.gmra.mrb[0].mxu0 %v4198
        %v4357 = vpop.f32.mrb[0].mxu0
        %v4358 = vadd.f32 0.0, %v4357
        %v4359 = vpop.f32.mrb[0].mxu0
        %v4360 = vpop.f32.mrb[0].mxu0
        %v4361 = vadd.f32 0.0, %v4360
        %v4362 = vpop.f32.mrb[0].mxu0
        %4363 = vdwg.mxu0
        %v4364 = vadd.f32 %v3894, %v4238
        %v4365 = vadd.f32 %v3895, %v4241
        %v4366 = vadd.f32 %v3896, %v4246
        %v4367 = vadd.f32 %v3897, %v4249
        %v4368 = vadd.f32 %v3898, %v4254
        %v4369 = vadd.f32 %v3899, %v4257
        %v4370 = vadd.f32 %v3900, %v4262
        %v4371 = vadd.f32 %v3901, %v4265
        %v4372 = vadd.f32 %v3902, %v4270
        %v4373 = vadd.f32 %v3903, %v4273
        %v4374 = vadd.f32 %v3904, %v4278
        %v4375 = vadd.f32 %v3905, %v4281
        %v4376 = vadd.f32 %v3906, %v4286
        %v4377 = vadd.f32 %v3907, %v4289
        %v4378 = vadd.f32 %v3908, %v4294
        %v4379 = vadd.f32 %v3909, %v4297
        %v4380 = vadd.f32 %v3910, %v4302
        %v4381 = vadd.f32 %v3911, %v4305
        %v4382 = vadd.f32 %v3912, %v4310
        %v4383 = vadd.f32 %v3913, %v4313
        %v4384 = vadd.f32 %v3914, %v4318
        %v4385 = vadd.f32 %v3915, %v4321
        %v4386 = vadd.f32 %v3916, %v4326
        %v4387 = vadd.f32 %v3917, %v4329
        %v4388 = vadd.f32 %v3918, %v4334
        %v4389 = vadd.f32 %v3919, %v4337
        %v4390 = vadd.f32 %v3920, %v4342
        %v4391 = vadd.f32 %v3921, %v4345
        %v4392 = vadd.f32 %v3922, %v4350
        %v4393 = vadd.f32 %v3923, %v4353
        %v4394 = vadd.f32 %v3924, %v4358
        %v4395 = vadd.f32 %v3925, %v4361
        %s4396 = scalar_lea.vmem [#allocation2], 24
        %v4397 = vld [vmem:[%s4396] sm:$0xf]
        %v4398 = vld [vmem:[%s4396 + $0x4] sm:$0xf]
        %v4399 = vld [vmem:[%s4396 + $0xc] sm:$0xf]
        %v4400 = vld [vmem:[%s4396 + $0x10] sm:$0xf]
        %v4401 = vld [vmem:[%s4396 + $0x18] sm:$0xf]
        %v4402 = vld [vmem:[%s4396 + $0x1c] sm:$0xf]
        %v4403 = vld [vmem:[%s4396 + $0x24] sm:$0xf]
        %v4404 = vld [vmem:[%s4396 + $0x28] sm:$0xf]
        %v4405 = vld [vmem:[%s4396 + $0x30] sm:$0xf]
        %v4406 = vld [vmem:[%s4396 + $0x34] sm:$0xf]
        %v4407 = vld [vmem:[%s4396 + $0x3c] sm:$0xf]
        %v4408 = vld [vmem:[%s4396 + $0x40] sm:$0xf]
        %v4409 = vld [vmem:[%s4396 + $0x48] sm:$0xf]
        %v4410 = vld [vmem:[%s4396 + $0x4c] sm:$0xf]
        %v4411 = vld [vmem:[%s4396 + $0x54] sm:$0xf]
        %v4412 = vld [vmem:[%s4396 + $0x58] sm:$0xf]
        %v4413 = vld [vmem:[%s4396 + $0x60] sm:$0xf]
        %v4414 = vld [vmem:[%s4396 + $0x64] sm:$0xf]
        %v4415 = vld [vmem:[%s4396 + $0x6c] sm:$0xf]
        %v4416 = vld [vmem:[%s4396 + $0x70] sm:$0xf]
        %v4417 = vld [vmem:[%s4396 + $0x78] sm:$0xf]
        %v4418 = vld [vmem:[%s4396 + $0x7c] sm:$0xf]
        %v4419 = vld [vmem:[%s4396 + $0x84] sm:$0xf]
        %v4420 = vld [vmem:[%s4396 + $0x88] sm:$0xf]
        %v4421 = vld [vmem:[%s4396 + $0x90] sm:$0xf]
        %v4422 = vld [vmem:[%s4396 + $0x94] sm:$0xf]
        %v4423 = vld [vmem:[%s4396 + $0x9c] sm:$0xf]
        %v4424 = vld [vmem:[%s4396 + $0xa0] sm:$0xf]
        %v4425 = vld [vmem:[%s4396 + $0xa8] sm:$0xf]
        %v4426 = vld [vmem:[%s4396 + $0xac] sm:$0xf]
        %v4427 = vld [vmem:[%s4396 + $0xb4] sm:$0xf]
        %v4428 = vld [vmem:[%s4396 + $0xb8] sm:$0xf]
        %s4429 = scalar_lea.vmem [#allocation8], 12
        %v4430 = vld [vmem:[%s4429] sm:$0x3]
        %v4463 = vunpack.c.l.b16 %v4397
        %v4464 = vunpack.c.l.b16 %v4398
        %v4465 = vunpack.c.l.b16 %v4399
        %v4466 = vunpack.c.l.b16 %v4400
        %v4467 = vunpack.c.l.b16 %v4401
        %v4468 = vunpack.c.l.b16 %v4402
        %v4469 = vunpack.c.l.b16 %v4403
        %v4470 = vunpack.c.l.b16 %v4404
        %v4471 = vunpack.c.l.b16 %v4405
        %v4472 = vunpack.c.l.b16 %v4406
        %v4473 = vunpack.c.l.b16 %v4407
        %v4474 = vunpack.c.l.b16 %v4408
        %v4475 = vunpack.c.l.b16 %v4409
        %v4476 = vunpack.c.l.b16 %v4410
        %v4477 = vunpack.c.l.b16 %v4411
        %v4478 = vunpack.c.l.b16 %v4412
        %v4479 = vunpack.c.l.b16 %v4413
        %v4480 = vunpack.c.l.b16 %v4414
        %v4481 = vunpack.c.l.b16 %v4415
        %v4482 = vunpack.c.l.b16 %v4416
        %v4483 = vunpack.c.l.b16 %v4417
        %v4484 = vunpack.c.l.b16 %v4418
        %v4485 = vunpack.c.l.b16 %v4419
        %v4486 = vunpack.c.l.b16 %v4420
        %v4487 = vunpack.c.l.b16 %v4421
        %v4488 = vunpack.c.l.b16 %v4422
        %v4489 = vunpack.c.l.b16 %v4423
        %v4490 = vunpack.c.l.b16 %v4424
        %v4491 = vunpack.c.l.b16 %v4425
        %v4492 = vunpack.c.l.b16 %v4426
        %v4493 = vunpack.c.l.b16 %v4427
        %v4494 = vunpack.c.l.b16 %v4428
        %v4495 = vpack.c.b16 %v4464, %v4463
        %v4496 = vpack.c.b16 %v4466, %v4465
        %v4497 = vpack.c.b16 %v4468, %v4467
        %v4498 = vpack.c.b16 %v4470, %v4469
        %v4499 = vpack.c.b16 %v4472, %v4471
        %v4500 = vpack.c.b16 %v4474, %v4473
        %v4501 = vpack.c.b16 %v4476, %v4475
        %v4502 = vpack.c.b16 %v4478, %v4477
        %v4503 = vpack.c.b16 %v4480, %v4479
        %v4504 = vpack.c.b16 %v4482, %v4481
        %v4505 = vpack.c.b16 %v4484, %v4483
        %v4506 = vpack.c.b16 %v4486, %v4485
        %v4507 = vpack.c.b16 %v4488, %v4487
        %v4508 = vpack.c.b16 %v4490, %v4489
        %v4509 = vpack.c.b16 %v4492, %v4491
        %v4510 = vpack.c.b16 %v4494, %v4493
        %v4512 = vsel %vm1879, %v4495, 0
        %v4515 = vsel %vm1879, %v4496, 0
        %v4518 = vsel %vm1879, %v4497, 0
        %v4521 = vsel %vm1879, %v4498, 0
        %v4524 = vsel %vm1879, %v4499, 0
        %v4527 = vsel %vm1879, %v4500, 0
        %v4530 = vsel %vm1879, %v4501, 0
        %v4533 = vsel %vm1879, %v4502, 0
        %v4536 = vsel %vm1879, %v4503, 0
        %v4539 = vsel %vm1879, %v4504, 0
        %v4542 = vsel %vm1879, %v4505, 0
        %v4545 = vsel %vm1879, %v4506, 0
        %v4548 = vsel %vm1879, %v4507, 0
        %v4551 = vsel %vm1879, %v4508, 0
        %v4554 = vsel %vm1879, %v4509, 0
        %v4557 = vsel %vm1879, %v4510, 0
        %v4560 = vsel %vm1928, %v4430, 0
        %4562 = vmatprep.subr.bf16.mxu0 0
        %4563 = vmatpush1.bf16.msra.mxu0 %v4560
        %4564 = vmatprep.subr.bf16.mxu0 0
        %4565 = vmatpush1.bf16.msra.mxu0 0
        %4566 = vmatprep.subr.bf16.mxu0 0
        %4567 = vmatpush1.bf16.msra.mxu0 0
        %4568 = vmatprep.subr.bf16.mxu0 0
        %4569 = vmatpush1.bf16.msra.mxu0 0
        %4570 = vmatprep.subr.bf16.mxu0 0
        %4571 = vmatpush1.bf16.msra.mxu0 0
        %4572 = vmatprep.subr.bf16.mxu0 0
        %4573 = vmatpush1.bf16.msra.mxu0 0
        %4574 = vmatprep.subr.bf16.mxu0 0
        %4575 = vmatpush1.bf16.msra.mxu0 0
        %4576 = vmatprep.subr.bf16.mxu0 0
        %4577 = vmatpush1.bf16.msra.mxu0 0
        %4578 = vmatprep.subr.bf16.mxu0 0
        %4579 = vmatpush1.bf16.msra.mxu0 0
        %4580 = vmatprep.subr.bf16.mxu0 0
        %4581 = vmatpush1.bf16.msra.mxu0 0
        %4582 = vmatprep.subr.bf16.mxu0 0
        %4583 = vmatpush1.bf16.msra.mxu0 0
        %4584 = vmatprep.subr.bf16.mxu0 0
        %4585 = vmatpush1.bf16.msra.mxu0 0
        %4586 = vmatprep.subr.bf16.mxu0 0
        %4587 = vmatpush1.bf16.msra.mxu0 0
        %4588 = vmatprep.subr.bf16.mxu0 0
        %4589 = vmatpush1.bf16.msra.mxu0 0
        %4590 = vmatprep.subr.bf16.mxu0 0
        %4591 = vmatpush1.bf16.msra.mxu0 0
        %4592 = vmatprep.subr.bf16.mxu0 0
        %4593 = vmatpush1.bf16.msra.mxu0 0
        %4594 = vmatprep.mubr.bf16.mxu0 0
        %4595 = vmatmul.mubr.bf16.gmra.mrb[0].mxu0 %v4512
        %v4596 = vpop.f32.mrb[0].mxu0
        %v4597 = vadd.f32 0.0, %v4596
        %v4598 = vpop.f32.mrb[0].mxu0
        %v4599 = vpop.f32.mrb[0].mxu0
        %v4600 = vadd.f32 0.0, %v4599
        %v4601 = vpop.f32.mrb[0].mxu0
        %4602 = vmatprep.mubr.bf16.mxu0 0
        %4603 = vmatmul.mubr.bf16.gmra.mrb[0].mxu0 %v4515
        %v4604 = vpop.f32.mrb[0].mxu0
        %v4605 = vadd.f32 0.0, %v4604
        %v4606 = vpop.f32.mrb[0].mxu0
        %v4607 = vpop.f32.mrb[0].mxu0
        %v4608 = vadd.f32 0.0, %v4607
        %v4609 = vpop.f32.mrb[0].mxu0
        %4610 = vmatprep.mubr.bf16.mxu0 0
        %4611 = vmatmul.mubr.bf16.gmra.mrb[0].mxu0 %v4518
        %v4612 = vpop.f32.mrb[0].mxu0
        %v4613 = vadd.f32 0.0, %v4612
        %v4614 = vpop.f32.mrb[0].mxu0
        %v4615 = vpop.f32.mrb[0].mxu0
        %v4616 = vadd.f32 0.0, %v4615
        %v4617 = vpop.f32.mrb[0].mxu0
        %4618 = vmatprep.mubr.bf16.mxu0 0
        %4619 = vmatmul.mubr.bf16.gmra.mrb[0].mxu0 %v4521
        %v4620 = vpop.f32.mrb[0].mxu0
        %v4621 = vadd.f32 0.0, %v4620
        %v4622 = vpop.f32.mrb[0].mxu0
        %v4623 = vpop.f32.mrb[0].mxu0
        %v4624 = vadd.f32 0.0, %v4623
        %v4625 = vpop.f32.mrb[0].mxu0
        %4626 = vmatprep.mubr.bf16.mxu0 0
        %4627 = vmatmul.mubr.bf16.gmra.mrb[0].mxu0 %v4524
        %v4628 = vpop.f32.mrb[0].mxu0
        %v4629 = vadd.f32 0.0, %v4628
        %v4630 = vpop.f32.mrb[0].mxu0
        %v4631 = vpop.f32.mrb[0].mxu0
        %v4632 = vadd.f32 0.0, %v4631
        %v4633 = vpop.f32.mrb[0].mxu0
        %4634 = vmatprep.mubr.bf16.mxu0 0
        %4635 = vmatmul.mubr.bf16.gmra.mrb[0].mxu0 %v4527
        %v4636 = vpop.f32.mrb[0].mxu0
        %v4637 = vadd.f32 0.0, %v4636
        %v4638 = vpop.f32.mrb[0].mxu0
        %v4639 = vpop.f32.mrb[0].mxu0
        %v4640 = vadd.f32 0.0, %v4639
        %v4641 = vpop.f32.mrb[0].mxu0
        %4642 = vmatprep.mubr.bf16.mxu0 0
        %4643 = vmatmul.mubr.bf16.gmra.mrb[0].mxu0 %v4530
        %v4644 = vpop.f32.mrb[0].mxu0
        %v4645 = vadd.f32 0.0, %v4644
        %v4646 = vpop.f32.mrb[0].mxu0
        %v4647 = vpop.f32.mrb[0].mxu0
        %v4648 = vadd.f32 0.0, %v4647
        %v4649 = vpop.f32.mrb[0].mxu0
        %4650 = vmatprep.mubr.bf16.mxu0 0
        %4651 = vmatmul.mubr.bf16.gmra.mrb[0].mxu0 %v4533
        %v4652 = vpop.f32.mrb[0].mxu0
        %v4653 = vadd.f32 0.0, %v4652
        %v4654 = vpop.f32.mrb[0].mxu0
        %v4655 = vpop.f32.mrb[0].mxu0
        %v4656 = vadd.f32 0.0, %v4655
        %v4657 = vpop.f32.mrb[0].mxu0
        %4658 = vmatprep.mubr.bf16.mxu0 0
        %4659 = vmatmul.mubr.bf16.gmra.mrb[0].mxu0 %v4536
        %v4660 = vpop.f32.mrb[0].mxu0
        %v4661 = vadd.f32 0.0, %v4660
        %v4662 = vpop.f32.mrb[0].mxu0
        %v4663 = vpop.f32.mrb[0].mxu0
        %v4664 = vadd.f32 0.0, %v4663
        %v4665 = vpop.f32.mrb[0].mxu0
        %4666 = vmatprep.mubr.bf16.mxu0 0
        %4667 = vmatmul.mubr.bf16.gmra.mrb[0].mxu0 %v4539
        %v4668 = vpop.f32.mrb[0].mxu0
        %v4669 = vadd.f32 0.0, %v4668
        %v4670 = vpop.f32.mrb[0].mxu0
        %v4671 = vpop.f32.mrb[0].mxu0
        %v4672 = vadd.f32 0.0, %v4671
        %v4673 = vpop.f32.mrb[0].mxu0
        %4674 = vmatprep.mubr.bf16.mxu0 0
        %4675 = vmatmul.mubr.bf16.gmra.mrb[0].mxu0 %v4542
        %v4676 = vpop.f32.mrb[0].mxu0
        %v4677 = vadd.f32 0.0, %v4676
        %v4678 = vpop.f32.mrb[0].mxu0
        %v4679 = vpop.f32.mrb[0].mxu0
        %v4680 = vadd.f32 0.0, %v4679
        %v4681 = vpop.f32.mrb[0].mxu0
        %4682 = vmatprep.mubr.bf16.mxu0 0
        %4683 = vmatmul.mubr.bf16.gmra.mrb[0].mxu0 %v4545
        %v4684 = vpop.f32.mrb[0].mxu0
        %v4685 = vadd.f32 0.0, %v4684
        %v4686 = vpop.f32.mrb[0].mxu0
        %v4687 = vpop.f32.mrb[0].mxu0
        %v4688 = vadd.f32 0.0, %v4687
        %v4689 = vpop.f32.mrb[0].mxu0
        %4690 = vmatprep.mubr.bf16.mxu0 0
        %4691 = vmatmul.mubr.bf16.gmra.mrb[0].mxu0 %v4548
        %v4692 = vpop.f32.mrb[0].mxu0
        %v4693 = vadd.f32 0.0, %v4692
        %v4694 = vpop.f32.mrb[0].mxu0
        %v4695 = vpop.f32.mrb[0].mxu0
        %v4696 = vadd.f32 0.0, %v4695
        %v4697 = vpop.f32.mrb[0].mxu0
        %4698 = vmatprep.mubr.bf16.mxu0 0
        %4699 = vmatmul.mubr.bf16.gmra.mrb[0].mxu0 %v4551
        %v4700 = vpop.f32.mrb[0].mxu0
        %v4701 = vadd.f32 0.0, %v4700
        %v4702 = vpop.f32.mrb[0].mxu0
        %v4703 = vpop.f32.mrb[0].mxu0
        %v4704 = vadd.f32 0.0, %v4703
        %v4705 = vpop.f32.mrb[0].mxu0
        %4706 = vmatprep.mubr.bf16.mxu0 0
        %4707 = vmatmul.mubr.bf16.gmra.mrb[0].mxu0 %v4554
        %v4708 = vpop.f32.mrb[0].mxu0
        %v4709 = vadd.f32 0.0, %v4708
        %v4710 = vpop.f32.mrb[0].mxu0
        %v4711 = vpop.f32.mrb[0].mxu0
        %v4712 = vadd.f32 0.0, %v4711
        %v4713 = vpop.f32.mrb[0].mxu0
        %4714 = vmatprep.mubr.bf16.mxu0 0
        %4715 = vmatmul.mubr.bf16.gmra.mrb[0].mxu0 %v4557
        %v4716 = vpop.f32.mrb[0].mxu0
        %v4717 = vadd.f32 0.0, %v4716
        %v4718 = vpop.f32.mrb[0].mxu0
        %v4719 = vpop.f32.mrb[0].mxu0
        %v4720 = vadd.f32 0.0, %v4719
        %v4721 = vpop.f32.mrb[0].mxu0
        %4722 = vdwg.mxu0
        %v4723 = vadd.f32 %v4364, %v4597
        %v4724 = vadd.f32 %v4365, %v4600
        %v4725 = vadd.f32 %v4366, %v4605
        %v4726 = vadd.f32 %v4367, %v4608
        %v4727 = vadd.f32 %v4368, %v4613
        %v4728 = vadd.f32 %v4369, %v4616
        %v4729 = vadd.f32 %v4370, %v4621
        %v4730 = vadd.f32 %v4371, %v4624
        %v4731 = vadd.f32 %v4372, %v4629
        %v4732 = vadd.f32 %v4373, %v4632
        %v4733 = vadd.f32 %v4374, %v4637
        %v4734 = vadd.f32 %v4375, %v4640
        %v4735 = vadd.f32 %v4376, %v4645
        %v4736 = vadd.f32 %v4377, %v4648
        %v4737 = vadd.f32 %v4378, %v4653
        %v4738 = vadd.f32 %v4379, %v4656
        %v4739 = vadd.f32 %v4380, %v4661
        %v4740 = vadd.f32 %v4381, %v4664
        %v4741 = vadd.f32 %v4382, %v4669
        %v4742 = vadd.f32 %v4383, %v4672
        %v4743 = vadd.f32 %v4384, %v4677
        %v4744 = vadd.f32 %v4385, %v4680
        %v4745 = vadd.f32 %v4386, %v4685
        %v4746 = vadd.f32 %v4387, %v4688
        %v4747 = vadd.f32 %v4388, %v4693
        %v4748 = vadd.f32 %v4389, %v4696
        %v4749 = vadd.f32 %v4390, %v4701
        %v4750 = vadd.f32 %v4391, %v4704
        %v4751 = vadd.f32 %v4392, %v4709
        %v4752 = vadd.f32 %v4393, %v4712
        %v4753 = vadd.f32 %v4394, %v4717
        %v4754 = vadd.f32 %v4395, %v4720
        %v4755 = vld [vmem:[%s4396] sm:$0xf]
        %v4756 = vld [vmem:[%s4396 + $0x4] sm:$0xf]
        %v4757 = vld [vmem:[%s4396 + $0x8] sm:$0x1]
        %v4758 = vld [vmem:[%s4396 + $0xc] sm:$0xf]
        %v4759 = vld [vmem:[%s4396 + $0x10] sm:$0xf]
        %v4760 = vld [vmem:[%s4396 + $0x14] sm:$0x1]
        %v4761 = vld [vmem:[%s4396 + $0x18] sm:$0xf]
        %v4762 = vld [vmem:[%s4396 + $0x1c] sm:$0xf]
        %v4763 = vld [vmem:[%s4396 + $0x20] sm:$0x1]
        %v4764 = vld [vmem:[%s4396 + $0x24] sm:$0xf]
        %v4765 = vld [vmem:[%s4396 + $0x28] sm:$0xf]
        %v4766 = vld [vmem:[%s4396 + $0x2c] sm:$0x1]
        %v4767 = vld [vmem:[%s4396 + $0x30] sm:$0xf]
        %v4768 = vld [vmem:[%s4396 + $0x34] sm:$0xf]
        %v4769 = vld [vmem:[%s4396 + $0x38] sm:$0x1]
        %v4770 = vld [vmem:[%s4396 + $0x3c] sm:$0xf]
        %v4771 = vld [vmem:[%s4396 + $0x40] sm:$0xf]
        %v4772 = vld [vmem:[%s4396 + $0x44] sm:$0x1]
        %v4773 = vld [vmem:[%s4396 + $0x48] sm:$0xf]
        %v4774 = vld [vmem:[%s4396 + $0x4c] sm:$0xf]
        %v4775 = vld [vmem:[%s4396 + $0x50] sm:$0x1]
        %v4776 = vld [vmem:[%s4396 + $0x54] sm:$0xf]
        %v4777 = vld [vmem:[%s4396 + $0x58] sm:$0xf]
        %v4778 = vld [vmem:[%s4396 + $0x5c] sm:$0x1]
        %v4779 = vld [vmem:[%s4396 + $0x60] sm:$0xf]
        %v4780 = vld [vmem:[%s4396 + $0x64] sm:$0xf]
        %v4781 = vld [vmem:[%s4396 + $0x68] sm:$0x1]
        %v4782 = vld [vmem:[%s4396 + $0x6c] sm:$0xf]
        %v4783 = vld [vmem:[%s4396 + $0x70] sm:$0xf]
        %v4784 = vld [vmem:[%s4396 + $0x74] sm:$0x1]
        %v4785 = vld [vmem:[%s4396 + $0x78] sm:$0xf]
        %v4786 = vld [vmem:[%s4396 + $0x7c] sm:$0xf]
        %v4787 = vld [vmem:[%s4396 + $0x80] sm:$0x1]
        %v4788 = vld [vmem:[%s4396 + $0x84] sm:$0xf]
        %v4789 = vld [vmem:[%s4396 + $0x88] sm:$0xf]
        %v4790 = vld [vmem:[%s4396 + $0x8c] sm:$0x1]
        %v4791 = vld [vmem:[%s4396 + $0x90] sm:$0xf]
        %v4792 = vld [vmem:[%s4396 + $0x94] sm:$0xf]
        %v4793 = vld [vmem:[%s4396 + $0x98] sm:$0x1]
        %v4794 = vld [vmem:[%s4396 + $0x9c] sm:$0xf]
        %v4795 = vld [vmem:[%s4396 + $0xa0] sm:$0xf]
        %v4796 = vld [vmem:[%s4396 + $0xa4] sm:$0x1]
        %v4797 = vld [vmem:[%s4396 + $0xa8] sm:$0xf]
        %v4798 = vld [vmem:[%s4396 + $0xac] sm:$0xf]
        %v4799 = vld [vmem:[%s4396 + $0xb0] sm:$0x1]
        %v4800 = vld [vmem:[%s4396 + $0xb4] sm:$0xf]
        %v4801 = vld [vmem:[%s4396 + $0xb8] sm:$0xf]
        %v4802 = vld [vmem:[%s4396 + $0xbc] sm:$0x1]
        %v4804 = vshrl.u32 %v4755, 16
        %v4806 = vrot.slane %v4804, 4
        %v4807 = vshll.u32 %v4755, 16
        %v4809 = vrot.slane %v4807, 5
        %v4810 = vor.u32 %v4806, %v4809
        %v4811 = vrot.slane %v4810, 4
        %v4813 = vshll.u32 %v4756, 16
        %v4815 = vrot.slane %v4813, 5
        %v4816 = vsel %vm1444, %v4811, %v4815
        %v4817 = vshrl.u32 %v4756, 16
        %v4819 = vrot.slane %v4817, 4
        %v4820 = vor.u32 %v4819, %v4815
        %v4821 = vrot.slane %v4820, 4
        %v4823 = vshll.u32 %v4757, 16
        %v4825 = vrot.slane %v4823, 5
        %v4826 = vsel %vm1444, %v4821, %v4825
        %v4828 = vshrl.u32 %v4758, 16
        %v4830 = vrot.slane %v4828, 4
        %v4831 = vshll.u32 %v4758, 16
        %v4833 = vrot.slane %v4831, 5
        %v4834 = vor.u32 %v4830, %v4833
        %v4835 = vrot.slane %v4834, 4
        %v4837 = vshll.u32 %v4759, 16
        %v4839 = vrot.slane %v4837, 5
        %v4840 = vsel %vm1444, %v4835, %v4839
        %v4841 = vshrl.u32 %v4759, 16
        %v4843 = vrot.slane %v4841, 4
        %v4844 = vor.u32 %v4843, %v4839
        %v4845 = vrot.slane %v4844, 4
        %v4847 = vshll.u32 %v4760, 16
        %v4849 = vrot.slane %v4847, 5
        %v4850 = vsel %vm1444, %v4845, %v4849
        %v4852 = vshrl.u32 %v4761, 16
        %v4854 = vrot.slane %v4852, 4
        %v4855 = vshll.u32 %v4761, 16
        %v4857 = vrot.slane %v4855, 5
        %v4858 = vor.u32 %v4854, %v4857
        %v4859 = vrot.slane %v4858, 4
        %v4861 = vshll.u32 %v4762, 16
        %v4863 = vrot.slane %v4861, 5
        %v4864 = vsel %vm1444, %v4859, %v4863
        %v4865 = vshrl.u32 %v4762, 16
        %v4867 = vrot.slane %v4865, 4
        %v4868 = vor.u32 %v4867, %v4863
        %v4869 = vrot.slane %v4868, 4
        %v4871 = vshll.u32 %v4763, 16
        %v4873 = vrot.slane %v4871, 5
        %v4874 = vsel %vm1444, %v4869, %v4873
        %v4876 = vshrl.u32 %v4764, 16
        %v4878 = vrot.slane %v4876, 4
        %v4879 = vshll.u32 %v4764, 16
        %v4881 = vrot.slane %v4879, 5
        %v4882 = vor.u32 %v4878, %v4881
        %v4883 = vrot.slane %v4882, 4
        %v4885 = vshll.u32 %v4765, 16
        %v4887 = vrot.slane %v4885, 5
        %v4888 = vsel %vm1444, %v4883, %v4887
        %v4889 = vshrl.u32 %v4765, 16
        %v4891 = vrot.slane %v4889, 4
        %v4892 = vor.u32 %v4891, %v4887
        %v4893 = vrot.slane %v4892, 4
        %v4895 = vshll.u32 %v4766, 16
        %v4897 = vrot.slane %v4895, 5
        %v4898 = vsel %vm1444, %v4893, %v4897
        %v4900 = vshrl.u32 %v4767, 16
        %v4902 = vrot.slane %v4900, 4
        %v4903 = vshll.u32 %v4767, 16
        %v4905 = vrot.slane %v4903, 5
        %v4906 = vor.u32 %v4902, %v4905
        %v4907 = vrot.slane %v4906, 4
        %v4909 = vshll.u32 %v4768, 16
        %v4911 = vrot.slane %v4909, 5
        %v4912 = vsel %vm1444, %v4907, %v4911
        %v4913 = vshrl.u32 %v4768, 16
        %v4915 = vrot.slane %v4913, 4
        %v4916 = vor.u32 %v4915, %v4911
        %v4917 = vrot.slane %v4916, 4
        %v4919 = vshll.u32 %v4769, 16
        %v4921 = vrot.slane %v4919, 5
        %v4922 = vsel %vm1444, %v4917, %v4921
        %v4924 = vshrl.u32 %v4770, 16
        %v4926 = vrot.slane %v4924, 4
        %v4927 = vshll.u32 %v4770, 16
        %v4929 = vrot.slane %v4927, 5
        %v4930 = vor.u32 %v4926, %v4929
        %v4931 = vrot.slane %v4930, 4
        %v4933 = vshll.u32 %v4771, 16
        %v4935 = vrot.slane %v4933, 5
        %v4936 = vsel %vm1444, %v4931, %v4935
        %v4937 = vshrl.u32 %v4771, 16
        %v4939 = vrot.slane %v4937, 4
        %v4940 = vor.u32 %v4939, %v4935
        %v4941 = vrot.slane %v4940, 4
        %v4943 = vshll.u32 %v4772, 16
        %v4945 = vrot.slane %v4943, 5
        %v4946 = vsel %vm1444, %v4941, %v4945
        %v4948 = vshrl.u32 %v4773, 16
        %v4950 = vrot.slane %v4948, 4
        %v4951 = vshll.u32 %v4773, 16
        %v4953 = vrot.slane %v4951, 5
        %v4954 = vor.u32 %v4950, %v4953
        %v4955 = vrot.slane %v4954, 4
        %v4957 = vshll.u32 %v4774, 16
        %v4959 = vrot.slane %v4957, 5
        %v4960 = vsel %vm1444, %v4955, %v4959
        %v4961 = vshrl.u32 %v4774, 16
        %v4963 = vrot.slane %v4961, 4
        %v4964 = vor.u32 %v4963, %v4959
        %v4965 = vrot.slane %v4964, 4
        %v4967 = vshll.u32 %v4775, 16
        %v4969 = vrot.slane %v4967, 5
        %v4970 = vsel %vm1444, %v4965, %v4969
        %v4972 = vshrl.u32 %v4776, 16
        %v4974 = vrot.slane %v4972, 4
        %v4975 = vshll.u32 %v4776, 16
        %v4977 = vrot.slane %v4975, 5
        %v4978 = vor.u32 %v4974, %v4977
        %v4979 = vrot.slane %v4978, 4
        %v4981 = vshll.u32 %v4777, 16
        %v4983 = vrot.slane %v4981, 5
        %v4984 = vsel %vm1444, %v4979, %v4983
        %v4985 = vshrl.u32 %v4777, 16
        %v4987 = vrot.slane %v4985, 4
        %v4988 = vor.u32 %v4987, %v4983
        %v4989 = vrot.slane %v4988, 4
        %v4991 = vshll.u32 %v4778, 16
        %v4993 = vrot.slane %v4991, 5
        %v4994 = vsel %vm1444, %v4989, %v4993
        %v4996 = vshrl.u32 %v4779, 16
        %v4998 = vrot.slane %v4996, 4
        %v4999 = vshll.u32 %v4779, 16
        %v5001 = vrot.slane %v4999, 5
        %v5002 = vor.u32 %v4998, %v5001
        %v5003 = vrot.slane %v5002, 4
        %v5005 = vshll.u32 %v4780, 16
        %v5007 = vrot.slane %v5005, 5
        %v5008 = vsel %vm1444, %v5003, %v5007
        %v5009 = vshrl.u32 %v4780, 16
        %v5011 = vrot.slane %v5009, 4
        %v5012 = vor.u32 %v5011, %v5007
        %v5013 = vrot.slane %v5012, 4
        %v5015 = vshll.u32 %v4781, 16
        %v5017 = vrot.slane %v5015, 5
        %v5018 = vsel %vm1444, %v5013, %v5017
        %v5020 = vshrl.u32 %v4782, 16
        %v5022 = vrot.slane %v5020, 4
        %v5023 = vshll.u32 %v4782, 16
        %v5025 = vrot.slane %v5023, 5
        %v5026 = vor.u32 %v5022, %v5025
        %v5027 = vrot.slane %v5026, 4
        %v5029 = vshll.u32 %v4783, 16
        %v5031 = vrot.slane %v5029, 5
        %v5032 = vsel %vm1444, %v5027, %v5031
        %v5033 = vshrl.u32 %v4783, 16
        %v5035 = vrot.slane %v5033, 4
        %v5036 = vor.u32 %v5035, %v5031
        %v5037 = vrot.slane %v5036, 4
        %v5039 = vshll.u32 %v4784, 16
        %v5041 = vrot.slane %v5039, 5
        %v5042 = vsel %vm1444, %v5037, %v5041
        %v5044 = vshrl.u32 %v4785, 16
        %v5046 = vrot.slane %v5044, 4
        %v5047 = vshll.u32 %v4785, 16
        %v5049 = vrot.slane %v5047, 5
        %v5050 = vor.u32 %v5046, %v5049
        %v5051 = vrot.slane %v5050, 4
        %v5053 = vshll.u32 %v4786, 16
        %v5055 = vrot.slane %v5053, 5
        %v5056 = vsel %vm1444, %v5051, %v5055
        %v5057 = vshrl.u32 %v4786, 16
        %v5059 = vrot.slane %v5057, 4
        %v5060 = vor.u32 %v5059, %v5055
        %v5061 = vrot.slane %v5060, 4
        %v5063 = vshll.u32 %v4787, 16
        %v5065 = vrot.slane %v5063, 5
        %v5066 = vsel %vm1444, %v5061, %v5065
        %v5068 = vshrl.u32 %v4788, 16
        %v5070 = vrot.slane %v5068, 4
        %v5071 = vshll.u32 %v4788, 16
        %v5073 = vrot.slane %v5071, 5
        %v5074 = vor.u32 %v5070, %v5073
        %v5075 = vrot.slane %v5074, 4
        %v5077 = vshll.u32 %v4789, 16
        %v5079 = vrot.slane %v5077, 5
        %v5080 = vsel %vm1444, %v5075, %v5079
        %v5081 = vshrl.u32 %v4789, 16
        %v5083 = vrot.slane %v5081, 4
        %v5084 = vor.u32 %v5083, %v5079
        %v5085 = vrot.slane %v5084, 4
        %v5087 = vshll.u32 %v4790, 16
        %v5089 = vrot.slane %v5087, 5
        %v5090 = vsel %vm1444, %v5085, %v5089
        %v5092 = vshrl.u32 %v4791, 16
        %v5094 = vrot.slane %v5092, 4
        %v5095 = vshll.u32 %v4791, 16
        %v5097 = vrot.slane %v5095, 5
        %v5098 = vor.u32 %v5094, %v5097
        %v5099 = vrot.slane %v5098, 4
        %v5101 = vshll.u32 %v4792, 16
        %v5103 = vrot.slane %v5101, 5
        %v5104 = vsel %vm1444, %v5099, %v5103
        %v5105 = vshrl.u32 %v4792, 16
        %v5107 = vrot.slane %v5105, 4
        %v5108 = vor.u32 %v5107, %v5103
        %v5109 = vrot.slane %v5108, 4
        %v5111 = vshll.u32 %v4793, 16
        %v5113 = vrot.slane %v5111, 5
        %v5114 = vsel %vm1444, %v5109, %v5113
        %v5116 = vshrl.u32 %v4794, 16
        %v5118 = vrot.slane %v5116, 4
        %v5119 = vshll.u32 %v4794, 16
        %v5121 = vrot.slane %v5119, 5
        %v5122 = vor.u32 %v5118, %v5121
        %v5123 = vrot.slane %v5122, 4
        %v5125 = vshll.u32 %v4795, 16
        %v5127 = vrot.slane %v5125, 5
        %v5128 = vsel %vm1444, %v5123, %v5127
        %v5129 = vshrl.u32 %v4795, 16
        %v5131 = vrot.slane %v5129, 4
        %v5132 = vor.u32 %v5131, %v5127
        %v5133 = vrot.slane %v5132, 4
        %v5135 = vshll.u32 %v4796, 16
        %v5137 = vrot.slane %v5135, 5
        %v5138 = vsel %vm1444, %v5133, %v5137
        %v5140 = vshrl.u32 %v4797, 16
        %v5142 = vrot.slane %v5140, 4
        %v5143 = vshll.u32 %v4797, 16
        %v5145 = vrot.slane %v5143, 5
        %v5146 = vor.u32 %v5142, %v5145
        %v5147 = vrot.slane %v5146, 4
        %v5149 = vshll.u32 %v4798, 16
        %v5151 = vrot.slane %v5149, 5
        %v5152 = vsel %vm1444, %v5147, %v5151
        %v5153 = vshrl.u32 %v4798, 16
        %v5155 = vrot.slane %v5153, 4
        %v5156 = vor.u32 %v5155, %v5151
        %v5157 = vrot.slane %v5156, 4
        %v5159 = vshll.u32 %v4799, 16
        %v5161 = vrot.slane %v5159, 5
        %v5162 = vsel %vm1444, %v5157, %v5161
        %v5164 = vshrl.u32 %v4800, 16
        %v5166 = vrot.slane %v5164, 4
        %v5167 = vshll.u32 %v4800, 16
        %v5169 = vrot.slane %v5167, 5
        %v5170 = vor.u32 %v5166, %v5169
        %v5171 = vrot.slane %v5170, 4
        %v5173 = vshll.u32 %v4801, 16
        %v5175 = vrot.slane %v5173, 5
        %v5176 = vsel %vm1444, %v5171, %v5175
        %v5177 = vshrl.u32 %v4801, 16
        %v5179 = vrot.slane %v5177, 4
        %v5180 = vor.u32 %v5179, %v5175
        %v5181 = vrot.slane %v5180, 4
        %v5183 = vshll.u32 %v4802, 16
        %v5185 = vrot.slane %v5183, 5
        %v5186 = vsel %vm1444, %v5181, %v5185
        %s5187 = scalar_lea.vmem [#allocation8], 14
        %v5188 = vld [vmem:[%s5187] sm:$0x3]
        %v5189 = vunpack.c.l.b16 %v4816
        %v5190 = vunpack.c.l.b16 %v4826
        %v5191 = vunpack.c.l.b16 %v4840
        %v5192 = vunpack.c.l.b16 %v4850
        %v5193 = vunpack.c.l.b16 %v4864
        %v5194 = vunpack.c.l.b16 %v4874
        %v5195 = vunpack.c.l.b16 %v4888
        %v5196 = vunpack.c.l.b16 %v4898
        %v5197 = vunpack.c.l.b16 %v4912
        %v5198 = vunpack.c.l.b16 %v4922
        %v5199 = vunpack.c.l.b16 %v4936
        %v5200 = vunpack.c.l.b16 %v4946
        %v5201 = vunpack.c.l.b16 %v4960
        %v5202 = vunpack.c.l.b16 %v4970
        %v5203 = vunpack.c.l.b16 %v4984
        %v5204 = vunpack.c.l.b16 %v4994
        %v5205 = vunpack.c.l.b16 %v5008
        %v5206 = vunpack.c.l.b16 %v5018
        %v5207 = vunpack.c.l.b16 %v5032
        %v5208 = vunpack.c.l.b16 %v5042
        %v5209 = vunpack.c.l.b16 %v5056
        %v5210 = vunpack.c.l.b16 %v5066
        %v5211 = vunpack.c.l.b16 %v5080
        %v5212 = vunpack.c.l.b16 %v5090
        %v5213 = vunpack.c.l.b16 %v5104
        %v5214 = vunpack.c.l.b16 %v5114
        %v5215 = vunpack.c.l.b16 %v5128
        %v5216 = vunpack.c.l.b16 %v5138
        %v5217 = vunpack.c.l.b16 %v5152
        %v5218 = vunpack.c.l.b16 %v5162
        %v5219 = vunpack.c.l.b16 %v5176
        %v5220 = vunpack.c.l.b16 %v5186
        %v5221 = vpack.c.b16 %v5190, %v5189
        %v5222 = vpack.c.b16 %v5192, %v5191
        %v5223 = vpack.c.b16 %v5194, %v5193
        %v5224 = vpack.c.b16 %v5196, %v5195
        %v5225 = vpack.c.b16 %v5198, %v5197
        %v5226 = vpack.c.b16 %v5200, %v5199
        %v5227 = vpack.c.b16 %v5202, %v5201
        %v5228 = vpack.c.b16 %v5204, %v5203
        %v5229 = vpack.c.b16 %v5206, %v5205
        %v5230 = vpack.c.b16 %v5208, %v5207
        %v5231 = vpack.c.b16 %v5210, %v5209
        %v5232 = vpack.c.b16 %v5212, %v5211
        %v5233 = vpack.c.b16 %v5214, %v5213
        %v5234 = vpack.c.b16 %v5216, %v5215
        %v5235 = vpack.c.b16 %v5218, %v5217
        %v5236 = vpack.c.b16 %v5220, %v5219
        %v5238 = vsel %vm1879, %v5221, 0
        %v5241 = vsel %vm1879, %v5222, 0
        %v5244 = vsel %vm1879, %v5223, 0
        %v5247 = vsel %vm1879, %v5224, 0
        %v5250 = vsel %vm1879, %v5225, 0
        %v5253 = vsel %vm1879, %v5226, 0
        %v5256 = vsel %vm1879, %v5227, 0
        %v5259 = vsel %vm1879, %v5228, 0
        %v5262 = vsel %vm1879, %v5229, 0
        %v5265 = vsel %vm1879, %v5230, 0
        %v5268 = vsel %vm1879, %v5231, 0
        %v5271 = vsel %vm1879, %v5232, 0
        %v5274 = vsel %vm1879, %v5233, 0
        %v5277 = vsel %vm1879, %v5234, 0
        %v5280 = vsel %vm1879, %v5235, 0
        %v5283 = vsel %vm1879, %v5236, 0
        %v5286 = vsel %vm1928, %v5188, 0
        %5288 = vmatprep.subr.bf16.mxu0 0
        %5289 = vmatpush1.bf16.msra.mxu0 %v5286
        %5290 = vmatprep.subr.bf16.mxu0 0
        %5291 = vmatpush1.bf16.msra.mxu0 0
        %5292 = vmatprep.subr.bf16.mxu0 0
        %5293 = vmatpush1.bf16.msra.mxu0 0
        %5294 = vmatprep.subr.bf16.mxu0 0
        %5295 = vmatpush1.bf16.msra.mxu0 0
        %5296 = vmatprep.subr.bf16.mxu0 0
        %5297 = vmatpush1.bf16.msra.mxu0 0
        %5298 = vmatprep.subr.bf16.mxu0 0
        %5299 = vmatpush1.bf16.msra.mxu0 0
        %5300 = vmatprep.subr.bf16.mxu0 0
        %5301 = vmatpush1.bf16.msra.mxu0 0
        %5302 = vmatprep.subr.bf16.mxu0 0
        %5303 = vmatpush1.bf16.msra.mxu0 0
        %5304 = vmatprep.subr.bf16.mxu0 0
        %5305 = vmatpush1.bf16.msra.mxu0 0
        %5306 = vmatprep.subr.bf16.mxu0 0
        %5307 = vmatpush1.bf16.msra.mxu0 0
        %5308 = vmatprep.subr.bf16.mxu0 0
        %5309 = vmatpush1.bf16.msra.mxu0 0
        %5310 = vmatprep.subr.bf16.mxu0 0
        %5311 = vmatpush1.bf16.msra.mxu0 0
        %5312 = vmatprep.subr.bf16.mxu0 0
        %5313 = vmatpush1.bf16.msra.mxu0 0
        %5314 = vmatprep.subr.bf16.mxu0 0
        %5315 = vmatpush1.bf16.msra.mxu0 0
        %5316 = vmatprep.subr.bf16.mxu0 0
        %5317 = vmatpush1.bf16.msra.mxu0 0
        %5318 = vmatprep.subr.bf16.mxu0 0
        %5319 = vmatpush1.bf16.msra.mxu0 0
        %5320 = vmatprep.mubr.bf16.mxu0 0
        %5321 = vmatmul.mubr.bf16.gmra.mrb[0].mxu0 %v5238
        %v5322 = vpop.f32.mrb[0].mxu0
        %v5323 = vadd.f32 0.0, %v5322
        %v5324 = vpop.f32.mrb[0].mxu0
        %v5325 = vpop.f32.mrb[0].mxu0
        %v5326 = vadd.f32 0.0, %v5325
        %v5327 = vpop.f32.mrb[0].mxu0
        %5328 = vmatprep.mubr.bf16.mxu0 0
        %5329 = vmatmul.mubr.bf16.gmra.mrb[0].mxu0 %v5241
        %v5330 = vpop.f32.mrb[0].mxu0
        %v5331 = vadd.f32 0.0, %v5330
        %v5332 = vpop.f32.mrb[0].mxu0
        %v5333 = vpop.f32.mrb[0].mxu0
        %v5334 = vadd.f32 0.0, %v5333
        %v5335 = vpop.f32.mrb[0].mxu0
        %5336 = vmatprep.mubr.bf16.mxu0 0
        %5337 = vmatmul.mubr.bf16.gmra.mrb[0].mxu0 %v5244
        %v5338 = vpop.f32.mrb[0].mxu0
        %v5339 = vadd.f32 0.0, %v5338
        %v5340 = vpop.f32.mrb[0].mxu0
        %v5341 = vpop.f32.mrb[0].mxu0
        %v5342 = vadd.f32 0.0, %v5341
        %v5343 = vpop.f32.mrb[0].mxu0
        %5344 = vmatprep.mubr.bf16.mxu0 0
        %5345 = vmatmul.mubr.bf16.gmra.mrb[0].mxu0 %v5247
        %v5346 = vpop.f32.mrb[0].mxu0
        %v5347 = vadd.f32 0.0, %v5346
        %v5348 = vpop.f32.mrb[0].mxu0
        %v5349 = vpop.f32.mrb[0].mxu0
        %v5350 = vadd.f32 0.0, %v5349
        %v5351 = vpop.f32.mrb[0].mxu0
        %5352 = vmatprep.mubr.bf16.mxu0 0
        %5353 = vmatmul.mubr.bf16.gmra.mrb[0].mxu0 %v5250
        %v5354 = vpop.f32.mrb[0].mxu0
        %v5355 = vadd.f32 0.0, %v5354
        %v5356 = vpop.f32.mrb[0].mxu0
        %v5357 = vpop.f32.mrb[0].mxu0
        %v5358 = vadd.f32 0.0, %v5357
        %v5359 = vpop.f32.mrb[0].mxu0
        %5360 = vmatprep.mubr.bf16.mxu0 0
        %5361 = vmatmul.mubr.bf16.gmra.mrb[0].mxu0 %v5253
        %v5362 = vpop.f32.mrb[0].mxu0
        %v5363 = vadd.f32 0.0, %v5362
        %v5364 = vpop.f32.mrb[0].mxu0
        %v5365 = vpop.f32.mrb[0].mxu0
        %v5366 = vadd.f32 0.0, %v5365
        %v5367 = vpop.f32.mrb[0].mxu0
        %5368 = vmatprep.mubr.bf16.mxu0 0
        %5369 = vmatmul.mubr.bf16.gmra.mrb[0].mxu0 %v5256
        %v5370 = vpop.f32.mrb[0].mxu0
        %v5371 = vadd.f32 0.0, %v5370
        %v5372 = vpop.f32.mrb[0].mxu0
        %v5373 = vpop.f32.mrb[0].mxu0
        %v5374 = vadd.f32 0.0, %v5373
        %v5375 = vpop.f32.mrb[0].mxu0
        %5376 = vmatprep.mubr.bf16.mxu0 0
        %5377 = vmatmul.mubr.bf16.gmra.mrb[0].mxu0 %v5259
        %v5378 = vpop.f32.mrb[0].mxu0
        %v5379 = vadd.f32 0.0, %v5378
        %v5380 = vpop.f32.mrb[0].mxu0
        %v5381 = vpop.f32.mrb[0].mxu0
        %v5382 = vadd.f32 0.0, %v5381
        %v5383 = vpop.f32.mrb[0].mxu0
        %5384 = vmatprep.mubr.bf16.mxu0 0
        %5385 = vmatmul.mubr.bf16.gmra.mrb[0].mxu0 %v5262
        %v5386 = vpop.f32.mrb[0].mxu0
        %v5387 = vadd.f32 0.0, %v5386
        %v5388 = vpop.f32.mrb[0].mxu0
        %v5389 = vpop.f32.mrb[0].mxu0
        %v5390 = vadd.f32 0.0, %v5389
        %v5391 = vpop.f32.mrb[0].mxu0
        %5392 = vmatprep.mubr.bf16.mxu0 0
        %5393 = vmatmul.mubr.bf16.gmra.mrb[0].mxu0 %v5265
        %v5394 = vpop.f32.mrb[0].mxu0
        %v5395 = vadd.f32 0.0, %v5394
        %v5396 = vpop.f32.mrb[0].mxu0
        %v5397 = vpop.f32.mrb[0].mxu0
        %v5398 = vadd.f32 0.0, %v5397
        %v5399 = vpop.f32.mrb[0].mxu0
        %5400 = vmatprep.mubr.bf16.mxu0 0
        %5401 = vmatmul.mubr.bf16.gmra.mrb[0].mxu0 %v5268
        %v5402 = vpop.f32.mrb[0].mxu0
        %v5403 = vadd.f32 0.0, %v5402
        %v5404 = vpop.f32.mrb[0].mxu0
        %v5405 = vpop.f32.mrb[0].mxu0
        %v5406 = vadd.f32 0.0, %v5405
        %v5407 = vpop.f32.mrb[0].mxu0
        %5408 = vmatprep.mubr.bf16.mxu0 0
        %5409 = vmatmul.mubr.bf16.gmra.mrb[0].mxu0 %v5271
        %v5410 = vpop.f32.mrb[0].mxu0
        %v5411 = vadd.f32 0.0, %v5410
        %v5412 = vpop.f32.mrb[0].mxu0
        %v5413 = vpop.f32.mrb[0].mxu0
        %v5414 = vadd.f32 0.0, %v5413
        %v5415 = vpop.f32.mrb[0].mxu0
        %5416 = vmatprep.mubr.bf16.mxu0 0
        %5417 = vmatmul.mubr.bf16.gmra.mrb[0].mxu0 %v5274
        %v5418 = vpop.f32.mrb[0].mxu0
        %v5419 = vadd.f32 0.0, %v5418
        %v5420 = vpop.f32.mrb[0].mxu0
        %v5421 = vpop.f32.mrb[0].mxu0
        %v5422 = vadd.f32 0.0, %v5421
        %v5423 = vpop.f32.mrb[0].mxu0
        %5424 = vmatprep.mubr.bf16.mxu0 0
        %5425 = vmatmul.mubr.bf16.gmra.mrb[0].mxu0 %v5277
        %v5426 = vpop.f32.mrb[0].mxu0
        %v5427 = vadd.f32 0.0, %v5426
        %v5428 = vpop.f32.mrb[0].mxu0
        %v5429 = vpop.f32.mrb[0].mxu0
        %v5430 = vadd.f32 0.0, %v5429
        %v5431 = vpop.f32.mrb[0].mxu0
        %5432 = vmatprep.mubr.bf16.mxu0 0
        %5433 = vmatmul.mubr.bf16.gmra.mrb[0].mxu0 %v5280
        %v5434 = vpop.f32.mrb[0].mxu0
        %v5435 = vadd.f32 0.0, %v5434
        %v5436 = vpop.f32.mrb[0].mxu0
        %v5437 = vpop.f32.mrb[0].mxu0
        %v5438 = vadd.f32 0.0, %v5437
        %v5439 = vpop.f32.mrb[0].mxu0
        %5440 = vmatprep.mubr.bf16.mxu0 0
        %5441 = vmatmul.mubr.bf16.gmra.mrb[0].mxu0 %v5283
        %v5442 = vpop.f32.mrb[0].mxu0
        %v5443 = vadd.f32 0.0, %v5442
        %v5444 = vpop.f32.mrb[0].mxu0
        %v5445 = vpop.f32.mrb[0].mxu0
        %v5446 = vadd.f32 0.0, %v5445
        %v5447 = vpop.f32.mrb[0].mxu0
        %5448 = vdwg.mxu0
        %v5449 = vadd.f32 %v4723, %v5323
        %v5450 = vadd.f32 %v4724, %v5326
        %v5451 = vadd.f32 %v4725, %v5331
        %v5452 = vadd.f32 %v4726, %v5334
        %v5453 = vadd.f32 %v4727, %v5339
        %v5454 = vadd.f32 %v4728, %v5342
        %v5455 = vadd.f32 %v4729, %v5347
        %v5456 = vadd.f32 %v4730, %v5350
        %v5457 = vadd.f32 %v4731, %v5355
        %v5458 = vadd.f32 %v4732, %v5358
        %v5459 = vadd.f32 %v4733, %v5363
        %v5460 = vadd.f32 %v4734, %v5366
        %v5461 = vadd.f32 %v4735, %v5371
        %v5462 = vadd.f32 %v4736, %v5374
        %v5463 = vadd.f32 %v4737, %v5379
        %v5464 = vadd.f32 %v4738, %v5382
        %v5465 = vadd.f32 %v4739, %v5387
        %v5466 = vadd.f32 %v4740, %v5390
        %v5467 = vadd.f32 %v4741, %v5395
        %v5468 = vadd.f32 %v4742, %v5398
        %v5469 = vadd.f32 %v4743, %v5403
        %v5470 = vadd.f32 %v4744, %v5406
        %v5471 = vadd.f32 %v4745, %v5411
        %v5472 = vadd.f32 %v4746, %v5414
        %v5473 = vadd.f32 %v4747, %v5419
        %v5474 = vadd.f32 %v4748, %v5422
        %v5475 = vadd.f32 %v4749, %v5427
        %v5476 = vadd.f32 %v4750, %v5430
        %v5477 = vadd.f32 %v4751, %v5435
        %v5478 = vadd.f32 %v4752, %v5438
        %v5479 = vadd.f32 %v4753, %v5443
        %v5480 = vadd.f32 %v4754, %v5446
        %v5481 = vld [vmem:[%s4396] sm:$0xe]
        %v5482 = vld [vmem:[%s4396 + $0xc] sm:$0xe]
        %v5483 = vld [vmem:[%s4396 + $0x18] sm:$0xe]
        %v5484 = vld [vmem:[%s4396 + $0x24] sm:$0xe]
        %v5485 = vld [vmem:[%s4396 + $0x30] sm:$0xe]
        %v5486 = vld [vmem:[%s4396 + $0x3c] sm:$0xe]
        %v5487 = vld [vmem:[%s4396 + $0x48] sm:$0xe]
        %v5488 = vld [vmem:[%s4396 + $0x54] sm:$0xe]
        %v5489 = vld [vmem:[%s4396 + $0x60] sm:$0xe]
        %v5490 = vld [vmem:[%s4396 + $0x6c] sm:$0xe]
        %v5491 = vld [vmem:[%s4396 + $0x78] sm:$0xe]
        %v5492 = vld [vmem:[%s4396 + $0x84] sm:$0xe]
        %v5493 = vld [vmem:[%s4396 + $0x90] sm:$0xe]
        %v5494 = vld [vmem:[%s4396 + $0x9c] sm:$0xe]
        %v5495 = vld [vmem:[%s4396 + $0xa8] sm:$0xe]
        %v5496 = vld [vmem:[%s4396 + $0xb4] sm:$0xe]
        %v5545 = vrot.slane %v5481, 5
        %v5546 = vrot.slane %v5545, 4
        %v5547 = vrot.slane %v4756, 5
        %v5548 = vsel %vm2435, %v5546, %v5547
        %v5549 = vrot.slane %v5547, 4
        %v5550 = vrot.slane %v4757, 5
        %v5551 = vsel %vm2435, %v5549, %v5550
        %v5552 = vrot.slane %v5482, 5
        %v5553 = vrot.slane %v5552, 4
        %v5554 = vrot.slane %v4759, 5
        %v5555 = vsel %vm2435, %v5553, %v5554
        %v5556 = vrot.slane %v5554, 4
        %v5557 = vrot.slane %v4760, 5
        %v5558 = vsel %vm2435, %v5556, %v5557
        %v5559 = vrot.slane %v5483, 5
        %v5560 = vrot.slane %v5559, 4
        %v5561 = vrot.slane %v4762, 5
        %v5562 = vsel %vm2435, %v5560, %v5561
        %v5563 = vrot.slane %v5561, 4
        %v5564 = vrot.slane %v4763, 5
        %v5565 = vsel %vm2435, %v5563, %v5564
        %v5566 = vrot.slane %v5484, 5
        %v5567 = vrot.slane %v5566, 4
        %v5568 = vrot.slane %v4765, 5
        %v5569 = vsel %vm2435, %v5567, %v5568
        %v5570 = vrot.slane %v5568, 4
        %v5571 = vrot.slane %v4766, 5
        %v5572 = vsel %vm2435, %v5570, %v5571
        %v5573 = vrot.slane %v5485, 5
        %v5574 = vrot.slane %v5573, 4
        %v5575 = vrot.slane %v4768, 5
        %v5576 = vsel %vm2435, %v5574, %v5575
        %v5577 = vrot.slane %v5575, 4
        %v5578 = vrot.slane %v4769, 5
        %v5579 = vsel %vm2435, %v5577, %v5578
        %v5580 = vrot.slane %v5486, 5
        %v5581 = vrot.slane %v5580, 4
        %v5582 = vrot.slane %v4771, 5
        %v5583 = vsel %vm2435, %v5581, %v5582
        %v5584 = vrot.slane %v5582, 4
        %v5585 = vrot.slane %v4772, 5
        %v5586 = vsel %vm2435, %v5584, %v5585
        %v5587 = vrot.slane %v5487, 5
        %v5588 = vrot.slane %v5587, 4
        %v5589 = vrot.slane %v4774, 5
        %v5590 = vsel %vm2435, %v5588, %v5589
        %v5591 = vrot.slane %v5589, 4
        %v5592 = vrot.slane %v4775, 5
        %v5593 = vsel %vm2435, %v5591, %v5592
        %v5594 = vrot.slane %v5488, 5
        %v5595 = vrot.slane %v5594, 4
        %v5596 = vrot.slane %v4777, 5
        %v5597 = vsel %vm2435, %v5595, %v5596
        %v5598 = vrot.slane %v5596, 4
        %v5599 = vrot.slane %v4778, 5
        %v5600 = vsel %vm2435, %v5598, %v5599
        %v5601 = vrot.slane %v5489, 5
        %v5602 = vrot.slane %v5601, 4
        %v5603 = vrot.slane %v4780, 5
        %v5604 = vsel %vm2435, %v5602, %v5603
        %v5605 = vrot.slane %v5603, 4
        %v5606 = vrot.slane %v4781, 5
        %v5607 = vsel %vm2435, %v5605, %v5606
        %v5608 = vrot.slane %v5490, 5
        %v5609 = vrot.slane %v5608, 4
        %v5610 = vrot.slane %v4783, 5
        %v5611 = vsel %vm2435, %v5609, %v5610
        %v5612 = vrot.slane %v5610, 4
        %v5613 = vrot.slane %v4784, 5
        %v5614 = vsel %vm2435, %v5612, %v5613
        %v5615 = vrot.slane %v5491, 5
        %v5616 = vrot.slane %v5615, 4
        %v5617 = vrot.slane %v4786, 5
        %v5618 = vsel %vm2435, %v5616, %v5617
        %v5619 = vrot.slane %v5617, 4
        %v5620 = vrot.slane %v4787, 5
        %v5621 = vsel %vm2435, %v5619, %v5620
        %v5622 = vrot.slane %v5492, 5
        %v5623 = vrot.slane %v5622, 4
        %v5624 = vrot.slane %v4789, 5
        %v5625 = vsel %vm2435, %v5623, %v5624
        %v5626 = vrot.slane %v5624, 4
        %v5627 = vrot.slane %v4790, 5
        %v5628 = vsel %vm2435, %v5626, %v5627
        %v5629 = vrot.slane %v5493, 5
        %v5630 = vrot.slane %v5629, 4
        %v5631 = vrot.slane %v4792, 5
        %v5632 = vsel %vm2435, %v5630, %v5631
        %v5633 = vrot.slane %v5631, 4
        %v5634 = vrot.slane %v4793, 5
        %v5635 = vsel %vm2435, %v5633, %v5634
        %v5636 = vrot.slane %v5494, 5
        %v5637 = vrot.slane %v5636, 4
        %v5638 = vrot.slane %v4795, 5
        %v5639 = vsel %vm2435, %v5637, %v5638
        %v5640 = vrot.slane %v5638, 4
        %v5641 = vrot.slane %v4796, 5
        %v5642 = vsel %vm2435, %v5640, %v5641
        %v5643 = vrot.slane %v5495, 5
        %v5644 = vrot.slane %v5643, 4
        %v5645 = vrot.slane %v4798, 5
        %v5646 = vsel %vm2435, %v5644, %v5645
        %v5647 = vrot.slane %v5645, 4
        %v5648 = vrot.slane %v4799, 5
        %v5649 = vsel %vm2435, %v5647, %v5648
        %v5650 = vrot.slane %v5496, 5
        %v5651 = vrot.slane %v5650, 4
        %v5652 = vrot.slane %v4801, 5
        %v5653 = vsel %vm2435, %v5651, %v5652
        %v5654 = vrot.slane %v5652, 4
        %v5655 = vrot.slane %v4802, 5
        %v5656 = vsel %vm2435, %v5654, %v5655
        %s5657 = scalar_lea.vmem [#allocation8], 16
        %v5658 = vld [vmem:[%s5657] sm:$0x3]
        %v5659 = vunpack.c.l.b16 %v5548
        %v5660 = vunpack.c.l.b16 %v5551
        %v5661 = vunpack.c.l.b16 %v5555
        %v5662 = vunpack.c.l.b16 %v5558
        %v5663 = vunpack.c.l.b16 %v5562
        %v5664 = vunpack.c.l.b16 %v5565
        %v5665 = vunpack.c.l.b16 %v5569
        %v5666 = vunpack.c.l.b16 %v5572
        %v5667 = vunpack.c.l.b16 %v5576
        %v5668 = vunpack.c.l.b16 %v5579
        %v5669 = vunpack.c.l.b16 %v5583
        %v5670 = vunpack.c.l.b16 %v5586
        %v5671 = vunpack.c.l.b16 %v5590
        %v5672 = vunpack.c.l.b16 %v5593
        %v5673 = vunpack.c.l.b16 %v5597
        %v5674 = vunpack.c.l.b16 %v5600
        %v5675 = vunpack.c.l.b16 %v5604
        %v5676 = vunpack.c.l.b16 %v5607
        %v5677 = vunpack.c.l.b16 %v5611
        %v5678 = vunpack.c.l.b16 %v5614
        %v5679 = vunpack.c.l.b16 %v5618
        %v5680 = vunpack.c.l.b16 %v5621
        %v5681 = vunpack.c.l.b16 %v5625
        %v5682 = vunpack.c.l.b16 %v5628
        %v5683 = vunpack.c.l.b16 %v5632
        %v5684 = vunpack.c.l.b16 %v5635
        %v5685 = vunpack.c.l.b16 %v5639
        %v5686 = vunpack.c.l.b16 %v5642
        %v5687 = vunpack.c.l.b16 %v5646
        %v5688 = vunpack.c.l.b16 %v5649
        %v5689 = vunpack.c.l.b16 %v5653
        %v5690 = vunpack.c.l.b16 %v5656
        %v5691 = vpack.c.b16 %v5660, %v5659
        %v5692 = vpack.c.b16 %v5662, %v5661
        %v5693 = vpack.c.b16 %v5664, %v5663
        %v5694 = vpack.c.b16 %v5666, %v5665
        %v5695 = vpack.c.b16 %v5668, %v5667
        %v5696 = vpack.c.b16 %v5670, %v5669
        %v5697 = vpack.c.b16 %v5672, %v5671
        %v5698 = vpack.c.b16 %v5674, %v5673
        %v5699 = vpack.c.b16 %v5676, %v5675
        %v5700 = vpack.c.b16 %v5678, %v5677
        %v5701 = vpack.c.b16 %v5680, %v5679
        %v5702 = vpack.c.b16 %v5682, %v5681
        %v5703 = vpack.c.b16 %v5684, %v5683
        %v5704 = vpack.c.b16 %v5686, %v5685
        %v5705 = vpack.c.b16 %v5688, %v5687
        %v5706 = vpack.c.b16 %v5690, %v5689
        %v5708 = vsel %vm1879, %v5691, 0
        %v5711 = vsel %vm1879, %v5692, 0
        %v5714 = vsel %vm1879, %v5693, 0
        %v5717 = vsel %vm1879, %v5694, 0
        %v5720 = vsel %vm1879, %v5695, 0
        %v5723 = vsel %vm1879, %v5696, 0
        %v5726 = vsel %vm1879, %v5697, 0
        %v5729 = vsel %vm1879, %v5698, 0
        %v5732 = vsel %vm1879, %v5699, 0
        %v5735 = vsel %vm1879, %v5700, 0
        %v5738 = vsel %vm1879, %v5701, 0
        %v5741 = vsel %vm1879, %v5702, 0
        %v5744 = vsel %vm1879, %v5703, 0
        %v5747 = vsel %vm1879, %v5704, 0
        %v5750 = vsel %vm1879, %v5705, 0
        %v5753 = vsel %vm1879, %v5706, 0
        %v5756 = vsel %vm1928, %v5658, 0
        %5758 = vmatprep.subr.bf16.mxu0 0
        %5759 = vmatpush1.bf16.msra.mxu0 %v5756
        %5760 = vmatprep.subr.bf16.mxu0 0
        %5761 = vmatpush1.bf16.msra.mxu0 0
        %5762 = vmatprep.subr.bf16.mxu0 0
        %5763 = vmatpush1.bf16.msra.mxu0 0
        %5764 = vmatprep.subr.bf16.mxu0 0
        %5765 = vmatpush1.bf16.msra.mxu0 0
        %5766 = vmatprep.subr.bf16.mxu0 0
        %5767 = vmatpush1.bf16.msra.mxu0 0
        %5768 = vmatprep.subr.bf16.mxu0 0
        %5769 = vmatpush1.bf16.msra.mxu0 0
        %5770 = vmatprep.subr.bf16.mxu0 0
        %5771 = vmatpush1.bf16.msra.mxu0 0
        %5772 = vmatprep.subr.bf16.mxu0 0
        %5773 = vmatpush1.bf16.msra.mxu0 0
        %5774 = vmatprep.subr.bf16.mxu0 0
        %5775 = vmatpush1.bf16.msra.mxu0 0
        %5776 = vmatprep.subr.bf16.mxu0 0
        %5777 = vmatpush1.bf16.msra.mxu0 0
        %5778 = vmatprep.subr.bf16.mxu0 0
        %5779 = vmatpush1.bf16.msra.mxu0 0
        %5780 = vmatprep.subr.bf16.mxu0 0
        %5781 = vmatpush1.bf16.msra.mxu0 0
        %5782 = vmatprep.subr.bf16.mxu0 0
        %5783 = vmatpush1.bf16.msra.mxu0 0
        %5784 = vmatprep.subr.bf16.mxu0 0
        %5785 = vmatpush1.bf16.msra.mxu0 0
        %5786 = vmatprep.subr.bf16.mxu0 0
        %5787 = vmatpush1.bf16.msra.mxu0 0
        %5788 = vmatprep.subr.bf16.mxu0 0
        %5789 = vmatpush1.bf16.msra.mxu0 0
        %5790 = vmatprep.mubr.bf16.mxu0 0
        %5791 = vmatmul.mubr.bf16.gmra.mrb[0].mxu0 %v5708
        %v5792 = vpop.f32.mrb[0].mxu0
        %v5793 = vadd.f32 0.0, %v5792
        %v5794 = vpop.f32.mrb[0].mxu0
        %v5795 = vpop.f32.mrb[0].mxu0
        %v5796 = vadd.f32 0.0, %v5795
        %v5797 = vpop.f32.mrb[0].mxu0
        %5798 = vmatprep.mubr.bf16.mxu0 0
        %5799 = vmatmul.mubr.bf16.gmra.mrb[0].mxu0 %v5711
        %v5800 = vpop.f32.mrb[0].mxu0
        %v5801 = vadd.f32 0.0, %v5800
        %v5802 = vpop.f32.mrb[0].mxu0
        %v5803 = vpop.f32.mrb[0].mxu0
        %v5804 = vadd.f32 0.0, %v5803
        %v5805 = vpop.f32.mrb[0].mxu0
        %5806 = vmatprep.mubr.bf16.mxu0 0
        %5807 = vmatmul.mubr.bf16.gmra.mrb[0].mxu0 %v5714
        %v5808 = vpop.f32.mrb[0].mxu0
        %v5809 = vadd.f32 0.0, %v5808
        %v5810 = vpop.f32.mrb[0].mxu0
        %v5811 = vpop.f32.mrb[0].mxu0
        %v5812 = vadd.f32 0.0, %v5811
        %v5813 = vpop.f32.mrb[0].mxu0
        %5814 = vmatprep.mubr.bf16.mxu0 0
        %5815 = vmatmul.mubr.bf16.gmra.mrb[0].mxu0 %v5717
        %v5816 = vpop.f32.mrb[0].mxu0
        %v5817 = vadd.f32 0.0, %v5816
        %v5818 = vpop.f32.mrb[0].mxu0
        %v5819 = vpop.f32.mrb[0].mxu0
        %v5820 = vadd.f32 0.0, %v5819
        %v5821 = vpop.f32.mrb[0].mxu0
        %5822 = vmatprep.mubr.bf16.mxu0 0
        %5823 = vmatmul.mubr.bf16.gmra.mrb[0].mxu0 %v5720
        %v5824 = vpop.f32.mrb[0].mxu0
        %v5825 = vadd.f32 0.0, %v5824
        %v5826 = vpop.f32.mrb[0].mxu0
        %v5827 = vpop.f32.mrb[0].mxu0
        %v5828 = vadd.f32 0.0, %v5827
        %v5829 = vpop.f32.mrb[0].mxu0
        %5830 = vmatprep.mubr.bf16.mxu0 0
        %5831 = vmatmul.mubr.bf16.gmra.mrb[0].mxu0 %v5723
        %v5832 = vpop.f32.mrb[0].mxu0
        %v5833 = vadd.f32 0.0, %v5832
        %v5834 = vpop.f32.mrb[0].mxu0
        %v5835 = vpop.f32.mrb[0].mxu0
        %v5836 = vadd.f32 0.0, %v5835
        %v5837 = vpop.f32.mrb[0].mxu0
        %5838 = vmatprep.mubr.bf16.mxu0 0
        %5839 = vmatmul.mubr.bf16.gmra.mrb[0].mxu0 %v5726
        %v5840 = vpop.f32.mrb[0].mxu0
        %v5841 = vadd.f32 0.0, %v5840
        %v5842 = vpop.f32.mrb[0].mxu0
        %v5843 = vpop.f32.mrb[0].mxu0
        %v5844 = vadd.f32 0.0, %v5843
        %v5845 = vpop.f32.mrb[0].mxu0
        %5846 = vmatprep.mubr.bf16.mxu0 0
        %5847 = vmatmul.mubr.bf16.gmra.mrb[0].mxu0 %v5729
        %v5848 = vpop.f32.mrb[0].mxu0
        %v5849 = vadd.f32 0.0, %v5848
        %v5850 = vpop.f32.mrb[0].mxu0
        %v5851 = vpop.f32.mrb[0].mxu0
        %v5852 = vadd.f32 0.0, %v5851
        %v5853 = vpop.f32.mrb[0].mxu0
        %5854 = vmatprep.mubr.bf16.mxu0 0
        %5855 = vmatmul.mubr.bf16.gmra.mrb[0].mxu0 %v5732
        %v5856 = vpop.f32.mrb[0].mxu0
        %v5857 = vadd.f32 0.0, %v5856
        %v5858 = vpop.f32.mrb[0].mxu0
        %v5859 = vpop.f32.mrb[0].mxu0
        %v5860 = vadd.f32 0.0, %v5859
        %v5861 = vpop.f32.mrb[0].mxu0
        %5862 = vmatprep.mubr.bf16.mxu0 0
        %5863 = vmatmul.mubr.bf16.gmra.mrb[0].mxu0 %v5735
        %v5864 = vpop.f32.mrb[0].mxu0
        %v5865 = vadd.f32 0.0, %v5864
        %v5866 = vpop.f32.mrb[0].mxu0
        %v5867 = vpop.f32.mrb[0].mxu0
        %v5868 = vadd.f32 0.0, %v5867
        %v5869 = vpop.f32.mrb[0].mxu0
        %5870 = vmatprep.mubr.bf16.mxu0 0
        %5871 = vmatmul.mubr.bf16.gmra.mrb[0].mxu0 %v5738
        %v5872 = vpop.f32.mrb[0].mxu0
        %v5873 = vadd.f32 0.0, %v5872
        %v5874 = vpop.f32.mrb[0].mxu0
        %v5875 = vpop.f32.mrb[0].mxu0
        %v5876 = vadd.f32 0.0, %v5875
        %v5877 = vpop.f32.mrb[0].mxu0
        %5878 = vmatprep.mubr.bf16.mxu0 0
        %5879 = vmatmul.mubr.bf16.gmra.mrb[0].mxu0 %v5741
        %v5880 = vpop.f32.mrb[0].mxu0
        %v5881 = vadd.f32 0.0, %v5880
        %v5882 = vpop.f32.mrb[0].mxu0
        %v5883 = vpop.f32.mrb[0].mxu0
        %v5884 = vadd.f32 0.0, %v5883
        %v5885 = vpop.f32.mrb[0].mxu0
        %5886 = vmatprep.mubr.bf16.mxu0 0
        %5887 = vmatmul.mubr.bf16.gmra.mrb[0].mxu0 %v5744
        %v5888 = vpop.f32.mrb[0].mxu0
        %v5889 = vadd.f32 0.0, %v5888
        %v5890 = vpop.f32.mrb[0].mxu0
        %v5891 = vpop.f32.mrb[0].mxu0
        %v5892 = vadd.f32 0.0, %v5891
        %v5893 = vpop.f32.mrb[0].mxu0
        %5894 = vmatprep.mubr.bf16.mxu0 0
        %5895 = vmatmul.mubr.bf16.gmra.mrb[0].mxu0 %v5747
        %v5896 = vpop.f32.mrb[0].mxu0
        %v5897 = vadd.f32 0.0, %v5896
        %v5898 = vpop.f32.mrb[0].mxu0
        %v5899 = vpop.f32.mrb[0].mxu0
        %v5900 = vadd.f32 0.0, %v5899
        %v5901 = vpop.f32.mrb[0].mxu0
        %5902 = vmatprep.mubr.bf16.mxu0 0
        %5903 = vmatmul.mubr.bf16.gmra.mrb[0].mxu0 %v5750
        %v5904 = vpop.f32.mrb[0].mxu0
        %v5905 = vadd.f32 0.0, %v5904
        %v5906 = vpop.f32.mrb[0].mxu0
        %v5907 = vpop.f32.mrb[0].mxu0
        %v5908 = vadd.f32 0.0, %v5907
        %v5909 = vpop.f32.mrb[0].mxu0
        %5910 = vmatprep.mubr.bf16.mxu0 0
        %5911 = vmatmul.mubr.bf16.gmra.mrb[0].mxu0 %v5753
        %v5912 = vpop.f32.mrb[0].mxu0
        %v5913 = vadd.f32 0.0, %v5912
        %v5914 = vpop.f32.mrb[0].mxu0
        %v5915 = vpop.f32.mrb[0].mxu0
        %v5916 = vadd.f32 0.0, %v5915
        %v5917 = vpop.f32.mrb[0].mxu0
        %5918 = vdwg.mxu0
        %v5919 = vadd.f32 %v5449, %v5793
        %v5920 = vadd.f32 %v5450, %v5796
        %v5921 = vadd.f32 %v5451, %v5801
        %v5922 = vadd.f32 %v5452, %v5804
        %v5923 = vadd.f32 %v5453, %v5809
        %v5924 = vadd.f32 %v5454, %v5812
        %v5925 = vadd.f32 %v5455, %v5817
        %v5926 = vadd.f32 %v5456, %v5820
        %v5927 = vadd.f32 %v5457, %v5825
        %v5928 = vadd.f32 %v5458, %v5828
        %v5929 = vadd.f32 %v5459, %v5833
        %v5930 = vadd.f32 %v5460, %v5836
        %v5931 = vadd.f32 %v5461, %v5841
        %v5932 = vadd.f32 %v5462, %v5844
        %v5933 = vadd.f32 %v5463, %v5849
        %v5934 = vadd.f32 %v5464, %v5852
        %v5935 = vadd.f32 %v5465, %v5857
        %v5936 = vadd.f32 %v5466, %v5860
        %v5937 = vadd.f32 %v5467, %v5865
        %v5938 = vadd.f32 %v5468, %v5868
        %v5939 = vadd.f32 %v5469, %v5873
        %v5940 = vadd.f32 %v5470, %v5876
        %v5941 = vadd.f32 %v5471, %v5881
        %v5942 = vadd.f32 %v5472, %v5884
        %v5943 = vadd.f32 %v5473, %v5889
        %v5944 = vadd.f32 %v5474, %v5892
        %v5945 = vadd.f32 %v5475, %v5897
        %v5946 = vadd.f32 %v5476, %v5900
        %v5947 = vadd.f32 %v5477, %v5905
        %v5948 = vadd.f32 %v5478, %v5908
        %v5949 = vadd.f32 %v5479, %v5913
        %v5950 = vadd.f32 %v5480, %v5916
        %v5951 = vlaneseq
        %v5952 = vshrl.u32 %v5951, 7
        %v5953 = vsub.s32 0, %v5952
        %v5954 = vrot.slane %v300, %v5953
        %v5955 = vmul.f32 %v5919, %v5954
        %v5956 = vmul.f32 %v5920, %v5954
        %v5957 = vmul.f32 %v5921, %v5954
        %v5958 = vmul.f32 %v5922, %v5954
        %v5959 = vmul.f32 %v5923, %v5954
        %v5960 = vmul.f32 %v5924, %v5954
        %v5961 = vmul.f32 %v5925, %v5954
        %v5962 = vmul.f32 %v5926, %v5954
        %v5963 = vmul.f32 %v5927, %v5954
        %v5964 = vmul.f32 %v5928, %v5954
        %v5965 = vmul.f32 %v5929, %v5954
        %v5966 = vmul.f32 %v5930, %v5954
        %v5967 = vmul.f32 %v5931, %v5954
        %v5968 = vmul.f32 %v5932, %v5954
        %v5969 = vmul.f32 %v5933, %v5954
        %v5970 = vmul.f32 %v5934, %v5954
        %v5971 = vmul.f32 %v5935, %v5954
        %v5972 = vmul.f32 %v5936, %v5954
        %v5973 = vmul.f32 %v5937, %v5954
        %v5974 = vmul.f32 %v5938, %v5954
        %v5975 = vmul.f32 %v5939, %v5954
        %v5976 = vmul.f32 %v5940, %v5954
        %v5977 = vmul.f32 %v5941, %v5954
        %v5978 = vmul.f32 %v5942, %v5954
        %v5979 = vmul.f32 %v5943, %v5954
        %v5980 = vmul.f32 %v5944, %v5954
        %v5981 = vmul.f32 %v5945, %v5954
        %v5982 = vmul.f32 %v5946, %v5954
        %v5983 = vmul.f32 %v5947, %v5954
        %v5984 = vmul.f32 %v5948, %v5954
        %v5985 = vmul.f32 %v5949, %v5954
        %v5986 = vmul.f32 %v5950, %v5954
        %v5987 = vlaneseq
        %v5988 = vshrl.u32 %v5987, 7
        %v5989 = vsub.s32 0, %v5988
        %v5990 = vrot.slane %v301, %v5989
        %v5991 = vadd.f32 %v5955, %v5990
        %v5992 = vadd.f32 %v5956, %v5990
        %v5993 = vadd.f32 %v5957, %v5990
        %v5994 = vadd.f32 %v5958, %v5990
        %v5995 = vadd.f32 %v5959, %v5990
        %v5996 = vadd.f32 %v5960, %v5990
        %v5997 = vadd.f32 %v5961, %v5990
        %v5998 = vadd.f32 %v5962, %v5990
        %v5999 = vadd.f32 %v5963, %v5990
        %v6000 = vadd.f32 %v5964, %v5990
        %v6001 = vadd.f32 %v5965, %v5990
        %v6002 = vadd.f32 %v5966, %v5990
        %v6003 = vadd.f32 %v5967, %v5990
        %v6004 = vadd.f32 %v5968, %v5990
        %v6005 = vadd.f32 %v5969, %v5990
        %v6006 = vadd.f32 %v5970, %v5990
        %v6007 = vadd.f32 %v5971, %v5990
        %v6008 = vadd.f32 %v5972, %v5990
        %v6009 = vadd.f32 %v5973, %v5990
        %v6010 = vadd.f32 %v5974, %v5990
        %v6011 = vadd.f32 %v5975, %v5990
        %v6012 = vadd.f32 %v5976, %v5990
        %v6013 = vadd.f32 %v5977, %v5990
        %v6014 = vadd.f32 %v5978, %v5990
        %v6015 = vadd.f32 %v5979, %v5990
        %v6016 = vadd.f32 %v5980, %v5990
        %v6017 = vadd.f32 %v5981, %v5990
        %v6018 = vadd.f32 %v5982, %v5990
        %v6019 = vadd.f32 %v5983, %v5990
        %v6020 = vadd.f32 %v5984, %v5990
        %v6021 = vadd.f32 %v5985, %v5990
        %v6022 = vadd.f32 %v5986, %v5990
        %v6023 = vmax.f32 %v5991, 0.0
        %v6024 = vmax.f32 %v5992, 0.0
        %v6025 = vmax.f32 %v5993, 0.0
        %v6026 = vmax.f32 %v5994, 0.0
        %v6027 = vmax.f32 %v5995, 0.0
        %v6028 = vmax.f32 %v5996, 0.0
        %v6029 = vmax.f32 %v5997, 0.0
        %v6030 = vmax.f32 %v5998, 0.0
        %v6031 = vmax.f32 %v5999, 0.0
        %v6032 = vmax.f32 %v6000, 0.0
        %v6033 = vmax.f32 %v6001, 0.0
        %v6034 = vmax.f32 %v6002, 0.0
        %v6035 = vmax.f32 %v6003, 0.0
        %v6036 = vmax.f32 %v6004, 0.0
        %v6037 = vmax.f32 %v6005, 0.0
        %v6038 = vmax.f32 %v6006, 0.0
        %v6039 = vmax.f32 %v6007, 0.0
        %v6040 = vmax.f32 %v6008, 0.0
        %v6041 = vmax.f32 %v6009, 0.0
        %v6042 = vmax.f32 %v6010, 0.0
        %v6043 = vmax.f32 %v6011, 0.0
        %v6044 = vmax.f32 %v6012, 0.0
        %v6045 = vmax.f32 %v6013, 0.0
        %v6046 = vmax.f32 %v6014, 0.0
        %v6047 = vmax.f32 %v6015, 0.0
        %v6048 = vmax.f32 %v6016, 0.0
        %v6049 = vmax.f32 %v6017, 0.0
        %v6050 = vmax.f32 %v6018, 0.0
        %v6051 = vmax.f32 %v6019, 0.0
        %v6052 = vmax.f32 %v6020, 0.0
        %v6053 = vmax.f32 %v6021, 0.0
        %v6054 = vmax.f32 %v6022, 0.0
        %v6055 = vpack.c.bf16 %v6024, %v6023
        %v6056 = vpack.c.bf16 %v6026, %v6025
        %v6057 = vpack.c.bf16 %v6028, %v6027
        %v6058 = vpack.c.bf16 %v6030, %v6029
        %v6059 = vpack.c.bf16 %v6032, %v6031
        %v6060 = vpack.c.bf16 %v6034, %v6033
        %v6061 = vpack.c.bf16 %v6036, %v6035
        %v6062 = vpack.c.bf16 %v6038, %v6037
        %v6063 = vpack.c.bf16 %v6040, %v6039
        %v6064 = vpack.c.bf16 %v6042, %v6041
        %v6065 = vpack.c.bf16 %v6044, %v6043
        %v6066 = vpack.c.bf16 %v6046, %v6045
        %v6067 = vpack.c.bf16 %v6048, %v6047
        %v6068 = vpack.c.bf16 %v6050, %v6049
        %v6069 = vpack.c.bf16 %v6052, %v6051
        %v6070 = vpack.c.bf16 %v6054, %v6053
        %v6071 = vld [vmem:[#allocation9] sm:$0x3]
        %v6073 = vsel %vm1879, %v6055, 0
        %v6076 = vsel %vm1879, %v6056, 0
        %v6079 = vsel %vm1879, %v6057, 0
        %v6082 = vsel %vm1879, %v6058, 0
        %v6085 = vsel %vm1879, %v6059, 0
        %v6088 = vsel %vm1879, %v6060, 0
        %v6091 = vsel %vm1879, %v6061, 0
        %v6094 = vsel %vm1879, %v6062, 0
        %v6097 = vsel %vm1879, %v6063, 0
        %v6100 = vsel %vm1879, %v6064, 0
        %v6103 = vsel %vm1879, %v6065, 0
        %v6106 = vsel %vm1879, %v6066, 0
        %v6109 = vsel %vm1879, %v6067, 0
        %v6112 = vsel %vm1879, %v6068, 0
        %v6115 = vsel %vm1879, %v6069, 0
        %v6118 = vsel %vm1879, %v6070, 0
        %v6121 = vsel %vm1928, %v6071, 0
        %6123 = vmatprep.subr.bf16.mxu0 0
        %6124 = vmatpush1.bf16.msra.mxu0 %v6121
        %6125 = vmatprep.subr.bf16.mxu0 0
        %6126 = vmatpush1.bf16.msra.mxu0 0
        %6127 = vmatprep.subr.bf16.mxu0 0
        %6128 = vmatpush1.bf16.msra.mxu0 0
        %6129 = vmatprep.subr.bf16.mxu0 0
        %6130 = vmatpush1.bf16.msra.mxu0 0
        %6131 = vmatprep.subr.bf16.mxu0 0
        %6132 = vmatpush1.bf16.msra.mxu0 0
        %6133 = vmatprep.subr.bf16.mxu0 0
        %6134 = vmatpush1.bf16.msra.mxu0 0
        %6135 = vmatprep.subr.bf16.mxu0 0
        %6136 = vmatpush1.bf16.msra.mxu0 0
        %6137 = vmatprep.subr.bf16.mxu0 0
        %6138 = vmatpush1.bf16.msra.mxu0 0
        %6139 = vmatprep.subr.bf16.mxu0 0
        %6140 = vmatpush1.bf16.msra.mxu0 0
        %6141 = vmatprep.subr.bf16.mxu0 0
        %6142 = vmatpush1.bf16.msra.mxu0 0
        %6143 = vmatprep.subr.bf16.mxu0 0
        %6144 = vmatpush1.bf16.msra.mxu0 0
        %6145 = vmatprep.subr.bf16.mxu0 0
        %6146 = vmatpush1.bf16.msra.mxu0 0
        %6147 = vmatprep.subr.bf16.mxu0 0
        %6148 = vmatpush1.bf16.msra.mxu0 0
        %6149 = vmatprep.subr.bf16.mxu0 0
        %6150 = vmatpush1.bf16.msra.mxu0 0
        %6151 = vmatprep.subr.bf16.mxu0 0
        %6152 = vmatpush1.bf16.msra.mxu0 0
        %6153 = vmatprep.subr.bf16.mxu0 0
        %6154 = vmatpush1.bf16.msra.mxu0 0
        %6155 = vmatprep.mubr.bf16.mxu0 0
        %6156 = vmatmul.mubr.bf16.gmra.mrb[0].mxu0 %v6073
        %v6157 = vpop.f32.mrb[0].mxu0
        %v6158 = vadd.f32 0.0, %v6157
        %v6159 = vpop.f32.mrb[0].mxu0
        %v6160 = vpop.f32.mrb[0].mxu0
        %v6161 = vadd.f32 0.0, %v6160
        %v6162 = vpop.f32.mrb[0].mxu0
        %6163 = vmatprep.mubr.bf16.mxu0 0
        %6164 = vmatmul.mubr.bf16.gmra.mrb[0].mxu0 %v6076
        %v6165 = vpop.f32.mrb[0].mxu0
        %v6166 = vadd.f32 0.0, %v6165
        %v6167 = vpop.f32.mrb[0].mxu0
        %v6168 = vpop.f32.mrb[0].mxu0
        %v6169 = vadd.f32 0.0, %v6168
        %v6170 = vpop.f32.mrb[0].mxu0
        %6171 = vmatprep.mubr.bf16.mxu0 0
        %6172 = vmatmul.mubr.bf16.gmra.mrb[0].mxu0 %v6079
        %v6173 = vpop.f32.mrb[0].mxu0
        %v6174 = vadd.f32 0.0, %v6173
        %v6175 = vpop.f32.mrb[0].mxu0
        %v6176 = vpop.f32.mrb[0].mxu0
        %v6177 = vadd.f32 0.0, %v6176
        %v6178 = vpop.f32.mrb[0].mxu0
        %6179 = vmatprep.mubr.bf16.mxu0 0
        %6180 = vmatmul.mubr.bf16.gmra.mrb[0].mxu0 %v6082
        %v6181 = vpop.f32.mrb[0].mxu0
        %v6182 = vadd.f32 0.0, %v6181
        %v6183 = vpop.f32.mrb[0].mxu0
        %v6184 = vpop.f32.mrb[0].mxu0
        %v6185 = vadd.f32 0.0, %v6184
        %v6186 = vpop.f32.mrb[0].mxu0
        %6187 = vmatprep.mubr.bf16.mxu0 0
        %6188 = vmatmul.mubr.bf16.gmra.mrb[0].mxu0 %v6085
        %v6189 = vpop.f32.mrb[0].mxu0
        %v6190 = vadd.f32 0.0, %v6189
        %v6191 = vpop.f32.mrb[0].mxu0
        %v6192 = vpop.f32.mrb[0].mxu0
        %v6193 = vadd.f32 0.0, %v6192
        %v6194 = vpop.f32.mrb[0].mxu0
        %6195 = vmatprep.mubr.bf16.mxu0 0
        %6196 = vmatmul.mubr.bf16.gmra.mrb[0].mxu0 %v6088
        %v6197 = vpop.f32.mrb[0].mxu0
        %v6198 = vadd.f32 0.0, %v6197
        %v6199 = vpop.f32.mrb[0].mxu0
        %v6200 = vpop.f32.mrb[0].mxu0
        %v6201 = vadd.f32 0.0, %v6200
        %v6202 = vpop.f32.mrb[0].mxu0
        %6203 = vmatprep.mubr.bf16.mxu0 0
        %6204 = vmatmul.mubr.bf16.gmra.mrb[0].mxu0 %v6091
        %v6205 = vpop.f32.mrb[0].mxu0
        %v6206 = vadd.f32 0.0, %v6205
        %v6207 = vpop.f32.mrb[0].mxu0
        %v6208 = vpop.f32.mrb[0].mxu0
        %v6209 = vadd.f32 0.0, %v6208
        %v6210 = vpop.f32.mrb[0].mxu0
        %6211 = vmatprep.mubr.bf16.mxu0 0
        %6212 = vmatmul.mubr.bf16.gmra.mrb[0].mxu0 %v6094
        %v6213 = vpop.f32.mrb[0].mxu0
        %v6214 = vadd.f32 0.0, %v6213
        %v6215 = vpop.f32.mrb[0].mxu0
        %v6216 = vpop.f32.mrb[0].mxu0
        %v6217 = vadd.f32 0.0, %v6216
        %v6218 = vpop.f32.mrb[0].mxu0
        %6219 = vmatprep.mubr.bf16.mxu0 0
        %6220 = vmatmul.mubr.bf16.gmra.mrb[0].mxu0 %v6097
        %v6221 = vpop.f32.mrb[0].mxu0
        %v6222 = vadd.f32 0.0, %v6221
        %v6223 = vpop.f32.mrb[0].mxu0
        %v6224 = vpop.f32.mrb[0].mxu0
        %v6225 = vadd.f32 0.0, %v6224
        %v6226 = vpop.f32.mrb[0].mxu0
        %6227 = vmatprep.mubr.bf16.mxu0 0
        %6228 = vmatmul.mubr.bf16.gmra.mrb[0].mxu0 %v6100
        %v6229 = vpop.f32.mrb[0].mxu0
        %v6230 = vadd.f32 0.0, %v6229
        %v6231 = vpop.f32.mrb[0].mxu0
        %v6232 = vpop.f32.mrb[0].mxu0
        %v6233 = vadd.f32 0.0, %v6232
        %v6234 = vpop.f32.mrb[0].mxu0
        %6235 = vmatprep.mubr.bf16.mxu0 0
        %6236 = vmatmul.mubr.bf16.gmra.mrb[0].mxu0 %v6103
        %v6237 = vpop.f32.mrb[0].mxu0
        %v6238 = vadd.f32 0.0, %v6237
        %v6239 = vpop.f32.mrb[0].mxu0
        %v6240 = vpop.f32.mrb[0].mxu0
        %v6241 = vadd.f32 0.0, %v6240
        %v6242 = vpop.f32.mrb[0].mxu0
        %6243 = vmatprep.mubr.bf16.mxu0 0
        %6244 = vmatmul.mubr.bf16.gmra.mrb[0].mxu0 %v6106
        %v6245 = vpop.f32.mrb[0].mxu0
        %v6246 = vadd.f32 0.0, %v6245
        %v6247 = vpop.f32.mrb[0].mxu0
        %v6248 = vpop.f32.mrb[0].mxu0
        %v6249 = vadd.f32 0.0, %v6248
        %v6250 = vpop.f32.mrb[0].mxu0
        %6251 = vmatprep.mubr.bf16.mxu0 0
        %6252 = vmatmul.mubr.bf16.gmra.mrb[0].mxu0 %v6109
        %v6253 = vpop.f32.mrb[0].mxu0
        %v6254 = vadd.f32 0.0, %v6253
        %v6255 = vpop.f32.mrb[0].mxu0
        %v6256 = vpop.f32.mrb[0].mxu0
        %v6257 = vadd.f32 0.0, %v6256
        %v6258 = vpop.f32.mrb[0].mxu0
        %6259 = vmatprep.mubr.bf16.mxu0 0
        %6260 = vmatmul.mubr.bf16.gmra.mrb[0].mxu0 %v6112
        %v6261 = vpop.f32.mrb[0].mxu0
        %v6262 = vadd.f32 0.0, %v6261
        %v6263 = vpop.f32.mrb[0].mxu0
        %v6264 = vpop.f32.mrb[0].mxu0
        %v6265 = vadd.f32 0.0, %v6264
        %v6266 = vpop.f32.mrb[0].mxu0
        %6267 = vmatprep.mubr.bf16.mxu0 0
        %6268 = vmatmul.mubr.bf16.gmra.mrb[0].mxu0 %v6115
        %v6269 = vpop.f32.mrb[0].mxu0
        %v6270 = vadd.f32 0.0, %v6269
        %v6271 = vpop.f32.mrb[0].mxu0
        %v6272 = vpop.f32.mrb[0].mxu0
        %v6273 = vadd.f32 0.0, %v6272
        %v6274 = vpop.f32.mrb[0].mxu0
        %6275 = vmatprep.mubr.bf16.mxu0 0
        %6276 = vmatmul.mubr.bf16.gmra.mrb[0].mxu0 %v6118
        %v6277 = vpop.f32.mrb[0].mxu0
        %v6278 = vadd.f32 0.0, %v6277
        %v6279 = vpop.f32.mrb[0].mxu0
        %v6280 = vpop.f32.mrb[0].mxu0
        %v6281 = vadd.f32 0.0, %v6280
        %v6282 = vpop.f32.mrb[0].mxu0
        %6283 = vdwg.mxu0
        %v6284 = vlaneseq
        %v6285 = vshrl.u32 %v6284, 7
        %v6286 = vsub.s32 0, %v6285
        %v6287 = vrot.slane %v302, %v6286
        %v6288 = vmul.f32 %v6158, %v6287
        %v6289 = vmul.f32 %v6161, %v6287
        %v6290 = vmul.f32 %v6166, %v6287
        %v6291 = vmul.f32 %v6169, %v6287
        %v6292 = vmul.f32 %v6174, %v6287
        %v6293 = vmul.f32 %v6177, %v6287
        %v6294 = vmul.f32 %v6182, %v6287
        %v6295 = vmul.f32 %v6185, %v6287
        %v6296 = vmul.f32 %v6190, %v6287
        %v6297 = vmul.f32 %v6193, %v6287
        %v6298 = vmul.f32 %v6198, %v6287
        %v6299 = vmul.f32 %v6201, %v6287
        %v6300 = vmul.f32 %v6206, %v6287
        %v6301 = vmul.f32 %v6209, %v6287
        %v6302 = vmul.f32 %v6214, %v6287
        %v6303 = vmul.f32 %v6217, %v6287
        %v6304 = vmul.f32 %v6222, %v6287
        %v6305 = vmul.f32 %v6225, %v6287
        %v6306 = vmul.f32 %v6230, %v6287
        %v6307 = vmul.f32 %v6233, %v6287
        %v6308 = vmul.f32 %v6238, %v6287
        %v6309 = vmul.f32 %v6241, %v6287
        %v6310 = vmul.f32 %v6246, %v6287
        %v6311 = vmul.f32 %v6249, %v6287
        %v6312 = vmul.f32 %v6254, %v6287
        %v6313 = vmul.f32 %v6257, %v6287
        %v6314 = vmul.f32 %v6262, %v6287
        %v6315 = vmul.f32 %v6265, %v6287
        %v6316 = vmul.f32 %v6270, %v6287
        %v6317 = vmul.f32 %v6273, %v6287
        %v6318 = vmul.f32 %v6278, %v6287
        %v6319 = vmul.f32 %v6281, %v6287
        %v6320 = vlaneseq
        %v6321 = vshrl.u32 %v6320, 7
        %v6322 = vsub.s32 0, %v6321
        %v6323 = vrot.slane %v303, %v6322
        %v6324 = vadd.f32 %v6288, %v6323
        %v6325 = vadd.f32 %v6289, %v6323
        %v6326 = vadd.f32 %v6290, %v6323
        %v6327 = vadd.f32 %v6291, %v6323
        %v6328 = vadd.f32 %v6292, %v6323
        %v6329 = vadd.f32 %v6293, %v6323
        %v6330 = vadd.f32 %v6294, %v6323
        %v6331 = vadd.f32 %v6295, %v6323
        %v6332 = vadd.f32 %v6296, %v6323
        %v6333 = vadd.f32 %v6297, %v6323
        %v6334 = vadd.f32 %v6298, %v6323
        %v6335 = vadd.f32 %v6299, %v6323
        %v6336 = vadd.f32 %v6300, %v6323
        %v6337 = vadd.f32 %v6301, %v6323
        %v6338 = vadd.f32 %v6302, %v6323
        %v6339 = vadd.f32 %v6303, %v6323
        %v6340 = vadd.f32 %v6304, %v6323
        %v6341 = vadd.f32 %v6305, %v6323
        %v6342 = vadd.f32 %v6306, %v6323
        %v6343 = vadd.f32 %v6307, %v6323
        %v6344 = vadd.f32 %v6308, %v6323
        %v6345 = vadd.f32 %v6309, %v6323
        %v6346 = vadd.f32 %v6310, %v6323
        %v6347 = vadd.f32 %v6311, %v6323
        %v6348 = vadd.f32 %v6312, %v6323
        %v6349 = vadd.f32 %v6313, %v6323
        %v6350 = vadd.f32 %v6314, %v6323
        %v6351 = vadd.f32 %v6315, %v6323
        %v6352 = vadd.f32 %v6316, %v6323
        %v6353 = vadd.f32 %v6317, %v6323
        %v6354 = vadd.f32 %v6318, %v6323
        %v6355 = vadd.f32 %v6319, %v6323
        %v6356 = vunpack.c.l.bf16 %v304
        %v6357 = vunpack.c.l.bf16 %v305
        %v6358 = vunpack.c.l.bf16 %v306
        %v6359 = vunpack.c.l.bf16 %v307
        %v6360 = vunpack.c.l.bf16 %v308
        %v6361 = vunpack.c.l.bf16 %v309
        %v6362 = vunpack.c.l.bf16 %v310
        %v6363 = vunpack.c.l.bf16 %v311
        %v6364 = vunpack.c.l.bf16 %v312
        %v6365 = vunpack.c.l.bf16 %v313
        %v6366 = vunpack.c.l.bf16 %v314
        %v6367 = vunpack.c.l.bf16 %v315
        %v6368 = vunpack.c.l.bf16 %v316
        %v6369 = vunpack.c.l.bf16 %v317
        %v6370 = vunpack.c.l.bf16 %v318
        %v6371 = vunpack.c.l.bf16 %v319
        %v6372 = vunpack.c.l.bf16 %v320
        %v6373 = vunpack.c.l.bf16 %v321
        %v6374 = vunpack.c.l.bf16 %v322
        %v6375 = vunpack.c.l.bf16 %v323
        %v6376 = vunpack.c.l.bf16 %v324
        %v6377 = vunpack.c.l.bf16 %v325
        %v6378 = vunpack.c.l.bf16 %v326
        %v6379 = vunpack.c.l.bf16 %v327
        %v6380 = vunpack.c.l.bf16 %v328
        %v6381 = vunpack.c.l.bf16 %v329
        %v6382 = vunpack.c.l.bf16 %v330
        %v6383 = vunpack.c.l.bf16 %v331
        %v6384 = vunpack.c.l.bf16 %v332
        %v6385 = vunpack.c.l.bf16 %v333
        %v6386 = vunpack.c.l.bf16 %v334
        %v6387 = vunpack.c.l.bf16 %v335
        %v6388 = vadd.f32 %v6324, %v6356
        %v6389 = vadd.f32 %v6325, %v6357
        %v6390 = vadd.f32 %v6326, %v6358
        %v6391 = vadd.f32 %v6327, %v6359
        %v6392 = vadd.f32 %v6328, %v6360
        %v6393 = vadd.f32 %v6329, %v6361
        %v6394 = vadd.f32 %v6330, %v6362
        %v6395 = vadd.f32 %v6331, %v6363
        %v6396 = vadd.f32 %v6332, %v6364
        %v6397 = vadd.f32 %v6333, %v6365
        %v6398 = vadd.f32 %v6334, %v6366
        %v6399 = vadd.f32 %v6335, %v6367
        %v6400 = vadd.f32 %v6336, %v6368
        %v6401 = vadd.f32 %v6337, %v6369
        %v6402 = vadd.f32 %v6338, %v6370
        %v6403 = vadd.f32 %v6339, %v6371
        %v6404 = vadd.f32 %v6340, %v6372
        %v6405 = vadd.f32 %v6341, %v6373
        %v6406 = vadd.f32 %v6342, %v6374
        %v6407 = vadd.f32 %v6343, %v6375
        %v6408 = vadd.f32 %v6344, %v6376
        %v6409 = vadd.f32 %v6345, %v6377
        %v6410 = vadd.f32 %v6346, %v6378
        %v6411 = vadd.f32 %v6347, %v6379
        %v6412 = vadd.f32 %v6348, %v6380
        %v6413 = vadd.f32 %v6349, %v6381
        %v6414 = vadd.f32 %v6350, %v6382
        %v6415 = vadd.f32 %v6351, %v6383
        %v6416 = vadd.f32 %v6352, %v6384
        %v6417 = vadd.f32 %v6353, %v6385
        %v6418 = vadd.f32 %v6354, %v6386
        %v6419 = vadd.f32 %v6355, %v6387
        %v6420 = vmax.f32 %v6388, 0.0
        %v6421 = vmax.f32 %v6389, 0.0
        %v6422 = vmax.f32 %v6390, 0.0
        %v6423 = vmax.f32 %v6391, 0.0
        %v6424 = vmax.f32 %v6392, 0.0
        %v6425 = vmax.f32 %v6393, 0.0
        %v6426 = vmax.f32 %v6394, 0.0
        %v6427 = vmax.f32 %v6395, 0.0
        %v6428 = vmax.f32 %v6396, 0.0
        %v6429 = vmax.f32 %v6397, 0.0
        %v6430 = vmax.f32 %v6398, 0.0
        %v6431 = vmax.f32 %v6399, 0.0
        %v6432 = vmax.f32 %v6400, 0.0
        %v6433 = vmax.f32 %v6401, 0.0
        %v6434 = vmax.f32 %v6402, 0.0
        %v6435 = vmax.f32 %v6403, 0.0
        %v6436 = vmax.f32 %v6404, 0.0
        %v6437 = vmax.f32 %v6405, 0.0
        %v6438 = vmax.f32 %v6406, 0.0
        %v6439 = vmax.f32 %v6407, 0.0
        %v6440 = vmax.f32 %v6408, 0.0
        %v6441 = vmax.f32 %v6409, 0.0
        %v6442 = vmax.f32 %v6410, 0.0
        %v6443 = vmax.f32 %v6411, 0.0
        %v6444 = vmax.f32 %v6412, 0.0
        %v6445 = vmax.f32 %v6413, 0.0
        %v6446 = vmax.f32 %v6414, 0.0
        %v6447 = vmax.f32 %v6415, 0.0
        %v6448 = vmax.f32 %v6416, 0.0
        %v6449 = vmax.f32 %v6417, 0.0
        %v6450 = vmax.f32 %v6418, 0.0
        %v6451 = vmax.f32 %v6419, 0.0
        %v6452 = vpack.c.bf16 %v6421, %v6420
        %v6453 = vpack.c.bf16 %v6423, %v6422
        %v6454 = vpack.c.bf16 %v6425, %v6424
        %v6455 = vpack.c.bf16 %v6427, %v6426
        %v6456 = vpack.c.bf16 %v6429, %v6428
        %v6457 = vpack.c.bf16 %v6431, %v6430
        %v6458 = vpack.c.bf16 %v6433, %v6432
        %v6459 = vpack.c.bf16 %v6435, %v6434
        %v6460 = vpack.c.bf16 %v6437, %v6436
        %v6461 = vpack.c.bf16 %v6439, %v6438
        %v6462 = vpack.c.bf16 %v6441, %v6440
        %v6463 = vpack.c.bf16 %v6443, %v6442
        %v6464 = vpack.c.bf16 %v6445, %v6444
        %v6465 = vpack.c.bf16 %v6447, %v6446
        %v6466 = vpack.c.bf16 %v6449, %v6448
        %v6467 = vpack.c.bf16 %v6451, %v6450
        %v6484 = vunpack.c.l.b16 %v6452
        %v6485 = vunpack.c.h.b16 %v6452
        %v6486 = vunpack.c.l.b16 %v6453
        %v6487 = vunpack.c.h.b16 %v6453
        %v6488 = vunpack.c.l.b16 %v6454
        %v6489 = vunpack.c.h.b16 %v6454
        %v6490 = vunpack.c.l.b16 %v6455
        %v6491 = vunpack.c.h.b16 %v6455
        %v6492 = vunpack.c.l.b16 %v6456
        %v6493 = vunpack.c.h.b16 %v6456
        %v6494 = vunpack.c.l.b16 %v6457
        %v6495 = vunpack.c.h.b16 %v6457
        %v6496 = vunpack.c.l.b16 %v6458
        %v6497 = vunpack.c.h.b16 %v6458
        %v6498 = vunpack.c.l.b16 %v6459
        %v6499 = vunpack.c.h.b16 %v6459
        %v6500 = vunpack.c.l.b16 %v6460
        %v6501 = vunpack.c.h.b16 %v6460
        %v6502 = vunpack.c.l.b16 %v6461
        %v6503 = vunpack.c.h.b16 %v6461
        %v6504 = vunpack.c.l.b16 %v6462
        %v6505 = vunpack.c.h.b16 %v6462
        %v6506 = vunpack.c.l.b16 %v6463
        %v6507 = vunpack.c.h.b16 %v6463
        %v6508 = vunpack.c.l.b16 %v6464
        %v6509 = vunpack.c.h.b16 %v6464
        %v6510 = vunpack.c.l.b16 %v6465
        %v6511 = vunpack.c.h.b16 %v6465
        %v6512 = vunpack.c.l.b16 %v6466
        %v6513 = vunpack.c.h.b16 %v6466
        %v6514 = vunpack.c.l.b16 %v6467
        %v6515 = vunpack.c.h.b16 %v6467
        %v6516 = vpack.c.b16 %v6484, %v6484
        %v6517 = vpack.c.b16 %v6485, %v6485
        %v6518 = vpack.c.b16 %v6486, %v6486
        %v6519 = vpack.c.b16 %v6487, %v6487
        %v6520 = vpack.c.b16 %v6488, %v6488
        %v6521 = vpack.c.b16 %v6489, %v6489
        %v6522 = vpack.c.b16 %v6490, %v6490
        %v6523 = vpack.c.b16 %v6491, %v6491
        %v6524 = vpack.c.b16 %v6492, %v6492
        %v6525 = vpack.c.b16 %v6493, %v6493
        %v6526 = vpack.c.b16 %v6494, %v6494
        %v6527 = vpack.c.b16 %v6495, %v6495
        %v6528 = vpack.c.b16 %v6496, %v6496
        %v6529 = vpack.c.b16 %v6497, %v6497
        %v6530 = vpack.c.b16 %v6498, %v6498
        %v6531 = vpack.c.b16 %v6499, %v6499
        %v6532 = vpack.c.b16 %v6500, %v6500
        %v6533 = vpack.c.b16 %v6501, %v6501
        %v6534 = vpack.c.b16 %v6502, %v6502
        %v6535 = vpack.c.b16 %v6503, %v6503
        %v6536 = vpack.c.b16 %v6504, %v6504
        %v6537 = vpack.c.b16 %v6505, %v6505
        %v6538 = vpack.c.b16 %v6506, %v6506
        %v6539 = vpack.c.b16 %v6507, %v6507
        %v6540 = vpack.c.b16 %v6508, %v6508
        %v6541 = vpack.c.b16 %v6509, %v6509
        %v6542 = vpack.c.b16 %v6510, %v6510
        %v6543 = vpack.c.b16 %v6511, %v6511
        %v6544 = vpack.c.b16 %v6512, %v6512
        %v6545 = vpack.c.b16 %v6513, %v6513
        %v6546 = vpack.c.b16 %v6514, %v6514
        %v6547 = vpack.c.b16 %v6515, %v6515
        %vm6580 = vcmask 125952
        %6581 = vst.msk [vmem:[%s296] sm:$0xf] %vm6580, %v6516
        %6582 = vst.msk [vmem:[%s296 + $0x4] sm:$0xf] %vm6580, %v6517
        %6583 = vst.msk [vmem:[%s296 + $0x8] sm:$0xf] %vm6580, %v6518
        %6584 = vst.msk [vmem:[%s296 + $0xc] sm:$0xf] %vm6580, %v6519
        %6585 = vst.msk [vmem:[%s296 + $0x10] sm:$0xf] %vm6580, %v6520
        %6586 = vst.msk [vmem:[%s296 + $0x14] sm:$0xf] %vm6580, %v6521
        %6587 = vst.msk [vmem:[%s296 + $0x18] sm:$0xf] %vm6580, %v6522
        %6588 = vst.msk [vmem:[%s296 + $0x1c] sm:$0xf] %vm6580, %v6523
        %6589 = vst.msk [vmem:[%s296 + $0x20] sm:$0xf] %vm6580, %v6524
        %6590 = vst.msk [vmem:[%s296 + $0x24] sm:$0xf] %vm6580, %v6525
        %6591 = vst.msk [vmem:[%s296 + $0x28] sm:$0xf] %vm6580, %v6526
        %6592 = vst.msk [vmem:[%s296 + $0x2c] sm:$0xf] %vm6580, %v6527
        %6593 = vst.msk [vmem:[%s296 + $0x30] sm:$0xf] %vm6580, %v6528
        %6594 = vst.msk [vmem:[%s296 + $0x34] sm:$0xf] %vm6580, %v6529
        %6595 = vst.msk [vmem:[%s296 + $0x38] sm:$0xf] %vm6580, %v6530
        %6596 = vst.msk [vmem:[%s296 + $0x3c] sm:$0xf] %vm6580, %v6531
        %6597 = vst.msk [vmem:[%s296 + $0x40] sm:$0xf] %vm6580, %v6532
        %6598 = vst.msk [vmem:[%s296 + $0x44] sm:$0xf] %vm6580, %v6533
        %6599 = vst.msk [vmem:[%s296 + $0x48] sm:$0xf] %vm6580, %v6534
        %6600 = vst.msk [vmem:[%s296 + $0x4c] sm:$0xf] %vm6580, %v6535
        %6601 = vst.msk [vmem:[%s296 + $0x50] sm:$0xf] %vm6580, %v6536
        %6602 = vst.msk [vmem:[%s296 + $0x54] sm:$0xf] %vm6580, %v6537
        %6603 = vst.msk [vmem:[%s296 + $0x58] sm:$0xf] %vm6580, %v6538
        %6604 = vst.msk [vmem:[%s296 + $0x5c] sm:$0xf] %vm6580, %v6539
        %6605 = vst.msk [vmem:[%s296 + $0x60] sm:$0xf] %vm6580, %v6540
        %6606 = vst.msk [vmem:[%s296 + $0x64] sm:$0xf] %vm6580, %v6541
        %6607 = vst.msk [vmem:[%s296 + $0x68] sm:$0xf] %vm6580, %v6542
        %6608 = vst.msk [vmem:[%s296 + $0x6c] sm:$0xf] %vm6580, %v6543
        %6609 = vst.msk [vmem:[%s296 + $0x70] sm:$0xf] %vm6580, %v6544
        %6610 = vst.msk [vmem:[%s296 + $0x74] sm:$0xf] %vm6580, %v6545
        %6611 = vst.msk [vmem:[%s296 + $0x78] sm:$0xf] %vm6580, %v6546
        %6612 = vst.msk [vmem:[%s296 + $0x7c] sm:$0xf] %vm6580, %v6547
        %s6613 = sand.u32 %s142, 1
        %s6614 = scalar_lea.sflag [#allocation5], %s6613
        %s6615 = sand.u32 %s142, 1
        %s6616 = smul.addr %s6615, 128
        %s6617 = scalar_lea.vmem [#allocation12], %s6616
        // Predicated region
        $region61: #{tpu_custom_call.1} parent=39 // pred_check
          %p6618 = pneg %p152
        $region62: #{tpu_custom_call.1} parent=39 // pred_check_branch
          %6620 = sbr.rel (%p6618) target = $region64
        $region63: #{tpu_custom_call.1} parent=39 // pred_region
          %s6622 = ssub.s32 2048, 2048
          %6623 = vsyncadd %s6614, %s6622
          %s6624 = smul.addr %s24, 32
          %s6625 = smul.addr %s6624, 64
          %s6626 = scalar_lea.hbm %s5, %s6625
          %s6627 = sshll.u32 %s6617, 4
          %s6628 = int_to_ptr.vmem [resolvable:$true] %s6627
          %6633 = dma.vmem_to_hbm [thread:$0]  %s6628, 2048, %s6626, %s6614, 64, 64, 4
        $region64: #{tpu_custom_call.1} parent=39 // pred_fallthru
          _
      $region40: #{tpu_custom_call.1} parent=5 // pred_fallthru
        _
      %p6634 = scmp.le.s32.totalorder 2, %s19
      // Predicated region
      $region65: #{tpu_custom_call.1} parent=5 // pred_check
        %p6635 = pneg %p6634
      $region66: #{tpu_custom_call.1} parent=5 // pred_check_branch
        %6637 = sbr.rel (%p6635) target = $region68
      $region67: #{tpu_custom_call.1} parent=5 // pred_region
        %s6638 = ssub.s32 %s19, 2
        // Predicated region
        $region69: #{tpu_custom_call.1} parent=67 // pred_check
          %p6639 = pneg %p158
        $region70: #{tpu_custom_call.1} parent=67 // pred_check_branch
          %6641 = sbr.rel (%p6639) target = $region72
        $region71: #{tpu_custom_call.1} parent=67 // pred_region
          %s6642 = sand.u32 %s143, 1
          %s6643 = scalar_lea.sflag [#allocation5], %s6642
          %s6644 = sand.u32 %s143, 1
          %s6645 = smul.addr %s6644, 128
          %s6646 = scalar_lea.vmem [#allocation12], %s6645
          %6647 = dma.done %s6643, 2048
        $region72: #{tpu_custom_call.1} parent=67 // pred_fallthru
          _
      $region68: #{tpu_custom_call.1} parent=5 // pred_fallthru
        _
    $region6: #{tpu_custom_call.1} parent=1 // loop_footer
      %s23 = sadd.s32 1, %s19
    $region7: #{tpu_custom_call.1} parent=1 // loop_footer_branch
      %18 = sbr.rel target = $region3
    $region8: #{tpu_custom_call.1} parent=1 // loop_exit
      _
    %6648 = vsyncpa [#allocation4], 1
    %s6649 = scalar_lea.sflag [#allocation4], 1
    %6650 = vsyncpa %s6649, 1
    %6651 = vsyncpa [#allocation7], 1
    %6652 = vsyncpa [#allocation10], 1
    %6653 = vsyncpa [#allocation5], 1
    %s6654 = scalar_lea.sflag [#allocation5], 1
    %6655 = vsyncpa %s6654, 1

</llo_original>
